<compile_context>
chip_gen: v7x
topology: tpu7x:2x2x1
jax: 0.10.0
libtpu: 0.0.40
codegen_flags: <defaults>
</compile_context>

<pallas_src>
import functools

import numpy as np
import jax
import jax.numpy as jnp
from jax import lax
from jax.experimental import pallas as pl
from jax.experimental.pallas import tpu as pltpu


def _fused_kernel(x_ref, rowmask_ref, w1_ref, b1_ref, w2_ref, b2_ref,
                  mean_ref, var_ref, ypad_ref, *, H, W, Cin, Cout):
    Wp = W + 2                  # row-padded width
    HWp = H * Wp                # row-padded flattened pixel count
    PAD = Wp + 1                # flat end padding (covers dy = +-1 offsets)
    C2 = 2 * Cin

    # flat offsets of the 9 taps (dy outer, dx inner -> matches weight order)
    offs = [(dy - 1) * Wp + (dx - 1) for dy in range(3) for dx in range(3)]

    # ---------- stage 1: conv3x3 (both branches fused) + ReLU --------------
    # every tap is a contiguous sublane slice of the pre-padded flat input
    patch1 = jnp.concatenate(
        [x_ref[0, PAD + o:PAD + o + HWp, :] for o in offs], axis=-1)  # (HWp, 9*Cin)
    y1 = jnp.dot(patch1, w1_ref[...],
                 preferred_element_type=jnp.float32) + b1_ref[...]
    # ReLU, then zero the two w-pad columns so they act as the 'SAME'
    # zero-padding for stage 2 (rowmask is {0,1}, shape (HWp, 1)).
    y1 = jnp.maximum(y1, 0.0) * rowmask_ref[...]                      # (HWp, C2)

    # ---------- in-VMEM flat re-padding of the intermediate ----------------
    zeros_pad = jnp.zeros((PAD, C2), jnp.float32)
    ypad_ref[0:PAD, :] = zeros_pad                     # leading zero strip
    ypad_ref[PAD + HWp:PAD + HWp + PAD, :] = zeros_pad  # trailing zero strip
    ypad_ref[PAD:PAD + HWp, :] = y1                    # interior (overwritten
                                                       # every grid step)

    # ---------- stage 2: conv3x3 (block-diagonal fused weight) -------------
    patch2 = jnp.concatenate(
        [ypad_ref[PAD + o:PAD + o + HWp, :] for o in offs], axis=-1)  # (HWp, 9*C2)
    out2 = jnp.dot(patch2, w2_ref[...],
                   preferred_element_type=jnp.float32) + b2_ref[...]
    m = out2[:, :Cout]                                  # mean branch
    v = out2[:, Cout:]                                  # var branch

    # mean branch: per-pixel softmax over the channel axis
    m_max = jnp.max(m, axis=-1, keepdims=True)
    e = jnp.exp(m - m_max)
    mean_ref[0] = e / jnp.sum(e, axis=-1, keepdims=True)

    # var branch: numerically-safe sigmoid, then per-pixel channel mean.
    pos = v >= 0.0
    z = jnp.exp(jnp.where(pos, -v, v))      # exp of a non-positive argument
    sig = jnp.where(pos, 1.0 / (1.0 + z), z / (1.0 + z))
    var_ref[0] = jnp.mean(sig, axis=-1, keepdims=True)  # (HWp, 1)


def kernel_extra_conv_tail_mean_var(x_nchw, params):
    """x_nchw: (B, Cin, H, W) float32. Returns (kernel_mean, kernel_var),
    each of shape (B, H*W, ks, ks) with ks = sqrt(out_ch)."""
    (w1m, b1m, w2m, b2m, w1v, b1v, w2v, b2v) = params
    B, Cin, H, W = x_nchw.shape
    Cout = w2m.shape[-1]
    ks = int(round(Cout ** 0.5))
    HW = H * W
    Wp = W + 2
    HWp = H * Wp
    PAD = Wp + 1
    TOT = HWp + 2 * PAD
    C2 = 2 * Cin
    f32 = jnp.float32

    # ---- input: NHWC, zero-pad W, flatten (h, w) row-major, zero-pad ends
    x_nhwc = jnp.transpose(x_nchw, (0, 2, 3, 1)).astype(f32)
    x_wpad = jnp.pad(x_nhwc, ((0, 0), (0, 0), (1, 1), (0, 0)))     # (B,H,Wp,Cin)
    x_flat = jnp.pad(x_wpad.reshape(B, HWp, Cin),
                     ((0, 0), (PAD, PAD), (0, 0)))                 # (B,TOT,Cin)

    # row mask (constant): zero for the two w-pad columns of each row
    col = np.arange(HWp) % Wp
    rowmask = jnp.asarray(((col != 0) & (col != Wp - 1))
                          .astype(np.float32).reshape(HWp, 1))

    # --- stage-1 fused weight: shared im2col LHS, concat along out-channels
    w1 = jnp.concatenate([w1m.reshape(9 * Cin, Cin),
                          w1v.reshape(9 * Cin, Cin)], axis=-1).astype(f32)
    b1 = jnp.concatenate([b1m, b1v], axis=-1).reshape(1, C2).astype(f32)

    # --- stage-2 fused weight: branches read disjoint channels of the fused
    #     intermediate -> per-tap block-diagonal (9*2*Cin, 2*Cout) weight.
    w2m_t = w2m.reshape(9, Cin, Cout)
    w2v_t = w2v.reshape(9, Cin, Cout)
    w2 = jnp.zeros((9, C2, 2 * Cout), f32)
    w2 = w2.at[:, :Cin, :Cout].set(w2m_t)
    w2 = w2.at[:, Cin:, Cout:].set(w2v_t)
    w2 = w2.reshape(9 * C2, 2 * Cout)
    b2 = jnp.concatenate([b2m, b2v], axis=-1).reshape(1, 2 * Cout).astype(f32)

    kern = functools.partial(_fused_kernel, H=H, W=W, Cin=Cin, Cout=Cout)
    mean_full, var_full = pl.pallas_call(
        kern,
        out_shape=(jax.ShapeDtypeStruct((B, HWp, Cout), f32),
                   jax.ShapeDtypeStruct((B, HWp, 1), f32)),
        grid_spec=pltpu.PrefetchScalarGridSpec(
            num_scalar_prefetch=0,
            grid=(B,),
            in_specs=[
                pl.BlockSpec((1, TOT, Cin), lambda b: (b, 0, 0)),
                pl.BlockSpec((HWp, 1), lambda b: (0, 0)),
                pl.BlockSpec(w1.shape, lambda b: (0, 0)),
                pl.BlockSpec(b1.shape, lambda b: (0, 0)),
                pl.BlockSpec(w2.shape, lambda b: (0, 0)),
                pl.BlockSpec(b2.shape, lambda b: (0, 0)),
            ],
            out_specs=(pl.BlockSpec((1, HWp, Cout), lambda b: (b, 0, 0)),
                       pl.BlockSpec((1, HWp, 1), lambda b: (b, 0, 0))),
            scratch_shapes=[pltpu.VMEM((TOT, C2), f32)],
        ),
        compiler_params=pltpu.CompilerParams(
            dimension_semantics=("parallel",)),   # v7x: one image per core
    )(x_flat, rowmask, w1, b1, w2, b2)

    # drop the w-pad columns (pure layout), reshape to (B, H*W, ks, ks)
    kernel_mean = (mean_full.reshape(B, H, Wp, Cout)[:, :, 1:W + 1, :]
                   .reshape(B, HW, ks, ks))
    var_col = var_full.reshape(B, H, Wp)[:, :, 1:W + 1].reshape(B, HW)
    # var: replicate the per-pixel channel mean to (ks, ks) outside the kernel
    kernel_var = jnp.broadcast_to(var_col[:, :, None, None], (B, HW, ks, ks))
    return kernel_mean, kernel_var


# ------------------------- pure-JAX reference -----------------------------
def _ref_forward(x_nchw, params):
    (w1m, b1m, w2m, b2m, w1v, b1v, w2v, b2v) = params
    B, Cin, H, W = x_nchw.shape
    Cout = w2m.shape[-1]
    ks = int(round(Cout ** 0.5))

    def conv(x, w_hwio, b):
        w_oihw = jnp.transpose(w_hwio, (3, 2, 0, 1))
        y = lax.conv_general_dilated(
            x, w_oihw, (1, 1), 'SAME',
            dimension_numbers=('NCHW', 'OIHW', 'NCHW'))
        return y + b.reshape(1, -1, 1, 1)

    km = conv(jnp.maximum(conv(x_nchw, w1m, b1m), 0.0), w2m, b2m)
    kv = jax.nn.sigmoid(conv(jnp.maximum(conv(x_nchw, w1v, b1v), 0.0),
                             w2v, b2v))
    km = jax.nn.softmax(km, axis=1)
    km = km.reshape(B, ks, ks, H * W).transpose(0, 3, 1, 2)
    kv = kv.reshape(B, ks, ks, H * W).transpose(0, 3, 1, 2)
    kv = kv.mean(axis=(2, 3), keepdims=True)
    kv = jnp.tile(kv, (1, 1, ks, ks))
    return km, kv


if __name__ == "__main__":
    B, Cin, H, W = 2, 4, 16, 16
    Cout = 16                       # kernel_size = sqrt(16) = 4

    key = jax.random.PRNGKey(0)
    keys = jax.random.split(key, 9)

    def init(k, shape, scale=0.1):
        return jax.random.normal(k, shape, jnp.float32) * scale

    x = jax.random.normal(keys[0], (B, Cin, H, W), jnp.float32)
    w1m = init(keys[1], (3, 3, Cin, Cin));  b1m = init(keys[2], (1, Cin))
    w2m = init(keys[3], (3, 3, Cin, Cout)); b2m = init(keys[4], (1, Cout))
    w1v = init(keys[5], (3, 3, Cin, Cin));  b1v = init(keys[6], (1, Cin))
    w2v = init(keys[7], (3, 3, Cin, Cout)); b2v = init(keys[8], (1, Cout))
    params = (w1m, b1m, w2m, b2m, w1v, b1v, w2v, b2v)

    km, kv = kernel_extra_conv_tail_mean_var(x, params)
    jax.block_until_ready((km, kv))

    km_ref, kv_ref = _ref_forward(x, params)
    assert km.shape == (B, H * W, 4, 4) and kv.shape == (B, H * W, 4, 4)
    assert jnp.allclose(km, km_ref, atol=1e-5, rtol=1e-5), "mean mismatch"
    assert jnp.allclose(kv, kv_ref, atol=1e-5, rtol=1e-5), "var mismatch"

    print("KERNEL_OK")
</pallas_src>

<mosaic_0001>
module attributes {stable_mosaic.version = 11 : i64} {
  func.func @_fused_kernel(%arg0: i32, %arg1: memref<1x326x4xf32, #tpu.memory_space<vmem>>, %arg2: memref<288x1xf32, #tpu.memory_space<vmem>>, %arg3: memref<36x8xf32, #tpu.memory_space<vmem>>, %arg4: memref<1x8xf32, #tpu.memory_space<vmem>>, %arg5: memref<72x32xf32, #tpu.memory_space<vmem>>, %arg6: memref<1x32xf32, #tpu.memory_space<vmem>>, %arg7: memref<1x288x16xf32, #tpu.memory_space<vmem>>, %arg8: memref<1x288x1xf32, #tpu.memory_space<vmem>>, %arg9: memref<326x8xf32, #tpu.memory_space<vmem>>) attributes {dimension_semantics = [#tpu.dimension_semantics<parallel>], iteration_bounds = array<i64: 2>, scalar_prefetch = 0 : i64, scratch_operands = 1 : i64, tpu.core_type = #tpu.core_type<tc>, window_params = [{transform_indices = @transform_0, window_bounds = array<i64: 1, 326, 4>}, {pipeline_mode = #tpu.pipeline_mode<synchronous>, transform_indices = @transform_1, window_bounds = array<i64: 288, 1>}, {pipeline_mode = #tpu.pipeline_mode<synchronous>, transform_indices = @transform_2, window_bounds = array<i64: 36, 8>}, {pipeline_mode = #tpu.pipeline_mode<synchronous>, transform_indices = @transform_3, window_bounds = array<i64: 1, 8>}, {pipeline_mode = #tpu.pipeline_mode<synchronous>, transform_indices = @transform_4, window_bounds = array<i64: 72, 32>}, {pipeline_mode = #tpu.pipeline_mode<synchronous>, transform_indices = @transform_5, window_bounds = array<i64: 1, 32>}, {transform_indices = @transform_6, window_bounds = array<i64: 1, 288, 16>}, {transform_indices = @transform_7, window_bounds = array<i64: 1, 288, 1>}]} {
    %c0 = arith.constant 0 : index
    %c0_0 = arith.constant 0 : index
    %c0_1 = arith.constant 0 : index
    %0 = vector.load %arg1[%c0, %c0_0, %c0_1] : memref<1x326x4xf32, #tpu.memory_space<vmem>>, vector<1x288x4xf32>
    %1 = vector.shape_cast %0 : vector<1x288x4xf32> to vector<288x4xf32>
    %c0_2 = arith.constant 0 : index
    %c1 = arith.constant 1 : index
    %c0_3 = arith.constant 0 : index
    %2 = vector.load %arg1[%c0_2, %c1, %c0_3] : memref<1x326x4xf32, #tpu.memory_space<vmem>>, vector<1x288x4xf32>
    %3 = vector.shape_cast %2 : vector<1x288x4xf32> to vector<288x4xf32>
    %c0_4 = arith.constant 0 : index
    %c2 = arith.constant 2 : index
    %c0_5 = arith.constant 0 : index
    %4 = vector.load %arg1[%c0_4, %c2, %c0_5] : memref<1x326x4xf32, #tpu.memory_space<vmem>>, vector<1x288x4xf32>
    %5 = vector.shape_cast %4 : vector<1x288x4xf32> to vector<288x4xf32>
    %c0_6 = arith.constant 0 : index
    %c18 = arith.constant 18 : index
    %c0_7 = arith.constant 0 : index
    %6 = vector.load %arg1[%c0_6, %c18, %c0_7] : memref<1x326x4xf32, #tpu.memory_space<vmem>>, vector<1x288x4xf32>
    %7 = vector.shape_cast %6 : vector<1x288x4xf32> to vector<288x4xf32>
    %c0_8 = arith.constant 0 : index
    %c19 = arith.constant 19 : index
    %c0_9 = arith.constant 0 : index
    %8 = vector.load %arg1[%c0_8, %c19, %c0_9] : memref<1x326x4xf32, #tpu.memory_space<vmem>>, vector<1x288x4xf32>
    %9 = vector.shape_cast %8 : vector<1x288x4xf32> to vector<288x4xf32>
    %c0_10 = arith.constant 0 : index
    %c20 = arith.constant 20 : index
    %c0_11 = arith.constant 0 : index
    %10 = vector.load %arg1[%c0_10, %c20, %c0_11] : memref<1x326x4xf32, #tpu.memory_space<vmem>>, vector<1x288x4xf32>
    %11 = vector.shape_cast %10 : vector<1x288x4xf32> to vector<288x4xf32>
    %c0_12 = arith.constant 0 : index
    %c36 = arith.constant 36 : index
    %c0_13 = arith.constant 0 : index
    %12 = vector.load %arg1[%c0_12, %c36, %c0_13] : memref<1x326x4xf32, #tpu.memory_space<vmem>>, vector<1x288x4xf32>
    %13 = vector.shape_cast %12 : vector<1x288x4xf32> to vector<288x4xf32>
    %c0_14 = arith.constant 0 : index
    %c37 = arith.constant 37 : index
    %c0_15 = arith.constant 0 : index
    %14 = vector.load %arg1[%c0_14, %c37, %c0_15] : memref<1x326x4xf32, #tpu.memory_space<vmem>>, vector<1x288x4xf32>
    %15 = vector.shape_cast %14 : vector<1x288x4xf32> to vector<288x4xf32>
    %c0_16 = arith.constant 0 : index
    %c38 = arith.constant 38 : index
    %c0_17 = arith.constant 0 : index
    %16 = vector.load %arg1[%c0_16, %c38, %c0_17] : memref<1x326x4xf32, #tpu.memory_space<vmem>>, vector<1x288x4xf32>
    %17 = vector.shape_cast %16 : vector<1x288x4xf32> to vector<288x4xf32>
    %18 = tpu.concatenate %1, %3, %5, %7, %9, %11, %13, %15, %17 in 1 : vector<288x4xf32>, vector<288x4xf32>, vector<288x4xf32>, vector<288x4xf32>, vector<288x4xf32>, vector<288x4xf32>, vector<288x4xf32>, vector<288x4xf32>, vector<288x4xf32> -> vector<288x36xf32>
    %c0_18 = arith.constant 0 : index
    %c0_19 = arith.constant 0 : index
    %19 = vector.load %arg3[%c0_18, %c0_19] : memref<36x8xf32, #tpu.memory_space<vmem>>, vector<36x8xf32>
    %cst = arith.constant dense<0.000000e+00> : vector<288x8xf32>
    %20 = tpu.matmul %18, %19, %cst {dimension_numbers = #tpu.dot_dimension_numbers<[1], [0], [0], [1], [0, 0, 1, 1], [], []>} : vector<288x36xf32>, vector<36x8xf32>, vector<288x8xf32> -> vector<288x8xf32>
    %c0_20 = arith.constant 0 : index
    %c0_21 = arith.constant 0 : index
    %21 = vector.load %arg4[%c0_20, %c0_21] : memref<1x8xf32, #tpu.memory_space<vmem>>, vector<1x8xf32>
    %22 = vector.broadcast %21 : vector<1x8xf32> to vector<288x8xf32>
    %23 = arith.addf %20, %22 : vector<288x8xf32>
    %cst_22 = arith.constant 0.000000e+00 : f32
    %24 = vector.broadcast %cst_22 : f32 to vector<288x8xf32>
    %25 = arith.maximumf %23, %24 : vector<288x8xf32>
    %c0_23 = arith.constant 0 : index
    %c0_24 = arith.constant 0 : index
    %26 = vector.load %arg2[%c0_23, %c0_24] : memref<288x1xf32, #tpu.memory_space<vmem>>, vector<288x1xf32>
    %27 = vector.broadcast %26 : vector<288x1xf32> to vector<288x8xf32>
    %28 = arith.mulf %25, %27 : vector<288x8xf32>
    %cst_25 = arith.constant 0.000000e+00 : f32
    %29 = vector.broadcast %cst_25 : f32 to vector<19x8xf32>
    %c0_26 = arith.constant 0 : index
    %c0_27 = arith.constant 0 : index
    %30 = vector.load %arg9[%c0_26, %c0_27] : memref<326x8xf32, #tpu.memory_space<vmem>>, vector<19x8xf32>
    tpu.vector_store %arg9[%c0_26, %c0_27], %29 {strides = array<i32>} : memref<326x8xf32, #tpu.memory_space<vmem>>, vector<19x8xf32>,
    %c307 = arith.constant 307 : index
    %c0_28 = arith.constant 0 : index
    %31 = vector.load %arg9[%c307, %c0_28] : memref<326x8xf32, #tpu.memory_space<vmem>>, vector<19x8xf32>
    tpu.vector_store %arg9[%c307, %c0_28], %29 {strides = array<i32>} : memref<326x8xf32, #tpu.memory_space<vmem>>, vector<19x8xf32>,
    %c19_29 = arith.constant 19 : index
    %c0_30 = arith.constant 0 : index
    %32 = vector.load %arg9[%c19_29, %c0_30] : memref<326x8xf32, #tpu.memory_space<vmem>>, vector<288x8xf32>
    tpu.vector_store %arg9[%c19_29, %c0_30], %28 {strides = array<i32>} : memref<326x8xf32, #tpu.memory_space<vmem>>, vector<288x8xf32>,
    %c0_31 = arith.constant 0 : index
    %c0_32 = arith.constant 0 : index
    %33 = vector.load %arg9[%c0_31, %c0_32] : memref<326x8xf32, #tpu.memory_space<vmem>>, vector<288x8xf32>
    %c1_33 = arith.constant 1 : index
    %c0_34 = arith.constant 0 : index
    %34 = vector.load %arg9[%c1_33, %c0_34] : memref<326x8xf32, #tpu.memory_space<vmem>>, vector<288x8xf32>
    %c2_35 = arith.constant 2 : index
    %c0_36 = arith.constant 0 : index
    %35 = vector.load %arg9[%c2_35, %c0_36] : memref<326x8xf32, #tpu.memory_space<vmem>>, vector<288x8xf32>
    %c18_37 = arith.constant 18 : index
    %c0_38 = arith.constant 0 : index
    %36 = vector.load %arg9[%c18_37, %c0_38] : memref<326x8xf32, #tpu.memory_space<vmem>>, vector<288x8xf32>
    %c19_39 = arith.constant 19 : index
    %c0_40 = arith.constant 0 : index
    %37 = vector.load %arg9[%c19_39, %c0_40] : memref<326x8xf32, #tpu.memory_space<vmem>>, vector<288x8xf32>
    %c20_41 = arith.constant 20 : index
    %c0_42 = arith.constant 0 : index
    %38 = vector.load %arg9[%c20_41, %c0_42] : memref<326x8xf32, #tpu.memory_space<vmem>>, vector<288x8xf32>
    %c36_43 = arith.constant 36 : index
    %c0_44 = arith.constant 0 : index
    %39 = vector.load %arg9[%c36_43, %c0_44] : memref<326x8xf32, #tpu.memory_space<vmem>>, vector<288x8xf32>
    %c37_45 = arith.constant 37 : index
    %c0_46 = arith.constant 0 : index
    %40 = vector.load %arg9[%c37_45, %c0_46] : memref<326x8xf32, #tpu.memory_space<vmem>>, vector<288x8xf32>
    %c38_47 = arith.constant 38 : index
    %c0_48 = arith.constant 0 : index
    %41 = vector.load %arg9[%c38_47, %c0_48] : memref<326x8xf32, #tpu.memory_space<vmem>>, vector<288x8xf32>
    %42 = tpu.concatenate %33, %34, %35, %36, %37, %38, %39, %40, %41 in 1 : vector<288x8xf32>, vector<288x8xf32>, vector<288x8xf32>, vector<288x8xf32>, vector<288x8xf32>, vector<288x8xf32>, vector<288x8xf32>, vector<288x8xf32>, vector<288x8xf32> -> vector<288x72xf32>
    %c0_49 = arith.constant 0 : index
    %c0_50 = arith.constant 0 : index
    %43 = vector.load %arg5[%c0_49, %c0_50] : memref<72x32xf32, #tpu.memory_space<vmem>>, vector<72x32xf32>
    %cst_51 = arith.constant dense<0.000000e+00> : vector<288x32xf32>
    %44 = tpu.matmul %42, %43, %cst_51 {dimension_numbers = #tpu.dot_dimension_numbers<[1], [0], [0], [1], [0, 0, 1, 1], [], []>} : vector<288x72xf32>, vector<72x32xf32>, vector<288x32xf32> -> vector<288x32xf32>
    %c0_52 = arith.constant 0 : index
    %c0_53 = arith.constant 0 : index
    %45 = vector.load %arg6[%c0_52, %c0_53] : memref<1x32xf32, #tpu.memory_space<vmem>>, vector<1x32xf32>
    %46 = vector.broadcast %45 : vector<1x32xf32> to vector<288x32xf32>
    %47 = arith.addf %44, %46 : vector<288x32xf32>
    %48 = vector.extract_strided_slice %47 {offsets = [0, 0], sizes = [288, 16], strides = [1, 1]} : vector<288x32xf32> to vector<288x16xf32>
    %49 = vector.extract_strided_slice %47 {offsets = [0, 16], sizes = [288, 16], strides = [1, 1]} : vector<288x32xf32> to vector<288x16xf32>
    %cst_54 = arith.constant dense<0xFF800000> : vector<288xf32>
    %50 = vector.multi_reduction <maximumf>, %48, %cst_54 [1] : vector<288x16xf32> to vector<288xf32>
    %51 = vector.shape_cast %50 : vector<288xf32> to vector<288x1xf32>
    %52 = vector.broadcast %51 : vector<288x1xf32> to vector<288x16xf32>
    %53 = arith.subf %48, %52 : vector<288x16xf32>
    %54 = math.exp %53 : vector<288x16xf32>
    %cst_55 = arith.constant dense<0.000000e+00> : vector<288xf32>
    %55 = vector.multi_reduction <add>, %54, %cst_55 [1] : vector<288x16xf32> to vector<288xf32>
    %56 = vector.shape_cast %55 : vector<288xf32> to vector<288x1xf32>
    %57 = vector.broadcast %56 : vector<288x1xf32> to vector<288x16xf32>
    %58 = arith.divf %54, %57 : vector<288x16xf32>
    %c0_56 = arith.constant 0 : index
    %c0_57 = arith.constant 0 : index
    %c0_58 = arith.constant 0 : index
    %59 = vector.load %arg7[%c0_56, %c0_57, %c0_58] : memref<1x288x16xf32, #tpu.memory_space<vmem>>, vector<1x288x16xf32>
    %60 = vector.shape_cast %59 : vector<1x288x16xf32> to vector<288x16xf32>
    %61 = vector.shape_cast %58 : vector<288x16xf32> to vector<1x288x16xf32>
    tpu.vector_store %arg7[%c0_56, %c0_57, %c0_58], %61 {strides = array<i32>} : memref<1x288x16xf32, #tpu.memory_space<vmem>>, vector<1x288x16xf32>,
    %cst_59 = arith.constant 0.000000e+00 : f32
    %62 = vector.broadcast %cst_59 : f32 to vector<288x16xf32>
    %63 = arith.cmpf oge, %49, %62 : vector<288x16xf32>
    %cst_60 = arith.constant 0.000000e+00 : f32
    %64 = vector.broadcast %cst_60 : f32 to vector<288x16xf32>
    %65 = arith.subf %64, %49 : vector<288x16xf32>
    %66 = arith.select %63, %65, %49 : vector<288x16xi1>, vector<288x16xf32>
    %67 = math.exp %66 : vector<288x16xf32>
    %cst_61 = arith.constant 1.000000e+00 : f32
    %68 = vector.broadcast %cst_61 : f32 to vector<288x16xf32>
    %69 = arith.addf %68, %67 : vector<288x16xf32>
    %cst_62 = arith.constant 1.000000e+00 : f32
    %70 = vector.broadcast %cst_62 : f32 to vector<288x16xf32>
    %71 = arith.divf %70, %69 : vector<288x16xf32>
    %cst_63 = arith.constant 1.000000e+00 : f32
    %72 = vector.broadcast %cst_63 : f32 to vector<288x16xf32>
    %73 = arith.addf %72, %67 : vector<288x16xf32>
    %74 = arith.divf %67, %73 : vector<288x16xf32>
    %75 = arith.select %63, %71, %74 : vector<288x16xi1>, vector<288x16xf32>
    %cst_64 = arith.constant dense<0.000000e+00> : vector<288xf32>
    %76 = vector.multi_reduction <add>, %75, %cst_64 [1] : vector<288x16xf32> to vector<288xf32>
    %77 = vector.shape_cast %76 : vector<288xf32> to vector<288x1xf32>
    %cst_65 = arith.constant 1.600000e+01 : f32
    %78 = vector.broadcast %cst_65 : f32 to vector<288x1xf32>
    %79 = arith.divf %77, %78 : vector<288x1xf32>
    %c0_66 = arith.constant 0 : index
    %c0_67 = arith.constant 0 : index
    %c0_68 = arith.constant 0 : index
    %80 = vector.load %arg8[%c0_66, %c0_67, %c0_68] : memref<1x288x1xf32, #tpu.memory_space<vmem>>, vector<1x288x1xf32>
    %81 = vector.shape_cast %80 : vector<1x288x1xf32> to vector<288x1xf32>
    %82 = vector.shape_cast %79 : vector<288x1xf32> to vector<1x288x1xf32>
    tpu.vector_store %arg8[%c0_66, %c0_67, %c0_68], %82 {strides = array<i32>} : memref<1x288x1xf32, #tpu.memory_space<vmem>>, vector<1x288x1xf32>,
    return
  }
  func.func @transform_0(%arg0: i32) -> (i32, i32, i32) {
    %c0_i32 = arith.constant 0 : i32
    %c0_i32_0 = arith.constant 0 : i32
    %c0_i32_1 = arith.constant 0 : i32
    return %arg0, %c0_i32, %c0_i32_0 : i32, i32, i32
  }
  func.func @transform_1(%arg0: i32) -> (i32, i32) {
    %c0_i32 = arith.constant 0 : i32
    %c0_i32_0 = arith.constant 0 : i32
    %c0_i32_1 = arith.constant 0 : i32
    return %c0_i32, %c0_i32_0 : i32, i32
  }
  func.func @transform_2(%arg0: i32) -> (i32, i32) {
    %c0_i32 = arith.constant 0 : i32
    %c0_i32_0 = arith.constant 0 : i32
    %c0_i32_1 = arith.constant 0 : i32
    return %c0_i32, %c0_i32_0 : i32, i32
  }
  func.func @transform_3(%arg0: i32) -> (i32, i32) {
    %c0_i32 = arith.constant 0 : i32
    %c0_i32_0 = arith.constant 0 : i32
    %c0_i32_1 = arith.constant 0 : i32
    return %c0_i32, %c0_i32_0 : i32, i32
  }
  func.func @transform_4(%arg0: i32) -> (i32, i32) {
    %c0_i32 = arith.constant 0 : i32
    %c0_i32_0 = arith.constant 0 : i32
    %c0_i32_1 = arith.constant 0 : i32
    return %c0_i32, %c0_i32_0 : i32, i32
  }
  func.func @transform_5(%arg0: i32) -> (i32, i32) {
    %c0_i32 = arith.constant 0 : i32
    %c0_i32_0 = arith.constant 0 : i32
    %c0_i32_1 = arith.constant 0 : i32
    return %c0_i32, %c0_i32_0 : i32, i32
  }
  func.func @transform_6(%arg0: i32) -> (i32, i32, i32) {
    %c0_i32 = arith.constant 0 : i32
    %c0_i32_0 = arith.constant 0 : i32
    %c0_i32_1 = arith.constant 0 : i32
    return %arg0, %c0_i32, %c0_i32_0 : i32, i32, i32
  }
  func.func @transform_7(%arg0: i32) -> (i32, i32, i32) {
    %c0_i32 = arith.constant 0 : i32
    %c0_i32_0 = arith.constant 0 : i32
    %c0_i32_1 = arith.constant 0 : i32
    return %arg0, %c0_i32, %c0_i32_0 : i32, i32, i32
  }
}

</mosaic_0001>

<llo_original>
// kernel: tpu_custom_call.1
$region0: #{tpu_custom_call.1}
  #allocation0 [shape = 'u32[]', space=smem, size = 0x4, offset = 0x4, fixed_abs, tag = 'smem constant byte address 0x4 - core index']
  #allocation1 [shape = 'u32[144,128]{1,0:T(1,128)}', space=vmem, size = 0x12000, scoped, tag = 'internal scratch']
  #allocation2 [shape = 'f32[326,8]{1,0:T(8,128)}', space=vmem, size = 0x29000, scoped, tag = 'scratch operand']
  %s0 = inlined_call_operand.vmem [shape: f32[2,326,4], index: 0, kind: input, shape index: {}]
  %s1 = inlined_call_operand.vmem [shape: f32[288,1], index: 1, kind: input, shape index: {}]
  %s2 = inlined_call_operand.vmem [shape: f32[36,8], index: 2, kind: input, shape index: {}]
  %s3 = inlined_call_operand.vmem [shape: f32[1,8], index: 3, kind: input, shape index: {}]
  %s4 = inlined_call_operand.vmem [shape: f32[72,32], index: 4, kind: input, shape index: {}]
  %s5 = inlined_call_operand.vmem [shape: f32[1,32], index: 5, kind: input, shape index: {}]
  %s6 = inlined_call_operand.vmem [shape: f32[2,288,16], index: 6, kind: output, shape index: {0}]
  %s7 = inlined_call_operand.vmem [shape: f32[2,288,1], index: 7, kind: output, shape index: {1}]
  %8 = xla_tuple %s6, %s7
  %s9 = sld [smem:[#allocation0]]
  $region65: #{tpu_custom_call.1} parent=0
    _
  %s11 = ssub.s32 1, %s9
  %s12 = scalar_select 0, %s11, %s9
  loop: start=0, step=1, limit=4
  $region2: #{tpu_custom_call.1} parent=0 // loop_pre_header
    _
  $region3: #{tpu_custom_call.1} parent=0 // loop_header
    %s14 = sphi 0, %s18
    %p15 = scmp.ge.s32.totalorder %s14, 4
    %s24 = sphi 0, %s26
    %s27 = sphi 0, %s24
    %s28 = sphi 0, %s27
    %s44 = sphi 0, %s28
    %s48 = sphi 0, %s48
    %s50 = sphi 0, %s48
    %s51 = sphi 0, %s50
    %s65 = sphi 0, %s51
    %s69 = sphi 0, %s69
    %s71 = sphi 0, %s69
    %s72 = sphi 0, %s71
    %s86 = sphi 0, %s72
    %s90 = sphi 0, %s90
    %s92 = sphi 0, %s90
    %s93 = sphi 0, %s92
    %s107 = sphi 0, %s93
    %s111 = sphi 0, %s111
    %s113 = sphi 0, %s111
    %s114 = sphi 0, %s113
    %s128 = sphi 0, %s114
    %s132 = sphi 0, %s132
    %s134 = sphi 0, %s132
    %s135 = sphi 0, %s134
    %s149 = sphi 0, %s135
    %s155 = sphi 0, %s157
    %s158 = sphi 0, %s155
    %s159 = sphi 0, %s158
    %s175 = sphi 0, %s159
    %s181 = sphi 0, %s183
    %s184 = sphi 0, %s181
    %s185 = sphi 0, %s184
    %s201 = sphi 0, %s185
  $region4: #{tpu_custom_call.1} parent=0 // loop_header_branch
    %17 = sbr.rel (%p15) target = $region8
  $region5: #{tpu_custom_call.1} parent=0 // loop_body
    %s19 = ssub.s32 %s14, 1
    %s20 = ssub.s32 %s14, 2
    %s21 = sadd.s32 %s14, 1
    %s22 = ssub.s32 %s14, %s21
    %p23 = scmp.eq.s32.totalorder %s22, 0
    %s25 = sadd.s32 %s24, 1
    %s26 = scalar_select %p23, %s24, %s25
    %p29 = pneg %p23
    %p30 = scmp.eq.s32.totalorder %s14, 1
    %p31 = por %p29, %p30
    %p32 = scmp.ne.s32.totalorder %s24, %s27
    %p33 = scmp.eq.s32.totalorder %s14, 0
    %p34 = por %p32, %p33
    %p35 = scmp.ne.s32.totalorder %s24, %s27
    %p36 = scmp.eq.s32.totalorder %s19, 1
    %p37 = por %p35, %p36
    %p38 = scmp.ne.s32.totalorder %s27, %s28
    %p39 = scmp.eq.s32.totalorder %s19, 0
    %p40 = por %p38, %p39
    %p41 = scmp.ne.s32.totalorder %s27, %s28
    %p42 = scmp.eq.s32.totalorder %s20, 1
    %p43 = por %p41, %p42
    %p45 = scmp.ne.s32.totalorder %s28, %s44
    %p46 = scmp.eq.s32.totalorder %s20, 0
    %p47 = por %p45, %p46
    %s49 = sadd.s32 %s48, 1
    %p52 = scmp.eq.s32.totalorder %s14, 1
    %p53 = scmp.ne.s32.totalorder %s48, %s50
    %p54 = scmp.eq.s32.totalorder %s14, 0
    %p55 = por %p53, %p54
    %p56 = scmp.ne.s32.totalorder %s48, %s50
    %p57 = scmp.eq.s32.totalorder %s19, 1
    %p58 = por %p56, %p57
    %p59 = scmp.ne.s32.totalorder %s50, %s51
    %p60 = scmp.eq.s32.totalorder %s19, 0
    %p61 = por %p59, %p60
    %p62 = scmp.ne.s32.totalorder %s50, %s51
    %p63 = scmp.eq.s32.totalorder %s20, 1
    %p64 = por %p62, %p63
    %p66 = scmp.ne.s32.totalorder %s51, %s65
    %p67 = scmp.eq.s32.totalorder %s20, 0
    %p68 = por %p66, %p67
    %s70 = sadd.s32 %s69, 1
    %p73 = scmp.eq.s32.totalorder %s14, 1
    %p74 = scmp.ne.s32.totalorder %s69, %s71
    %p75 = scmp.eq.s32.totalorder %s14, 0
    %p76 = por %p74, %p75
    %p77 = scmp.ne.s32.totalorder %s69, %s71
    %p78 = scmp.eq.s32.totalorder %s19, 1
    %p79 = por %p77, %p78
    %p80 = scmp.ne.s32.totalorder %s71, %s72
    %p81 = scmp.eq.s32.totalorder %s19, 0
    %p82 = por %p80, %p81
    %p83 = scmp.ne.s32.totalorder %s71, %s72
    %p84 = scmp.eq.s32.totalorder %s20, 1
    %p85 = por %p83, %p84
    %p87 = scmp.ne.s32.totalorder %s72, %s86
    %p88 = scmp.eq.s32.totalorder %s20, 0
    %p89 = por %p87, %p88
    %s91 = sadd.s32 %s90, 1
    %p94 = scmp.eq.s32.totalorder %s14, 1
    %p95 = scmp.ne.s32.totalorder %s90, %s92
    %p96 = scmp.eq.s32.totalorder %s14, 0
    %p97 = por %p95, %p96
    %p98 = scmp.ne.s32.totalorder %s90, %s92
    %p99 = scmp.eq.s32.totalorder %s19, 1
    %p100 = por %p98, %p99
    %p101 = scmp.ne.s32.totalorder %s92, %s93
    %p102 = scmp.eq.s32.totalorder %s19, 0
    %p103 = por %p101, %p102
    %p104 = scmp.ne.s32.totalorder %s92, %s93
    %p105 = scmp.eq.s32.totalorder %s20, 1
    %p106 = por %p104, %p105
    %p108 = scmp.ne.s32.totalorder %s93, %s107
    %p109 = scmp.eq.s32.totalorder %s20, 0
    %p110 = por %p108, %p109
    %s112 = sadd.s32 %s111, 1
    %p115 = scmp.eq.s32.totalorder %s14, 1
    %p116 = scmp.ne.s32.totalorder %s111, %s113
    %p117 = scmp.eq.s32.totalorder %s14, 0
    %p118 = por %p116, %p117
    %p119 = scmp.ne.s32.totalorder %s111, %s113
    %p120 = scmp.eq.s32.totalorder %s19, 1
    %p121 = por %p119, %p120
    %p122 = scmp.ne.s32.totalorder %s113, %s114
    %p123 = scmp.eq.s32.totalorder %s19, 0
    %p124 = por %p122, %p123
    %p125 = scmp.ne.s32.totalorder %s113, %s114
    %p126 = scmp.eq.s32.totalorder %s20, 1
    %p127 = por %p125, %p126
    %p129 = scmp.ne.s32.totalorder %s114, %s128
    %p130 = scmp.eq.s32.totalorder %s20, 0
    %p131 = por %p129, %p130
    %s133 = sadd.s32 %s132, 1
    %p136 = scmp.eq.s32.totalorder %s14, 1
    %p137 = scmp.ne.s32.totalorder %s132, %s134
    %p138 = scmp.eq.s32.totalorder %s14, 0
    %p139 = por %p137, %p138
    %p140 = scmp.ne.s32.totalorder %s132, %s134
    %p141 = scmp.eq.s32.totalorder %s19, 1
    %p142 = por %p140, %p141
    %p143 = scmp.ne.s32.totalorder %s134, %s135
    %p144 = scmp.eq.s32.totalorder %s19, 0
    %p145 = por %p143, %p144
    %p146 = scmp.ne.s32.totalorder %s134, %s135
    %p147 = scmp.eq.s32.totalorder %s20, 1
    %p148 = por %p146, %p147
    %p150 = scmp.ne.s32.totalorder %s135, %s149
    %p151 = scmp.eq.s32.totalorder %s20, 0
    %p152 = por %p150, %p151
    %s153 = ssub.s32 %s14, %s21
    %p154 = scmp.eq.s32.totalorder %s153, 0
    %s156 = sadd.s32 %s155, 1
    %s157 = scalar_select %p154, %s155, %s156
    %p160 = pneg %p154
    %p161 = scmp.eq.s32.totalorder %s14, 1
    %p162 = por %p160, %p161
    %p163 = scmp.ne.s32.totalorder %s155, %s158
    %p164 = scmp.eq.s32.totalorder %s14, 0
    %p165 = por %p163, %p164
    %p166 = scmp.ne.s32.totalorder %s155, %s158
    %p167 = scmp.eq.s32.totalorder %s19, 1
    %p168 = por %p166, %p167
    %p169 = scmp.ne.s32.totalorder %s158, %s159
    %p170 = scmp.eq.s32.totalorder %s19, 0
    %p171 = por %p169, %p170
    %p172 = scmp.ne.s32.totalorder %s158, %s159
    %p173 = scmp.eq.s32.totalorder %s20, 1
    %p174 = por %p172, %p173
    %p176 = scmp.ne.s32.totalorder %s159, %s175
    %p177 = scmp.eq.s32.totalorder %s20, 0
    %p178 = por %p176, %p177
    %s179 = ssub.s32 %s14, %s21
    %p180 = scmp.eq.s32.totalorder %s179, 0
    %s182 = sadd.s32 %s181, 1
    %s183 = scalar_select %p180, %s181, %s182
    %p186 = pneg %p180
    %p187 = scmp.eq.s32.totalorder %s14, 1
    %p188 = por %p186, %p187
    %p189 = scmp.ne.s32.totalorder %s181, %s184
    %p190 = scmp.eq.s32.totalorder %s14, 0
    %p191 = por %p189, %p190
    %p192 = scmp.ne.s32.totalorder %s181, %s184
    %p193 = scmp.eq.s32.totalorder %s19, 1
    %p194 = por %p192, %p193
    %p195 = scmp.ne.s32.totalorder %s184, %s185
    %p196 = scmp.eq.s32.totalorder %s19, 0
    %p197 = por %p195, %p196
    %p198 = scmp.ne.s32.totalorder %s184, %s185
    %p199 = scmp.eq.s32.totalorder %s20, 1
    %p200 = por %p198, %p199
    %p202 = scmp.ne.s32.totalorder %s185, %s201
    %p203 = scmp.eq.s32.totalorder %s20, 0
    %p204 = por %p202, %p203
    %p205 = scmp.le.s32.totalorder 1, %s14
    %p206 = scmp.lt.s32.totalorder %s14, 3
    %p207 = pnand %p205, %p206
    %p208 = pneg %p207
    // Predicated region
    $region9: #{tpu_custom_call.1} parent=5 // pred_check
      _
    $region10: #{tpu_custom_call.1} parent=5 // pred_check_branch
      %210 = sbr.rel (%p207) target = $region12
    $region11: #{tpu_custom_call.1} parent=5 // pred_region
      %s211 = ssub.s32 %s14, 1
      // Predicated region
      $region13: #{tpu_custom_call.1} parent=11 // pred_check
        %p212 = pneg %p61
      $region14: #{tpu_custom_call.1} parent=11 // pred_check_branch
        %214 = sbr.rel (%p212) target = $region16
      $region15: #{tpu_custom_call.1} parent=11 // pred_region
        _
      $region16: #{tpu_custom_call.1} parent=11 // pred_fallthru
        _
      // Predicated region
      $region17: #{tpu_custom_call.1} parent=11 // pred_check
        %p215 = pneg %p82
      $region18: #{tpu_custom_call.1} parent=11 // pred_check_branch
        %217 = sbr.rel (%p215) target = $region20
      $region19: #{tpu_custom_call.1} parent=11 // pred_region
        _
      $region20: #{tpu_custom_call.1} parent=11 // pred_fallthru
        _
      // Predicated region
      $region21: #{tpu_custom_call.1} parent=11 // pred_check
        %p218 = pneg %p103
      $region22: #{tpu_custom_call.1} parent=11 // pred_check_branch
        %220 = sbr.rel (%p218) target = $region24
      $region23: #{tpu_custom_call.1} parent=11 // pred_region
        _
      $region24: #{tpu_custom_call.1} parent=11 // pred_fallthru
        _
      // Predicated region
      $region25: #{tpu_custom_call.1} parent=11 // pred_check
        %p221 = pneg %p124
      $region26: #{tpu_custom_call.1} parent=11 // pred_check_branch
        %223 = sbr.rel (%p221) target = $region28
      $region27: #{tpu_custom_call.1} parent=11 // pred_region
        _
      $region28: #{tpu_custom_call.1} parent=11 // pred_fallthru
        _
      // Predicated region
      $region29: #{tpu_custom_call.1} parent=11 // pred_check
        %p224 = pneg %p145
      $region30: #{tpu_custom_call.1} parent=11 // pred_check_branch
        %226 = sbr.rel (%p224) target = $region32
      $region31: #{tpu_custom_call.1} parent=11 // pred_region
        _
      $region32: #{tpu_custom_call.1} parent=11 // pred_fallthru
        _
    $region12: #{tpu_custom_call.1} parent=5 // pred_fallthru
      _
    %p227 = scmp.lt.s32.totalorder %s14, 2
    // Predicated region
    $region33: #{tpu_custom_call.1} parent=5 // pred_check
      %p228 = pneg %p227
    $region34: #{tpu_custom_call.1} parent=5 // pred_check_branch
      %230 = sbr.rel (%p228) target = $region36
    $region35: #{tpu_custom_call.1} parent=5 // pred_region
      // Predicated region
      $region37: #{tpu_custom_call.1} parent=35 // pred_check
        %p231 = pneg %p34
      $region38: #{tpu_custom_call.1} parent=35 // pred_check_branch
        %233 = sbr.rel (%p231) target = $region40
      $region39: #{tpu_custom_call.1} parent=35 // pred_region
        %p234 = scmp.lt.s32.totalorder %s14, 1
        %s235 = scalar_select %p234, %s14, 1
        %s236 = smul.addr %s235, 41
        %s237 = smul.addr %s236, 8
        %s238 = scalar_lea.vmem %s0, %s237
      $region40: #{tpu_custom_call.1} parent=35 // pred_fallthru
        _
    $region36: #{tpu_custom_call.1} parent=5 // pred_fallthru
      _
    %p239 = scmp.le.s32.totalorder 1, %s14
    %p240 = scmp.lt.s32.totalorder %s14, 3
    %p241 = pnand %p239, %p240
    %p242 = pneg %p241
    // Predicated region
    $region41: #{tpu_custom_call.1} parent=5 // pred_check
      _
    $region42: #{tpu_custom_call.1} parent=5 // pred_check_branch
      %244 = sbr.rel (%p241) target = $region44
    $region43: #{tpu_custom_call.1} parent=5 // pred_region
      %s245 = ssub.s32 %s14, 1
      %p246 = scmp.lt.s32.totalorder %s19, 1
      %s247 = scalar_select %p246, %s19, 1
      %s248 = smul.addr %s247, 41
      %s249 = smul.addr %s248, 8
      %s250 = scalar_lea.vmem %s0, %s249
      %p251 = pneg %p40
      %p252 = pneg %p37
      %p253 = pneg %p61
      %p254 = pneg %p58
      %p255 = pneg %p82
      %p256 = pneg %p79
      %p257 = pneg %p103
      %p258 = pneg %p100
      %p259 = pneg %p124
      %p260 = pneg %p121
      %p261 = pneg %p145
      %p262 = pneg %p142
      %p263 = pneg %p171
      %p264 = pneg %p168
      %p265 = scmp.lt.s32.totalorder %s19, 1
      %s266 = scalar_select %p265, %s19, 1
      %s267 = smul.addr %s266, 36
      %s268 = smul.addr %s267, 8
      %s269 = scalar_lea.vmem %s6, %s268
      %p270 = pneg %p197
      %p271 = pneg %p194
      %p272 = scmp.lt.s32.totalorder %s19, 1
      %s273 = scalar_select %p272, %s19, 1
      %s274 = smul.addr %s273, 36
      %s275 = smul.addr %s274, 8
      %s276 = scalar_lea.vmem %s7, %s275
      %p277 = scmp.lt.s32.totalorder %s19, 1
      %s278 = scalar_select %p277, %s19, 1
      %s279 = smul.addr %s278, 41
      %s280 = smul.addr %s279, 8
      %s281 = scalar_lea.vmem %s0, %s280
      %p282 = scmp.lt.s32.totalorder %s19, 1
      %s283 = scalar_select %p282, %s19, 1
      %s284 = smul.addr %s283, 36
      %s285 = smul.addr %s284, 8
      %s286 = scalar_lea.vmem %s6, %s285
      %p287 = scmp.lt.s32.totalorder %s19, 1
      %s288 = scalar_select %p287, %s19, 1
      %s289 = smul.addr %s288, 36
      %s290 = smul.addr %s289, 8
      %s291 = scalar_lea.vmem %s7, %s290
      %v292 = vld [vmem:[%s281] sm:$0xff]
      %v293 = vld [vmem:[%s281 + $0x8] sm:$0xff]
      %v294 = vld [vmem:[%s281 + $0x10] sm:$0xff]
      %v295 = vld [vmem:[%s281 + $0x18] sm:$0xff]
      %v296 = vld [vmem:[%s281 + $0x20] sm:$0xff]
      %v297 = vld [vmem:[%s281 + $0x28] sm:$0xff]
      %v298 = vld [vmem:[%s281 + $0x30] sm:$0xff]
      %v299 = vld [vmem:[%s281 + $0x38] sm:$0xff]
      %v300 = vld [vmem:[%s281 + $0x40] sm:$0xff]
      %v301 = vld [vmem:[%s281 + $0x48] sm:$0xff]
      %v302 = vld [vmem:[%s281 + $0x50] sm:$0xff]
      %v303 = vld [vmem:[%s281 + $0x58] sm:$0xff]
      %v304 = vld [vmem:[%s281 + $0x60] sm:$0xff]
      %v305 = vld [vmem:[%s281 + $0x68] sm:$0xff]
      %v306 = vld [vmem:[%s281 + $0x70] sm:$0xff]
      %v307 = vld [vmem:[%s281 + $0x78] sm:$0xff]
      %v308 = vld [vmem:[%s281 + $0x80] sm:$0xff]
      %v309 = vld [vmem:[%s281 + $0x88] sm:$0xff]
      %v310 = vld [vmem:[%s281 + $0x90] sm:$0xff]
      %v311 = vld [vmem:[%s281 + $0x98] sm:$0xff]
      %v312 = vld [vmem:[%s281 + $0xa0] sm:$0xff]
      %v313 = vld [vmem:[%s281 + $0xa8] sm:$0xff]
      %v314 = vld [vmem:[%s281 + $0xb0] sm:$0xff]
      %v315 = vld [vmem:[%s281 + $0xb8] sm:$0xff]
      %v316 = vld [vmem:[%s281 + $0xc0] sm:$0xff]
      %v317 = vld [vmem:[%s281 + $0xc8] sm:$0xff]
      %v318 = vld [vmem:[%s281 + $0xd0] sm:$0xff]
      %v319 = vld [vmem:[%s281 + $0xd8] sm:$0xff]
      %v320 = vld [vmem:[%s281 + $0xe0] sm:$0xff]
      %v321 = vld [vmem:[%s281 + $0xe8] sm:$0xff]
      %v322 = vld [vmem:[%s281 + $0xf0] sm:$0xff]
      %v323 = vld [vmem:[%s281 + $0xf8] sm:$0xff]
      %v324 = vld [vmem:[%s281 + $0x100] sm:$0xff]
      %v325 = vld [vmem:[%s281 + $0x108] sm:$0xff]
      %v326 = vld [vmem:[%s281 + $0x110] sm:$0xff]
      %v327 = vld [vmem:[%s281 + $0x118] sm:$0xff]
      %v328 = vld [vmem:[%s281 + $0x1] sm:$0xff]
      %v329 = vld [vmem:[%s281 + $0x9] sm:$0xff]
      %v330 = vld [vmem:[%s281 + $0x11] sm:$0xff]
      %v331 = vld [vmem:[%s281 + $0x19] sm:$0xff]
      %v332 = vld [vmem:[%s281 + $0x21] sm:$0xff]
      %v333 = vld [vmem:[%s281 + $0x29] sm:$0xff]
      %v334 = vld [vmem:[%s281 + $0x31] sm:$0xff]
      %v335 = vld [vmem:[%s281 + $0x39] sm:$0xff]
      %v336 = vld [vmem:[%s281 + $0x41] sm:$0xff]
      %v337 = vld [vmem:[%s281 + $0x49] sm:$0xff]
      %v338 = vld [vmem:[%s281 + $0x51] sm:$0xff]
      %v339 = vld [vmem:[%s281 + $0x59] sm:$0xff]
      %v340 = vld [vmem:[%s281 + $0x61] sm:$0xff]
      %v341 = vld [vmem:[%s281 + $0x69] sm:$0xff]
      %v342 = vld [vmem:[%s281 + $0x71] sm:$0xff]
      %v343 = vld [vmem:[%s281 + $0x79] sm:$0xff]
      %v344 = vld [vmem:[%s281 + $0x81] sm:$0xff]
      %v345 = vld [vmem:[%s281 + $0x89] sm:$0xff]
      %v346 = vld [vmem:[%s281 + $0x91] sm:$0xff]
      %v347 = vld [vmem:[%s281 + $0x99] sm:$0xff]
      %v348 = vld [vmem:[%s281 + $0xa1] sm:$0xff]
      %v349 = vld [vmem:[%s281 + $0xa9] sm:$0xff]
      %v350 = vld [vmem:[%s281 + $0xb1] sm:$0xff]
      %v351 = vld [vmem:[%s281 + $0xb9] sm:$0xff]
      %v352 = vld [vmem:[%s281 + $0xc1] sm:$0xff]
      %v353 = vld [vmem:[%s281 + $0xc9] sm:$0xff]
      %v354 = vld [vmem:[%s281 + $0xd1] sm:$0xff]
      %v355 = vld [vmem:[%s281 + $0xd9] sm:$0xff]
      %v356 = vld [vmem:[%s281 + $0xe1] sm:$0xff]
      %v357 = vld [vmem:[%s281 + $0xe9] sm:$0xff]
      %v358 = vld [vmem:[%s281 + $0xf1] sm:$0xff]
      %v359 = vld [vmem:[%s281 + $0xf9] sm:$0xff]
      %v360 = vld [vmem:[%s281 + $0x101] sm:$0xff]
      %v361 = vld [vmem:[%s281 + $0x109] sm:$0xff]
      %v362 = vld [vmem:[%s281 + $0x111] sm:$0xff]
      %v363 = vld [vmem:[%s281 + $0x119] sm:$0xff]
      %v364 = vld [vmem:[%s281 + $0x2] sm:$0xff]
      %v365 = vld [vmem:[%s281 + $0xa] sm:$0xff]
      %v366 = vld [vmem:[%s281 + $0x12] sm:$0xff]
      %v367 = vld [vmem:[%s281 + $0x1a] sm:$0xff]
      %v368 = vld [vmem:[%s281 + $0x22] sm:$0xff]
      %v369 = vld [vmem:[%s281 + $0x2a] sm:$0xff]
      %v370 = vld [vmem:[%s281 + $0x32] sm:$0xff]
      %v371 = vld [vmem:[%s281 + $0x3a] sm:$0xff]
      %v372 = vld [vmem:[%s281 + $0x42] sm:$0xff]
      %v373 = vld [vmem:[%s281 + $0x4a] sm:$0xff]
      %v374 = vld [vmem:[%s281 + $0x52] sm:$0xff]
      %v375 = vld [vmem:[%s281 + $0x5a] sm:$0xff]
      %v376 = vld [vmem:[%s281 + $0x62] sm:$0xff]
      %v377 = vld [vmem:[%s281 + $0x6a] sm:$0xff]
      %v378 = vld [vmem:[%s281 + $0x72] sm:$0xff]
      %v379 = vld [vmem:[%s281 + $0x7a] sm:$0xff]
      %v380 = vld [vmem:[%s281 + $0x82] sm:$0xff]
      %v381 = vld [vmem:[%s281 + $0x8a] sm:$0xff]
      %v382 = vld [vmem:[%s281 + $0x92] sm:$0xff]
      %v383 = vld [vmem:[%s281 + $0x9a] sm:$0xff]
      %v384 = vld [vmem:[%s281 + $0xa2] sm:$0xff]
      %v385 = vld [vmem:[%s281 + $0xaa] sm:$0xff]
      %v386 = vld [vmem:[%s281 + $0xb2] sm:$0xff]
      %v387 = vld [vmem:[%s281 + $0xba] sm:$0xff]
      %v388 = vld [vmem:[%s281 + $0xc2] sm:$0xff]
      %v389 = vld [vmem:[%s281 + $0xca] sm:$0xff]
      %v390 = vld [vmem:[%s281 + $0xd2] sm:$0xff]
      %v391 = vld [vmem:[%s281 + $0xda] sm:$0xff]
      %v392 = vld [vmem:[%s281 + $0xe2] sm:$0xff]
      %v393 = vld [vmem:[%s281 + $0xea] sm:$0xff]
      %v394 = vld [vmem:[%s281 + $0xf2] sm:$0xff]
      %v395 = vld [vmem:[%s281 + $0xfa] sm:$0xff]
      %v396 = vld [vmem:[%s281 + $0x102] sm:$0xff]
      %v397 = vld [vmem:[%s281 + $0x10a] sm:$0xff]
      %v398 = vld [vmem:[%s281 + $0x112] sm:$0xff]
      %v399 = vld [vmem:[%s281 + $0x11a] sm:$0xff]
      %v400 = vld [vmem:[%s281 + $0x122] sm:$0xff]
      %v401 = vld [vmem:[%s281 + $0x12a] sm:$0xff]
      %v402 = vld [vmem:[%s281 + $0x13] sm:$0xff]
      %v403 = vld [vmem:[%s281 + $0x1b] sm:$0xff]
      %v404 = vld [vmem:[%s281 + $0x23] sm:$0xff]
      %v405 = vld [vmem:[%s281 + $0x2b] sm:$0xff]
      %v406 = vld [vmem:[%s281 + $0x33] sm:$0xff]
      %v407 = vld [vmem:[%s281 + $0x3b] sm:$0xff]
      %v408 = vld [vmem:[%s281 + $0x43] sm:$0xff]
      %v409 = vld [vmem:[%s281 + $0x4b] sm:$0xff]
      %v410 = vld [vmem:[%s281 + $0x53] sm:$0xff]
      %v411 = vld [vmem:[%s281 + $0x5b] sm:$0xff]
      %v412 = vld [vmem:[%s281 + $0x63] sm:$0xff]
      %v413 = vld [vmem:[%s281 + $0x6b] sm:$0xff]
      %v414 = vld [vmem:[%s281 + $0x73] sm:$0xff]
      %v415 = vld [vmem:[%s281 + $0x7b] sm:$0xff]
      %v416 = vld [vmem:[%s281 + $0x83] sm:$0xff]
      %v417 = vld [vmem:[%s281 + $0x8b] sm:$0xff]
      %v418 = vld [vmem:[%s281 + $0x93] sm:$0xff]
      %v419 = vld [vmem:[%s281 + $0x9b] sm:$0xff]
      %v420 = vld [vmem:[%s281 + $0xa3] sm:$0xff]
      %v421 = vld [vmem:[%s281 + $0xab] sm:$0xff]
      %v422 = vld [vmem:[%s281 + $0xb3] sm:$0xff]
      %v423 = vld [vmem:[%s281 + $0xbb] sm:$0xff]
      %v424 = vld [vmem:[%s281 + $0xc3] sm:$0xff]
      %v425 = vld [vmem:[%s281 + $0xcb] sm:$0xff]
      %v426 = vld [vmem:[%s281 + $0xd3] sm:$0xff]
      %v427 = vld [vmem:[%s281 + $0xdb] sm:$0xff]
      %v428 = vld [vmem:[%s281 + $0xe3] sm:$0xff]
      %v429 = vld [vmem:[%s281 + $0xeb] sm:$0xff]
      %v430 = vld [vmem:[%s281 + $0xf3] sm:$0xff]
      %v431 = vld [vmem:[%s281 + $0xfb] sm:$0xff]
      %v432 = vld [vmem:[%s281 + $0x103] sm:$0xff]
      %v433 = vld [vmem:[%s281 + $0x10b] sm:$0xff]
      %v434 = vld [vmem:[%s281 + $0x113] sm:$0xff]
      %v435 = vld [vmem:[%s281 + $0x11b] sm:$0xff]
      %v436 = vld [vmem:[%s281 + $0x123] sm:$0xff]
      %v437 = vld [vmem:[%s281 + $0x12b] sm:$0xff]
      %v438 = vld [vmem:[%s281 + $0x14] sm:$0xff]
      %v439 = vld [vmem:[%s281 + $0x1c] sm:$0xff]
      %v440 = vld [vmem:[%s281 + $0x24] sm:$0xff]
      %v441 = vld [vmem:[%s281 + $0x2c] sm:$0xff]
      %v442 = vld [vmem:[%s281 + $0x34] sm:$0xff]
      %v443 = vld [vmem:[%s281 + $0x3c] sm:$0xff]
      %v444 = vld [vmem:[%s281 + $0x44] sm:$0xff]
      %v445 = vld [vmem:[%s281 + $0x4c] sm:$0xff]
      %v446 = vld [vmem:[%s281 + $0x54] sm:$0xff]
      %v447 = vld [vmem:[%s281 + $0x5c] sm:$0xff]
      %v448 = vld [vmem:[%s281 + $0x64] sm:$0xff]
      %v449 = vld [vmem:[%s281 + $0x6c] sm:$0xff]
      %v450 = vld [vmem:[%s281 + $0x74] sm:$0xff]
      %v451 = vld [vmem:[%s281 + $0x7c] sm:$0xff]
      %v452 = vld [vmem:[%s281 + $0x84] sm:$0xff]
      %v453 = vld [vmem:[%s281 + $0x8c] sm:$0xff]
      %v454 = vld [vmem:[%s281 + $0x94] sm:$0xff]
      %v455 = vld [vmem:[%s281 + $0x9c] sm:$0xff]
      %v456 = vld [vmem:[%s281 + $0xa4] sm:$0xff]
      %v457 = vld [vmem:[%s281 + $0xac] sm:$0xff]
      %v458 = vld [vmem:[%s281 + $0xb4] sm:$0xff]
      %v459 = vld [vmem:[%s281 + $0xbc] sm:$0xff]
      %v460 = vld [vmem:[%s281 + $0xc4] sm:$0xff]
      %v461 = vld [vmem:[%s281 + $0xcc] sm:$0xff]
      %v462 = vld [vmem:[%s281 + $0xd4] sm:$0xff]
      %v463 = vld [vmem:[%s281 + $0xdc] sm:$0xff]
      %v464 = vld [vmem:[%s281 + $0xe4] sm:$0xff]
      %v465 = vld [vmem:[%s281 + $0xec] sm:$0xff]
      %v466 = vld [vmem:[%s281 + $0xf4] sm:$0xff]
      %v467 = vld [vmem:[%s281 + $0xfc] sm:$0xff]
      %v468 = vld [vmem:[%s281 + $0x104] sm:$0xff]
      %v469 = vld [vmem:[%s281 + $0x10c] sm:$0xff]
      %v470 = vld [vmem:[%s281 + $0x114] sm:$0xff]
      %v471 = vld [vmem:[%s281 + $0x11c] sm:$0xff]
      %v472 = vld [vmem:[%s281 + $0x124] sm:$0xff]
      %v473 = vld [vmem:[%s281 + $0x12c] sm:$0xff]
      %v474 = vld [vmem:[%s281 + $0x134] sm:$0xff]
      %v475 = vld [vmem:[%s281 + $0x13c] sm:$0xff]
      %v476 = vld [vmem:[%s281 + $0x25] sm:$0xff]
      %v477 = vld [vmem:[%s281 + $0x2d] sm:$0xff]
      %v478 = vld [vmem:[%s281 + $0x35] sm:$0xff]
      %v479 = vld [vmem:[%s281 + $0x3d] sm:$0xff]
      %v480 = vld [vmem:[%s281 + $0x45] sm:$0xff]
      %v481 = vld [vmem:[%s281 + $0x4d] sm:$0xff]
      %v482 = vld [vmem:[%s281 + $0x55] sm:$0xff]
      %v483 = vld [vmem:[%s281 + $0x5d] sm:$0xff]
      %v484 = vld [vmem:[%s281 + $0x65] sm:$0xff]
      %v485 = vld [vmem:[%s281 + $0x6d] sm:$0xff]
      %v486 = vld [vmem:[%s281 + $0x75] sm:$0xff]
      %v487 = vld [vmem:[%s281 + $0x7d] sm:$0xff]
      %v488 = vld [vmem:[%s281 + $0x85] sm:$0xff]
      %v489 = vld [vmem:[%s281 + $0x8d] sm:$0xff]
      %v490 = vld [vmem:[%s281 + $0x95] sm:$0xff]
      %v491 = vld [vmem:[%s281 + $0x9d] sm:$0xff]
      %v492 = vld [vmem:[%s281 + $0xa5] sm:$0xff]
      %v493 = vld [vmem:[%s281 + $0xad] sm:$0xff]
      %v494 = vld [vmem:[%s281 + $0xb5] sm:$0xff]
      %v495 = vld [vmem:[%s281 + $0xbd] sm:$0xff]
      %v496 = vld [vmem:[%s281 + $0xc5] sm:$0xff]
      %v497 = vld [vmem:[%s281 + $0xcd] sm:$0xff]
      %v498 = vld [vmem:[%s281 + $0xd5] sm:$0xff]
      %v499 = vld [vmem:[%s281 + $0xdd] sm:$0xff]
      %v500 = vld [vmem:[%s281 + $0xe5] sm:$0xff]
      %v501 = vld [vmem:[%s281 + $0xed] sm:$0xff]
      %v502 = vld [vmem:[%s281 + $0xf5] sm:$0xff]
      %v503 = vld [vmem:[%s281 + $0xfd] sm:$0xff]
      %v504 = vld [vmem:[%s281 + $0x105] sm:$0xff]
      %v505 = vld [vmem:[%s281 + $0x10d] sm:$0xff]
      %v506 = vld [vmem:[%s281 + $0x115] sm:$0xff]
      %v507 = vld [vmem:[%s281 + $0x11d] sm:$0xff]
      %v508 = vld [vmem:[%s281 + $0x125] sm:$0xff]
      %v509 = vld [vmem:[%s281 + $0x12d] sm:$0xff]
      %v510 = vld [vmem:[%s281 + $0x135] sm:$0xff]
      %v511 = vld [vmem:[%s281 + $0x13d] sm:$0xff]
      %v512 = vld [vmem:[%s281 + $0x26] sm:$0xff]
      %v513 = vld [vmem:[%s281 + $0x2e] sm:$0xff]
      %v514 = vld [vmem:[%s281 + $0x36] sm:$0xff]
      %v515 = vld [vmem:[%s281 + $0x3e] sm:$0xff]
      %v516 = vld [vmem:[%s281 + $0x46] sm:$0xff]
      %v517 = vld [vmem:[%s281 + $0x4e] sm:$0xff]
      %v518 = vld [vmem:[%s281 + $0x56] sm:$0xff]
      %v519 = vld [vmem:[%s281 + $0x5e] sm:$0xff]
      %v520 = vld [vmem:[%s281 + $0x66] sm:$0xff]
      %v521 = vld [vmem:[%s281 + $0x6e] sm:$0xff]
      %v522 = vld [vmem:[%s281 + $0x76] sm:$0xff]
      %v523 = vld [vmem:[%s281 + $0x7e] sm:$0xff]
      %v524 = vld [vmem:[%s281 + $0x86] sm:$0xff]
      %v525 = vld [vmem:[%s281 + $0x8e] sm:$0xff]
      %v526 = vld [vmem:[%s281 + $0x96] sm:$0xff]
      %v527 = vld [vmem:[%s281 + $0x9e] sm:$0xff]
      %v528 = vld [vmem:[%s281 + $0xa6] sm:$0xff]
      %v529 = vld [vmem:[%s281 + $0xae] sm:$0xff]
      %v530 = vld [vmem:[%s281 + $0xb6] sm:$0xff]
      %v531 = vld [vmem:[%s281 + $0xbe] sm:$0xff]
      %v532 = vld [vmem:[%s281 + $0xc6] sm:$0xff]
      %v533 = vld [vmem:[%s281 + $0xce] sm:$0xff]
      %v534 = vld [vmem:[%s281 + $0xd6] sm:$0xff]
      %v535 = vld [vmem:[%s281 + $0xde] sm:$0xff]
      %v536 = vld [vmem:[%s281 + $0xe6] sm:$0xff]
      %v537 = vld [vmem:[%s281 + $0xee] sm:$0xff]
      %v538 = vld [vmem:[%s281 + $0xf6] sm:$0xff]
      %v539 = vld [vmem:[%s281 + $0xfe] sm:$0xff]
      %v540 = vld [vmem:[%s281 + $0x106] sm:$0xff]
      %v541 = vld [vmem:[%s281 + $0x10e] sm:$0xff]
      %v542 = vld [vmem:[%s281 + $0x116] sm:$0xff]
      %v543 = vld [vmem:[%s281 + $0x11e] sm:$0xff]
      %v544 = vld [vmem:[%s281 + $0x126] sm:$0xff]
      %v545 = vld [vmem:[%s281 + $0x12e] sm:$0xff]
      %v546 = vld [vmem:[%s281 + $0x136] sm:$0xff]
      %v547 = vld [vmem:[%s281 + $0x13e] sm:$0xff]
      %584 = vrot.lane.b32.xlu0 %v328, 4
      %v585 = vpop.permute.xlu0 %584
      %586 = vrot.lane.b32.xlu0 %v329, 4
      %v587 = vpop.permute.xlu0 %586
      %588 = vrot.lane.b32.xlu0 %v330, 4
      %v589 = vpop.permute.xlu0 %588
      %590 = vrot.lane.b32.xlu0 %v331, 4
      %v591 = vpop.permute.xlu0 %590
      %592 = vrot.lane.b32.xlu0 %v332, 4
      %v593 = vpop.permute.xlu0 %592
      %594 = vrot.lane.b32.xlu0 %v333, 4
      %v595 = vpop.permute.xlu0 %594
      %596 = vrot.lane.b32.xlu0 %v334, 4
      %v597 = vpop.permute.xlu0 %596
      %598 = vrot.lane.b32.xlu0 %v335, 4
      %v599 = vpop.permute.xlu0 %598
      %600 = vrot.lane.b32.xlu0 %v336, 4
      %v601 = vpop.permute.xlu0 %600
      %602 = vrot.lane.b32.xlu0 %v337, 4
      %v603 = vpop.permute.xlu0 %602
      %604 = vrot.lane.b32.xlu0 %v338, 4
      %v605 = vpop.permute.xlu0 %604
      %606 = vrot.lane.b32.xlu0 %v339, 4
      %v607 = vpop.permute.xlu0 %606
      %608 = vrot.lane.b32.xlu0 %v340, 4
      %v609 = vpop.permute.xlu0 %608
      %610 = vrot.lane.b32.xlu0 %v341, 4
      %v611 = vpop.permute.xlu0 %610
      %612 = vrot.lane.b32.xlu0 %v342, 4
      %v613 = vpop.permute.xlu0 %612
      %614 = vrot.lane.b32.xlu0 %v343, 4
      %v615 = vpop.permute.xlu0 %614
      %616 = vrot.lane.b32.xlu0 %v344, 4
      %v617 = vpop.permute.xlu0 %616
      %618 = vrot.lane.b32.xlu0 %v345, 4
      %v619 = vpop.permute.xlu0 %618
      %620 = vrot.lane.b32.xlu0 %v346, 4
      %v621 = vpop.permute.xlu0 %620
      %622 = vrot.lane.b32.xlu0 %v347, 4
      %v623 = vpop.permute.xlu0 %622
      %624 = vrot.lane.b32.xlu0 %v348, 4
      %v625 = vpop.permute.xlu0 %624
      %626 = vrot.lane.b32.xlu0 %v349, 4
      %v627 = vpop.permute.xlu0 %626
      %628 = vrot.lane.b32.xlu0 %v350, 4
      %v629 = vpop.permute.xlu0 %628
      %630 = vrot.lane.b32.xlu0 %v351, 4
      %v631 = vpop.permute.xlu0 %630
      %632 = vrot.lane.b32.xlu0 %v352, 4
      %v633 = vpop.permute.xlu0 %632
      %634 = vrot.lane.b32.xlu0 %v353, 4
      %v635 = vpop.permute.xlu0 %634
      %636 = vrot.lane.b32.xlu0 %v354, 4
      %v637 = vpop.permute.xlu0 %636
      %638 = vrot.lane.b32.xlu0 %v355, 4
      %v639 = vpop.permute.xlu0 %638
      %640 = vrot.lane.b32.xlu0 %v356, 4
      %v641 = vpop.permute.xlu0 %640
      %642 = vrot.lane.b32.xlu0 %v357, 4
      %v643 = vpop.permute.xlu0 %642
      %644 = vrot.lane.b32.xlu0 %v358, 4
      %v645 = vpop.permute.xlu0 %644
      %646 = vrot.lane.b32.xlu0 %v359, 4
      %v647 = vpop.permute.xlu0 %646
      %648 = vrot.lane.b32.xlu0 %v360, 4
      %v649 = vpop.permute.xlu0 %648
      %650 = vrot.lane.b32.xlu0 %v361, 4
      %v651 = vpop.permute.xlu0 %650
      %652 = vrot.lane.b32.xlu0 %v362, 4
      %v653 = vpop.permute.xlu0 %652
      %654 = vrot.lane.b32.xlu0 %v363, 4
      %v655 = vpop.permute.xlu0 %654
      %728 = vrot.lane.b32.xlu0 %v364, 8
      %v729 = vpop.permute.xlu0 %728
      %730 = vrot.lane.b32.xlu0 %v365, 8
      %v731 = vpop.permute.xlu0 %730
      %732 = vrot.lane.b32.xlu0 %v366, 8
      %v733 = vpop.permute.xlu0 %732
      %734 = vrot.lane.b32.xlu0 %v367, 8
      %v735 = vpop.permute.xlu0 %734
      %736 = vrot.lane.b32.xlu0 %v368, 8
      %v737 = vpop.permute.xlu0 %736
      %738 = vrot.lane.b32.xlu0 %v369, 8
      %v739 = vpop.permute.xlu0 %738
      %740 = vrot.lane.b32.xlu0 %v370, 8
      %v741 = vpop.permute.xlu0 %740
      %742 = vrot.lane.b32.xlu0 %v371, 8
      %v743 = vpop.permute.xlu0 %742
      %744 = vrot.lane.b32.xlu0 %v372, 8
      %v745 = vpop.permute.xlu0 %744
      %746 = vrot.lane.b32.xlu0 %v373, 8
      %v747 = vpop.permute.xlu0 %746
      %748 = vrot.lane.b32.xlu0 %v374, 8
      %v749 = vpop.permute.xlu0 %748
      %750 = vrot.lane.b32.xlu0 %v375, 8
      %v751 = vpop.permute.xlu0 %750
      %752 = vrot.lane.b32.xlu0 %v376, 8
      %v753 = vpop.permute.xlu0 %752
      %754 = vrot.lane.b32.xlu0 %v377, 8
      %v755 = vpop.permute.xlu0 %754
      %756 = vrot.lane.b32.xlu0 %v378, 8
      %v757 = vpop.permute.xlu0 %756
      %758 = vrot.lane.b32.xlu0 %v379, 8
      %v759 = vpop.permute.xlu0 %758
      %760 = vrot.lane.b32.xlu0 %v380, 8
      %v761 = vpop.permute.xlu0 %760
      %762 = vrot.lane.b32.xlu0 %v381, 8
      %v763 = vpop.permute.xlu0 %762
      %764 = vrot.lane.b32.xlu0 %v382, 8
      %v765 = vpop.permute.xlu0 %764
      %766 = vrot.lane.b32.xlu0 %v383, 8
      %v767 = vpop.permute.xlu0 %766
      %768 = vrot.lane.b32.xlu0 %v384, 8
      %v769 = vpop.permute.xlu0 %768
      %770 = vrot.lane.b32.xlu0 %v385, 8
      %v771 = vpop.permute.xlu0 %770
      %772 = vrot.lane.b32.xlu0 %v386, 8
      %v773 = vpop.permute.xlu0 %772
      %774 = vrot.lane.b32.xlu0 %v387, 8
      %v775 = vpop.permute.xlu0 %774
      %776 = vrot.lane.b32.xlu0 %v388, 8
      %v777 = vpop.permute.xlu0 %776
      %778 = vrot.lane.b32.xlu0 %v389, 8
      %v779 = vpop.permute.xlu0 %778
      %780 = vrot.lane.b32.xlu0 %v390, 8
      %v781 = vpop.permute.xlu0 %780
      %782 = vrot.lane.b32.xlu0 %v391, 8
      %v783 = vpop.permute.xlu0 %782
      %784 = vrot.lane.b32.xlu0 %v392, 8
      %v785 = vpop.permute.xlu0 %784
      %786 = vrot.lane.b32.xlu0 %v393, 8
      %v787 = vpop.permute.xlu0 %786
      %788 = vrot.lane.b32.xlu0 %v394, 8
      %v789 = vpop.permute.xlu0 %788
      %790 = vrot.lane.b32.xlu0 %v395, 8
      %v791 = vpop.permute.xlu0 %790
      %792 = vrot.lane.b32.xlu0 %v396, 8
      %v793 = vpop.permute.xlu0 %792
      %794 = vrot.lane.b32.xlu0 %v397, 8
      %v795 = vpop.permute.xlu0 %794
      %796 = vrot.lane.b32.xlu0 %v398, 8
      %v797 = vpop.permute.xlu0 %796
      %798 = vrot.lane.b32.xlu0 %v399, 8
      %v799 = vpop.permute.xlu0 %798
      %838 = vrot.lane.b32.xlu0 %v366, 12
      %v839 = vpop.permute.xlu0 %838
      %840 = vrot.lane.b32.xlu0 %v367, 12
      %v841 = vpop.permute.xlu0 %840
      %842 = vrot.lane.b32.xlu0 %v368, 12
      %v843 = vpop.permute.xlu0 %842
      %844 = vrot.lane.b32.xlu0 %v369, 12
      %v845 = vpop.permute.xlu0 %844
      %846 = vrot.lane.b32.xlu0 %v370, 12
      %v847 = vpop.permute.xlu0 %846
      %848 = vrot.lane.b32.xlu0 %v371, 12
      %v849 = vpop.permute.xlu0 %848
      %850 = vrot.lane.b32.xlu0 %v372, 12
      %v851 = vpop.permute.xlu0 %850
      %852 = vrot.lane.b32.xlu0 %v373, 12
      %v853 = vpop.permute.xlu0 %852
      %854 = vrot.lane.b32.xlu0 %v374, 12
      %v855 = vpop.permute.xlu0 %854
      %856 = vrot.lane.b32.xlu0 %v375, 12
      %v857 = vpop.permute.xlu0 %856
      %858 = vrot.lane.b32.xlu0 %v376, 12
      %v859 = vpop.permute.xlu0 %858
      %860 = vrot.lane.b32.xlu0 %v377, 12
      %v861 = vpop.permute.xlu0 %860
      %862 = vrot.lane.b32.xlu0 %v378, 12
      %v863 = vpop.permute.xlu0 %862
      %864 = vrot.lane.b32.xlu0 %v379, 12
      %v865 = vpop.permute.xlu0 %864
      %866 = vrot.lane.b32.xlu0 %v380, 12
      %v867 = vpop.permute.xlu0 %866
      %868 = vrot.lane.b32.xlu0 %v381, 12
      %v869 = vpop.permute.xlu0 %868
      %870 = vrot.lane.b32.xlu0 %v382, 12
      %v871 = vpop.permute.xlu0 %870
      %872 = vrot.lane.b32.xlu0 %v383, 12
      %v873 = vpop.permute.xlu0 %872
      %874 = vrot.lane.b32.xlu0 %v384, 12
      %v875 = vpop.permute.xlu0 %874
      %876 = vrot.lane.b32.xlu0 %v385, 12
      %v877 = vpop.permute.xlu0 %876
      %878 = vrot.lane.b32.xlu0 %v386, 12
      %v879 = vpop.permute.xlu0 %878
      %880 = vrot.lane.b32.xlu0 %v387, 12
      %v881 = vpop.permute.xlu0 %880
      %882 = vrot.lane.b32.xlu0 %v388, 12
      %v883 = vpop.permute.xlu0 %882
      %884 = vrot.lane.b32.xlu0 %v389, 12
      %v885 = vpop.permute.xlu0 %884
      %886 = vrot.lane.b32.xlu0 %v390, 12
      %v887 = vpop.permute.xlu0 %886
      %888 = vrot.lane.b32.xlu0 %v391, 12
      %v889 = vpop.permute.xlu0 %888
      %890 = vrot.lane.b32.xlu0 %v392, 12
      %v891 = vpop.permute.xlu0 %890
      %892 = vrot.lane.b32.xlu0 %v393, 12
      %v893 = vpop.permute.xlu0 %892
      %894 = vrot.lane.b32.xlu0 %v394, 12
      %v895 = vpop.permute.xlu0 %894
      %896 = vrot.lane.b32.xlu0 %v395, 12
      %v897 = vpop.permute.xlu0 %896
      %898 = vrot.lane.b32.xlu0 %v396, 12
      %v899 = vpop.permute.xlu0 %898
      %900 = vrot.lane.b32.xlu0 %v397, 12
      %v901 = vpop.permute.xlu0 %900
      %902 = vrot.lane.b32.xlu0 %v398, 12
      %v903 = vpop.permute.xlu0 %902
      %904 = vrot.lane.b32.xlu0 %v399, 12
      %v905 = vpop.permute.xlu0 %904
      %906 = vrot.lane.b32.xlu0 %v400, 12
      %v907 = vpop.permute.xlu0 %906
      %908 = vrot.lane.b32.xlu0 %v401, 12
      %v909 = vpop.permute.xlu0 %908
      %982 = vrot.lane.b32.xlu0 %v402, 16
      %v983 = vpop.permute.xlu0 %982
      %984 = vrot.lane.b32.xlu0 %v403, 16
      %v985 = vpop.permute.xlu0 %984
      %986 = vrot.lane.b32.xlu0 %v404, 16
      %v987 = vpop.permute.xlu0 %986
      %988 = vrot.lane.b32.xlu0 %v405, 16
      %v989 = vpop.permute.xlu0 %988
      %990 = vrot.lane.b32.xlu0 %v406, 16
      %v991 = vpop.permute.xlu0 %990
      %992 = vrot.lane.b32.xlu0 %v407, 16
      %v993 = vpop.permute.xlu0 %992
      %994 = vrot.lane.b32.xlu0 %v408, 16
      %v995 = vpop.permute.xlu0 %994
      %996 = vrot.lane.b32.xlu0 %v409, 16
      %v997 = vpop.permute.xlu0 %996
      %998 = vrot.lane.b32.xlu0 %v410, 16
      %v999 = vpop.permute.xlu0 %998
      %1000 = vrot.lane.b32.xlu0 %v411, 16
      %v1001 = vpop.permute.xlu0 %1000
      %1002 = vrot.lane.b32.xlu0 %v412, 16
      %v1003 = vpop.permute.xlu0 %1002
      %1004 = vrot.lane.b32.xlu0 %v413, 16
      %v1005 = vpop.permute.xlu0 %1004
      %1006 = vrot.lane.b32.xlu0 %v414, 16
      %v1007 = vpop.permute.xlu0 %1006
      %1008 = vrot.lane.b32.xlu0 %v415, 16
      %v1009 = vpop.permute.xlu0 %1008
      %1010 = vrot.lane.b32.xlu0 %v416, 16
      %v1011 = vpop.permute.xlu0 %1010
      %1012 = vrot.lane.b32.xlu0 %v417, 16
      %v1013 = vpop.permute.xlu0 %1012
      %1014 = vrot.lane.b32.xlu0 %v418, 16
      %v1015 = vpop.permute.xlu0 %1014
      %1016 = vrot.lane.b32.xlu0 %v419, 16
      %v1017 = vpop.permute.xlu0 %1016
      %1018 = vrot.lane.b32.xlu0 %v420, 16
      %v1019 = vpop.permute.xlu0 %1018
      %1020 = vrot.lane.b32.xlu0 %v421, 16
      %v1021 = vpop.permute.xlu0 %1020
      %1022 = vrot.lane.b32.xlu0 %v422, 16
      %v1023 = vpop.permute.xlu0 %1022
      %1024 = vrot.lane.b32.xlu0 %v423, 16
      %v1025 = vpop.permute.xlu0 %1024
      %1026 = vrot.lane.b32.xlu0 %v424, 16
      %v1027 = vpop.permute.xlu0 %1026
      %1028 = vrot.lane.b32.xlu0 %v425, 16
      %v1029 = vpop.permute.xlu0 %1028
      %1030 = vrot.lane.b32.xlu0 %v426, 16
      %v1031 = vpop.permute.xlu0 %1030
      %1032 = vrot.lane.b32.xlu0 %v427, 16
      %v1033 = vpop.permute.xlu0 %1032
      %1034 = vrot.lane.b32.xlu0 %v428, 16
      %v1035 = vpop.permute.xlu0 %1034
      %1036 = vrot.lane.b32.xlu0 %v429, 16
      %v1037 = vpop.permute.xlu0 %1036
      %1038 = vrot.lane.b32.xlu0 %v430, 16
      %v1039 = vpop.permute.xlu0 %1038
      %1040 = vrot.lane.b32.xlu0 %v431, 16
      %v1041 = vpop.permute.xlu0 %1040
      %1042 = vrot.lane.b32.xlu0 %v432, 16
      %v1043 = vpop.permute.xlu0 %1042
      %1044 = vrot.lane.b32.xlu0 %v433, 16
      %v1045 = vpop.permute.xlu0 %1044
      %1046 = vrot.lane.b32.xlu0 %v434, 16
      %v1047 = vpop.permute.xlu0 %1046
      %1048 = vrot.lane.b32.xlu0 %v435, 16
      %v1049 = vpop.permute.xlu0 %1048
      %1050 = vrot.lane.b32.xlu0 %v436, 16
      %v1051 = vpop.permute.xlu0 %1050
      %1052 = vrot.lane.b32.xlu0 %v437, 16
      %v1053 = vpop.permute.xlu0 %1052
      %1126 = vrot.lane.b32.xlu0 %v438, 20
      %v1127 = vpop.permute.xlu0 %1126
      %1128 = vrot.lane.b32.xlu0 %v439, 20
      %v1129 = vpop.permute.xlu0 %1128
      %1130 = vrot.lane.b32.xlu0 %v440, 20
      %v1131 = vpop.permute.xlu0 %1130
      %1132 = vrot.lane.b32.xlu0 %v441, 20
      %v1133 = vpop.permute.xlu0 %1132
      %1134 = vrot.lane.b32.xlu0 %v442, 20
      %v1135 = vpop.permute.xlu0 %1134
      %1136 = vrot.lane.b32.xlu0 %v443, 20
      %v1137 = vpop.permute.xlu0 %1136
      %1138 = vrot.lane.b32.xlu0 %v444, 20
      %v1139 = vpop.permute.xlu0 %1138
      %1140 = vrot.lane.b32.xlu0 %v445, 20
      %v1141 = vpop.permute.xlu0 %1140
      %1142 = vrot.lane.b32.xlu0 %v446, 20
      %v1143 = vpop.permute.xlu0 %1142
      %1144 = vrot.lane.b32.xlu0 %v447, 20
      %v1145 = vpop.permute.xlu0 %1144
      %1146 = vrot.lane.b32.xlu0 %v448, 20
      %v1147 = vpop.permute.xlu0 %1146
      %1148 = vrot.lane.b32.xlu0 %v449, 20
      %v1149 = vpop.permute.xlu0 %1148
      %1150 = vrot.lane.b32.xlu0 %v450, 20
      %v1151 = vpop.permute.xlu0 %1150
      %1152 = vrot.lane.b32.xlu0 %v451, 20
      %v1153 = vpop.permute.xlu0 %1152
      %1154 = vrot.lane.b32.xlu0 %v452, 20
      %v1155 = vpop.permute.xlu0 %1154
      %1156 = vrot.lane.b32.xlu0 %v453, 20
      %v1157 = vpop.permute.xlu0 %1156
      %1158 = vrot.lane.b32.xlu0 %v454, 20
      %v1159 = vpop.permute.xlu0 %1158
      %1160 = vrot.lane.b32.xlu0 %v455, 20
      %v1161 = vpop.permute.xlu0 %1160
      %1162 = vrot.lane.b32.xlu0 %v456, 20
      %v1163 = vpop.permute.xlu0 %1162
      %1164 = vrot.lane.b32.xlu0 %v457, 20
      %v1165 = vpop.permute.xlu0 %1164
      %1166 = vrot.lane.b32.xlu0 %v458, 20
      %v1167 = vpop.permute.xlu0 %1166
      %1168 = vrot.lane.b32.xlu0 %v459, 20
      %v1169 = vpop.permute.xlu0 %1168
      %1170 = vrot.lane.b32.xlu0 %v460, 20
      %v1171 = vpop.permute.xlu0 %1170
      %1172 = vrot.lane.b32.xlu0 %v461, 20
      %v1173 = vpop.permute.xlu0 %1172
      %1174 = vrot.lane.b32.xlu0 %v462, 20
      %v1175 = vpop.permute.xlu0 %1174
      %1176 = vrot.lane.b32.xlu0 %v463, 20
      %v1177 = vpop.permute.xlu0 %1176
      %1178 = vrot.lane.b32.xlu0 %v464, 20
      %v1179 = vpop.permute.xlu0 %1178
      %1180 = vrot.lane.b32.xlu0 %v465, 20
      %v1181 = vpop.permute.xlu0 %1180
      %1182 = vrot.lane.b32.xlu0 %v466, 20
      %v1183 = vpop.permute.xlu0 %1182
      %1184 = vrot.lane.b32.xlu0 %v467, 20
      %v1185 = vpop.permute.xlu0 %1184
      %1186 = vrot.lane.b32.xlu0 %v468, 20
      %v1187 = vpop.permute.xlu0 %1186
      %1188 = vrot.lane.b32.xlu0 %v469, 20
      %v1189 = vpop.permute.xlu0 %1188
      %1190 = vrot.lane.b32.xlu0 %v470, 20
      %v1191 = vpop.permute.xlu0 %1190
      %1192 = vrot.lane.b32.xlu0 %v471, 20
      %v1193 = vpop.permute.xlu0 %1192
      %1194 = vrot.lane.b32.xlu0 %v472, 20
      %v1195 = vpop.permute.xlu0 %1194
      %1196 = vrot.lane.b32.xlu0 %v473, 20
      %v1197 = vpop.permute.xlu0 %1196
      %1236 = vrot.lane.b32.xlu0 %v440, 24
      %v1237 = vpop.permute.xlu0 %1236
      %1238 = vrot.lane.b32.xlu0 %v441, 24
      %v1239 = vpop.permute.xlu0 %1238
      %1240 = vrot.lane.b32.xlu0 %v442, 24
      %v1241 = vpop.permute.xlu0 %1240
      %1242 = vrot.lane.b32.xlu0 %v443, 24
      %v1243 = vpop.permute.xlu0 %1242
      %1244 = vrot.lane.b32.xlu0 %v444, 24
      %v1245 = vpop.permute.xlu0 %1244
      %1246 = vrot.lane.b32.xlu0 %v445, 24
      %v1247 = vpop.permute.xlu0 %1246
      %1248 = vrot.lane.b32.xlu0 %v446, 24
      %v1249 = vpop.permute.xlu0 %1248
      %1250 = vrot.lane.b32.xlu0 %v447, 24
      %v1251 = vpop.permute.xlu0 %1250
      %1252 = vrot.lane.b32.xlu0 %v448, 24
      %v1253 = vpop.permute.xlu0 %1252
      %1254 = vrot.lane.b32.xlu0 %v449, 24
      %v1255 = vpop.permute.xlu0 %1254
      %1256 = vrot.lane.b32.xlu0 %v450, 24
      %v1257 = vpop.permute.xlu0 %1256
      %1258 = vrot.lane.b32.xlu0 %v451, 24
      %v1259 = vpop.permute.xlu0 %1258
      %1260 = vrot.lane.b32.xlu0 %v452, 24
      %v1261 = vpop.permute.xlu0 %1260
      %1262 = vrot.lane.b32.xlu0 %v453, 24
      %v1263 = vpop.permute.xlu0 %1262
      %1264 = vrot.lane.b32.xlu0 %v454, 24
      %v1265 = vpop.permute.xlu0 %1264
      %1266 = vrot.lane.b32.xlu0 %v455, 24
      %v1267 = vpop.permute.xlu0 %1266
      %1268 = vrot.lane.b32.xlu0 %v456, 24
      %v1269 = vpop.permute.xlu0 %1268
      %1270 = vrot.lane.b32.xlu0 %v457, 24
      %v1271 = vpop.permute.xlu0 %1270
      %1272 = vrot.lane.b32.xlu0 %v458, 24
      %v1273 = vpop.permute.xlu0 %1272
      %1274 = vrot.lane.b32.xlu0 %v459, 24
      %v1275 = vpop.permute.xlu0 %1274
      %1276 = vrot.lane.b32.xlu0 %v460, 24
      %v1277 = vpop.permute.xlu0 %1276
      %1278 = vrot.lane.b32.xlu0 %v461, 24
      %v1279 = vpop.permute.xlu0 %1278
      %1280 = vrot.lane.b32.xlu0 %v462, 24
      %v1281 = vpop.permute.xlu0 %1280
      %1282 = vrot.lane.b32.xlu0 %v463, 24
      %v1283 = vpop.permute.xlu0 %1282
      %1284 = vrot.lane.b32.xlu0 %v464, 24
      %v1285 = vpop.permute.xlu0 %1284
      %1286 = vrot.lane.b32.xlu0 %v465, 24
      %v1287 = vpop.permute.xlu0 %1286
      %1288 = vrot.lane.b32.xlu0 %v466, 24
      %v1289 = vpop.permute.xlu0 %1288
      %1290 = vrot.lane.b32.xlu0 %v467, 24
      %v1291 = vpop.permute.xlu0 %1290
      %1292 = vrot.lane.b32.xlu0 %v468, 24
      %v1293 = vpop.permute.xlu0 %1292
      %1294 = vrot.lane.b32.xlu0 %v469, 24
      %v1295 = vpop.permute.xlu0 %1294
      %1296 = vrot.lane.b32.xlu0 %v470, 24
      %v1297 = vpop.permute.xlu0 %1296
      %1298 = vrot.lane.b32.xlu0 %v471, 24
      %v1299 = vpop.permute.xlu0 %1298
      %1300 = vrot.lane.b32.xlu0 %v472, 24
      %v1301 = vpop.permute.xlu0 %1300
      %1302 = vrot.lane.b32.xlu0 %v473, 24
      %v1303 = vpop.permute.xlu0 %1302
      %1304 = vrot.lane.b32.xlu0 %v474, 24
      %v1305 = vpop.permute.xlu0 %1304
      %1306 = vrot.lane.b32.xlu0 %v475, 24
      %v1307 = vpop.permute.xlu0 %1306
      %1380 = vrot.lane.b32.xlu0 %v476, 28
      %v1381 = vpop.permute.xlu0 %1380
      %1382 = vrot.lane.b32.xlu0 %v477, 28
      %v1383 = vpop.permute.xlu0 %1382
      %1384 = vrot.lane.b32.xlu0 %v478, 28
      %v1385 = vpop.permute.xlu0 %1384
      %1386 = vrot.lane.b32.xlu0 %v479, 28
      %v1387 = vpop.permute.xlu0 %1386
      %1388 = vrot.lane.b32.xlu0 %v480, 28
      %v1389 = vpop.permute.xlu0 %1388
      %1390 = vrot.lane.b32.xlu0 %v481, 28
      %v1391 = vpop.permute.xlu0 %1390
      %1392 = vrot.lane.b32.xlu0 %v482, 28
      %v1393 = vpop.permute.xlu0 %1392
      %1394 = vrot.lane.b32.xlu0 %v483, 28
      %v1395 = vpop.permute.xlu0 %1394
      %1396 = vrot.lane.b32.xlu0 %v484, 28
      %v1397 = vpop.permute.xlu0 %1396
      %1398 = vrot.lane.b32.xlu0 %v485, 28
      %v1399 = vpop.permute.xlu0 %1398
      %1400 = vrot.lane.b32.xlu0 %v486, 28
      %v1401 = vpop.permute.xlu0 %1400
      %1402 = vrot.lane.b32.xlu0 %v487, 28
      %v1403 = vpop.permute.xlu0 %1402
      %1404 = vrot.lane.b32.xlu0 %v488, 28
      %v1405 = vpop.permute.xlu0 %1404
      %1406 = vrot.lane.b32.xlu0 %v489, 28
      %v1407 = vpop.permute.xlu0 %1406
      %1408 = vrot.lane.b32.xlu0 %v490, 28
      %v1409 = vpop.permute.xlu0 %1408
      %1410 = vrot.lane.b32.xlu0 %v491, 28
      %v1411 = vpop.permute.xlu0 %1410
      %1412 = vrot.lane.b32.xlu0 %v492, 28
      %v1413 = vpop.permute.xlu0 %1412
      %1414 = vrot.lane.b32.xlu0 %v493, 28
      %v1415 = vpop.permute.xlu0 %1414
      %1416 = vrot.lane.b32.xlu0 %v494, 28
      %v1417 = vpop.permute.xlu0 %1416
      %1418 = vrot.lane.b32.xlu0 %v495, 28
      %v1419 = vpop.permute.xlu0 %1418
      %1420 = vrot.lane.b32.xlu0 %v496, 28
      %v1421 = vpop.permute.xlu0 %1420
      %1422 = vrot.lane.b32.xlu0 %v497, 28
      %v1423 = vpop.permute.xlu0 %1422
      %1424 = vrot.lane.b32.xlu0 %v498, 28
      %v1425 = vpop.permute.xlu0 %1424
      %1426 = vrot.lane.b32.xlu0 %v499, 28
      %v1427 = vpop.permute.xlu0 %1426
      %1428 = vrot.lane.b32.xlu0 %v500, 28
      %v1429 = vpop.permute.xlu0 %1428
      %1430 = vrot.lane.b32.xlu0 %v501, 28
      %v1431 = vpop.permute.xlu0 %1430
      %1432 = vrot.lane.b32.xlu0 %v502, 28
      %v1433 = vpop.permute.xlu0 %1432
      %1434 = vrot.lane.b32.xlu0 %v503, 28
      %v1435 = vpop.permute.xlu0 %1434
      %1436 = vrot.lane.b32.xlu0 %v504, 28
      %v1437 = vpop.permute.xlu0 %1436
      %1438 = vrot.lane.b32.xlu0 %v505, 28
      %v1439 = vpop.permute.xlu0 %1438
      %1440 = vrot.lane.b32.xlu0 %v506, 28
      %v1441 = vpop.permute.xlu0 %1440
      %1442 = vrot.lane.b32.xlu0 %v507, 28
      %v1443 = vpop.permute.xlu0 %1442
      %1444 = vrot.lane.b32.xlu0 %v508, 28
      %v1445 = vpop.permute.xlu0 %1444
      %1446 = vrot.lane.b32.xlu0 %v509, 28
      %v1447 = vpop.permute.xlu0 %1446
      %1448 = vrot.lane.b32.xlu0 %v510, 28
      %v1449 = vpop.permute.xlu0 %1448
      %1450 = vrot.lane.b32.xlu0 %v511, 28
      %v1451 = vpop.permute.xlu0 %1450
      %1524 = vrot.lane.b32.xlu0 %v512, 32
      %v1525 = vpop.permute.xlu0 %1524
      %1526 = vrot.lane.b32.xlu0 %v513, 32
      %v1527 = vpop.permute.xlu0 %1526
      %1528 = vrot.lane.b32.xlu0 %v514, 32
      %v1529 = vpop.permute.xlu0 %1528
      %1530 = vrot.lane.b32.xlu0 %v515, 32
      %v1531 = vpop.permute.xlu0 %1530
      %1532 = vrot.lane.b32.xlu0 %v516, 32
      %v1533 = vpop.permute.xlu0 %1532
      %1534 = vrot.lane.b32.xlu0 %v517, 32
      %v1535 = vpop.permute.xlu0 %1534
      %1536 = vrot.lane.b32.xlu0 %v518, 32
      %v1537 = vpop.permute.xlu0 %1536
      %1538 = vrot.lane.b32.xlu0 %v519, 32
      %v1539 = vpop.permute.xlu0 %1538
      %1540 = vrot.lane.b32.xlu0 %v520, 32
      %v1541 = vpop.permute.xlu0 %1540
      %1542 = vrot.lane.b32.xlu0 %v521, 32
      %v1543 = vpop.permute.xlu0 %1542
      %1544 = vrot.lane.b32.xlu0 %v522, 32
      %v1545 = vpop.permute.xlu0 %1544
      %1546 = vrot.lane.b32.xlu0 %v523, 32
      %v1547 = vpop.permute.xlu0 %1546
      %1548 = vrot.lane.b32.xlu0 %v524, 32
      %v1549 = vpop.permute.xlu0 %1548
      %1550 = vrot.lane.b32.xlu0 %v525, 32
      %v1551 = vpop.permute.xlu0 %1550
      %1552 = vrot.lane.b32.xlu0 %v526, 32
      %v1553 = vpop.permute.xlu0 %1552
      %1554 = vrot.lane.b32.xlu0 %v527, 32
      %v1555 = vpop.permute.xlu0 %1554
      %1556 = vrot.lane.b32.xlu0 %v528, 32
      %v1557 = vpop.permute.xlu0 %1556
      %1558 = vrot.lane.b32.xlu0 %v529, 32
      %v1559 = vpop.permute.xlu0 %1558
      %1560 = vrot.lane.b32.xlu0 %v530, 32
      %v1561 = vpop.permute.xlu0 %1560
      %1562 = vrot.lane.b32.xlu0 %v531, 32
      %v1563 = vpop.permute.xlu0 %1562
      %1564 = vrot.lane.b32.xlu0 %v532, 32
      %v1565 = vpop.permute.xlu0 %1564
      %1566 = vrot.lane.b32.xlu0 %v533, 32
      %v1567 = vpop.permute.xlu0 %1566
      %1568 = vrot.lane.b32.xlu0 %v534, 32
      %v1569 = vpop.permute.xlu0 %1568
      %1570 = vrot.lane.b32.xlu0 %v535, 32
      %v1571 = vpop.permute.xlu0 %1570
      %1572 = vrot.lane.b32.xlu0 %v536, 32
      %v1573 = vpop.permute.xlu0 %1572
      %1574 = vrot.lane.b32.xlu0 %v537, 32
      %v1575 = vpop.permute.xlu0 %1574
      %1576 = vrot.lane.b32.xlu0 %v538, 32
      %v1577 = vpop.permute.xlu0 %1576
      %1578 = vrot.lane.b32.xlu0 %v539, 32
      %v1579 = vpop.permute.xlu0 %1578
      %1580 = vrot.lane.b32.xlu0 %v540, 32
      %v1581 = vpop.permute.xlu0 %1580
      %1582 = vrot.lane.b32.xlu0 %v541, 32
      %v1583 = vpop.permute.xlu0 %1582
      %1584 = vrot.lane.b32.xlu0 %v542, 32
      %v1585 = vpop.permute.xlu0 %1584
      %1586 = vrot.lane.b32.xlu0 %v543, 32
      %v1587 = vpop.permute.xlu0 %1586
      %1588 = vrot.lane.b32.xlu0 %v544, 32
      %v1589 = vpop.permute.xlu0 %1588
      %1590 = vrot.lane.b32.xlu0 %v545, 32
      %v1591 = vpop.permute.xlu0 %1590
      %1592 = vrot.lane.b32.xlu0 %v546, 32
      %v1593 = vpop.permute.xlu0 %1592
      %1594 = vrot.lane.b32.xlu0 %v547, 32
      %v1595 = vpop.permute.xlu0 %1594
      %vm1632 = vcmask 31744
      %v1633 = vsel %vm1632, %v292, %v585
      %v1634 = vsel %vm1632, %v293, %v587
      %v1635 = vsel %vm1632, %v294, %v589
      %v1636 = vsel %vm1632, %v295, %v591
      %v1637 = vsel %vm1632, %v296, %v593
      %v1638 = vsel %vm1632, %v297, %v595
      %v1639 = vsel %vm1632, %v298, %v597
      %v1640 = vsel %vm1632, %v299, %v599
      %v1641 = vsel %vm1632, %v300, %v601
      %v1642 = vsel %vm1632, %v301, %v603
      %v1643 = vsel %vm1632, %v302, %v605
      %v1644 = vsel %vm1632, %v303, %v607
      %v1645 = vsel %vm1632, %v304, %v609
      %v1646 = vsel %vm1632, %v305, %v611
      %v1647 = vsel %vm1632, %v306, %v613
      %v1648 = vsel %vm1632, %v307, %v615
      %v1649 = vsel %vm1632, %v308, %v617
      %v1650 = vsel %vm1632, %v309, %v619
      %v1651 = vsel %vm1632, %v310, %v621
      %v1652 = vsel %vm1632, %v311, %v623
      %v1653 = vsel %vm1632, %v312, %v625
      %v1654 = vsel %vm1632, %v313, %v627
      %v1655 = vsel %vm1632, %v314, %v629
      %v1656 = vsel %vm1632, %v315, %v631
      %v1657 = vsel %vm1632, %v316, %v633
      %v1658 = vsel %vm1632, %v317, %v635
      %v1659 = vsel %vm1632, %v318, %v637
      %v1660 = vsel %vm1632, %v319, %v639
      %v1661 = vsel %vm1632, %v320, %v641
      %v1662 = vsel %vm1632, %v321, %v643
      %v1663 = vsel %vm1632, %v322, %v645
      %v1664 = vsel %vm1632, %v323, %v647
      %v1665 = vsel %vm1632, %v324, %v649
      %v1666 = vsel %vm1632, %v325, %v651
      %v1667 = vsel %vm1632, %v326, %v653
      %v1668 = vsel %vm1632, %v327, %v655
      %vm1669 = vcmask 64512
      %v1670 = vsel %vm1669, %v1633, %v729
      %v1671 = vsel %vm1669, %v1634, %v731
      %v1672 = vsel %vm1669, %v1635, %v733
      %v1673 = vsel %vm1669, %v1636, %v735
      %v1674 = vsel %vm1669, %v1637, %v737
      %v1675 = vsel %vm1669, %v1638, %v739
      %v1676 = vsel %vm1669, %v1639, %v741
      %v1677 = vsel %vm1669, %v1640, %v743
      %v1678 = vsel %vm1669, %v1641, %v745
      %v1679 = vsel %vm1669, %v1642, %v747
      %v1680 = vsel %vm1669, %v1643, %v749
      %v1681 = vsel %vm1669, %v1644, %v751
      %v1682 = vsel %vm1669, %v1645, %v753
      %v1683 = vsel %vm1669, %v1646, %v755
      %v1684 = vsel %vm1669, %v1647, %v757
      %v1685 = vsel %vm1669, %v1648, %v759
      %v1686 = vsel %vm1669, %v1649, %v761
      %v1687 = vsel %vm1669, %v1650, %v763
      %v1688 = vsel %vm1669, %v1651, %v765
      %v1689 = vsel %vm1669, %v1652, %v767
      %v1690 = vsel %vm1669, %v1653, %v769
      %v1691 = vsel %vm1669, %v1654, %v771
      %v1692 = vsel %vm1669, %v1655, %v773
      %v1693 = vsel %vm1669, %v1656, %v775
      %v1694 = vsel %vm1669, %v1657, %v777
      %v1695 = vsel %vm1669, %v1658, %v779
      %v1696 = vsel %vm1669, %v1659, %v781
      %v1697 = vsel %vm1669, %v1660, %v783
      %v1698 = vsel %vm1669, %v1661, %v785
      %v1699 = vsel %vm1669, %v1662, %v787
      %v1700 = vsel %vm1669, %v1663, %v789
      %v1701 = vsel %vm1669, %v1664, %v791
      %v1702 = vsel %vm1669, %v1665, %v793
      %v1703 = vsel %vm1669, %v1666, %v795
      %v1704 = vsel %vm1669, %v1667, %v797
      %v1705 = vsel %vm1669, %v1668, %v799
      %vm1706 = vcmask 97280
      %v1707 = vsel %vm1706, %v1670, %v839
      %v1708 = vsel %vm1706, %v1671, %v841
      %v1709 = vsel %vm1706, %v1672, %v843
      %v1710 = vsel %vm1706, %v1673, %v845
      %v1711 = vsel %vm1706, %v1674, %v847
      %v1712 = vsel %vm1706, %v1675, %v849
      %v1713 = vsel %vm1706, %v1676, %v851
      %v1714 = vsel %vm1706, %v1677, %v853
      %v1715 = vsel %vm1706, %v1678, %v855
      %v1716 = vsel %vm1706, %v1679, %v857
      %v1717 = vsel %vm1706, %v1680, %v859
      %v1718 = vsel %vm1706, %v1681, %v861
      %v1719 = vsel %vm1706, %v1682, %v863
      %v1720 = vsel %vm1706, %v1683, %v865
      %v1721 = vsel %vm1706, %v1684, %v867
      %v1722 = vsel %vm1706, %v1685, %v869
      %v1723 = vsel %vm1706, %v1686, %v871
      %v1724 = vsel %vm1706, %v1687, %v873
      %v1725 = vsel %vm1706, %v1688, %v875
      %v1726 = vsel %vm1706, %v1689, %v877
      %v1727 = vsel %vm1706, %v1690, %v879
      %v1728 = vsel %vm1706, %v1691, %v881
      %v1729 = vsel %vm1706, %v1692, %v883
      %v1730 = vsel %vm1706, %v1693, %v885
      %v1731 = vsel %vm1706, %v1694, %v887
      %v1732 = vsel %vm1706, %v1695, %v889
      %v1733 = vsel %vm1706, %v1696, %v891
      %v1734 = vsel %vm1706, %v1697, %v893
      %v1735 = vsel %vm1706, %v1698, %v895
      %v1736 = vsel %vm1706, %v1699, %v897
      %v1737 = vsel %vm1706, %v1700, %v899
      %v1738 = vsel %vm1706, %v1701, %v901
      %v1739 = vsel %vm1706, %v1702, %v903
      %v1740 = vsel %vm1706, %v1703, %v905
      %v1741 = vsel %vm1706, %v1704, %v907
      %v1742 = vsel %vm1706, %v1705, %v909
      %vm1743 = vcmask 130048
      %v1744 = vsel %vm1743, %v1707, %v983
      %v1745 = vsel %vm1743, %v1708, %v985
      %v1746 = vsel %vm1743, %v1709, %v987
      %v1747 = vsel %vm1743, %v1710, %v989
      %v1748 = vsel %vm1743, %v1711, %v991
      %v1749 = vsel %vm1743, %v1712, %v993
      %v1750 = vsel %vm1743, %v1713, %v995
      %v1751 = vsel %vm1743, %v1714, %v997
      %v1752 = vsel %vm1743, %v1715, %v999
      %v1753 = vsel %vm1743, %v1716, %v1001
      %v1754 = vsel %vm1743, %v1717, %v1003
      %v1755 = vsel %vm1743, %v1718, %v1005
      %v1756 = vsel %vm1743, %v1719, %v1007
      %v1757 = vsel %vm1743, %v1720, %v1009
      %v1758 = vsel %vm1743, %v1721, %v1011
      %v1759 = vsel %vm1743, %v1722, %v1013
      %v1760 = vsel %vm1743, %v1723, %v1015
      %v1761 = vsel %vm1743, %v1724, %v1017
      %v1762 = vsel %vm1743, %v1725, %v1019
      %v1763 = vsel %vm1743, %v1726, %v1021
      %v1764 = vsel %vm1743, %v1727, %v1023
      %v1765 = vsel %vm1743, %v1728, %v1025
      %v1766 = vsel %vm1743, %v1729, %v1027
      %v1767 = vsel %vm1743, %v1730, %v1029
      %v1768 = vsel %vm1743, %v1731, %v1031
      %v1769 = vsel %vm1743, %v1732, %v1033
      %v1770 = vsel %vm1743, %v1733, %v1035
      %v1771 = vsel %vm1743, %v1734, %v1037
      %v1772 = vsel %vm1743, %v1735, %v1039
      %v1773 = vsel %vm1743, %v1736, %v1041
      %v1774 = vsel %vm1743, %v1737, %v1043
      %v1775 = vsel %vm1743, %v1738, %v1045
      %v1776 = vsel %vm1743, %v1739, %v1047
      %v1777 = vsel %vm1743, %v1740, %v1049
      %v1778 = vsel %vm1743, %v1741, %v1051
      %v1779 = vsel %vm1743, %v1742, %v1053
      %vm1780 = vcmask 162816
      %v1781 = vsel %vm1780, %v1744, %v1127
      %v1782 = vsel %vm1780, %v1745, %v1129
      %v1783 = vsel %vm1780, %v1746, %v1131
      %v1784 = vsel %vm1780, %v1747, %v1133
      %v1785 = vsel %vm1780, %v1748, %v1135
      %v1786 = vsel %vm1780, %v1749, %v1137
      %v1787 = vsel %vm1780, %v1750, %v1139
      %v1788 = vsel %vm1780, %v1751, %v1141
      %v1789 = vsel %vm1780, %v1752, %v1143
      %v1790 = vsel %vm1780, %v1753, %v1145
      %v1791 = vsel %vm1780, %v1754, %v1147
      %v1792 = vsel %vm1780, %v1755, %v1149
      %v1793 = vsel %vm1780, %v1756, %v1151
      %v1794 = vsel %vm1780, %v1757, %v1153
      %v1795 = vsel %vm1780, %v1758, %v1155
      %v1796 = vsel %vm1780, %v1759, %v1157
      %v1797 = vsel %vm1780, %v1760, %v1159
      %v1798 = vsel %vm1780, %v1761, %v1161
      %v1799 = vsel %vm1780, %v1762, %v1163
      %v1800 = vsel %vm1780, %v1763, %v1165
      %v1801 = vsel %vm1780, %v1764, %v1167
      %v1802 = vsel %vm1780, %v1765, %v1169
      %v1803 = vsel %vm1780, %v1766, %v1171
      %v1804 = vsel %vm1780, %v1767, %v1173
      %v1805 = vsel %vm1780, %v1768, %v1175
      %v1806 = vsel %vm1780, %v1769, %v1177
      %v1807 = vsel %vm1780, %v1770, %v1179
      %v1808 = vsel %vm1780, %v1771, %v1181
      %v1809 = vsel %vm1780, %v1772, %v1183
      %v1810 = vsel %vm1780, %v1773, %v1185
      %v1811 = vsel %vm1780, %v1774, %v1187
      %v1812 = vsel %vm1780, %v1775, %v1189
      %v1813 = vsel %vm1780, %v1776, %v1191
      %v1814 = vsel %vm1780, %v1777, %v1193
      %v1815 = vsel %vm1780, %v1778, %v1195
      %v1816 = vsel %vm1780, %v1779, %v1197
      %vm1817 = vcmask 195584
      %v1818 = vsel %vm1817, %v1781, %v1237
      %v1819 = vsel %vm1817, %v1782, %v1239
      %v1820 = vsel %vm1817, %v1783, %v1241
      %v1821 = vsel %vm1817, %v1784, %v1243
      %v1822 = vsel %vm1817, %v1785, %v1245
      %v1823 = vsel %vm1817, %v1786, %v1247
      %v1824 = vsel %vm1817, %v1787, %v1249
      %v1825 = vsel %vm1817, %v1788, %v1251
      %v1826 = vsel %vm1817, %v1789, %v1253
      %v1827 = vsel %vm1817, %v1790, %v1255
      %v1828 = vsel %vm1817, %v1791, %v1257
      %v1829 = vsel %vm1817, %v1792, %v1259
      %v1830 = vsel %vm1817, %v1793, %v1261
      %v1831 = vsel %vm1817, %v1794, %v1263
      %v1832 = vsel %vm1817, %v1795, %v1265
      %v1833 = vsel %vm1817, %v1796, %v1267
      %v1834 = vsel %vm1817, %v1797, %v1269
      %v1835 = vsel %vm1817, %v1798, %v1271
      %v1836 = vsel %vm1817, %v1799, %v1273
      %v1837 = vsel %vm1817, %v1800, %v1275
      %v1838 = vsel %vm1817, %v1801, %v1277
      %v1839 = vsel %vm1817, %v1802, %v1279
      %v1840 = vsel %vm1817, %v1803, %v1281
      %v1841 = vsel %vm1817, %v1804, %v1283
      %v1842 = vsel %vm1817, %v1805, %v1285
      %v1843 = vsel %vm1817, %v1806, %v1287
      %v1844 = vsel %vm1817, %v1807, %v1289
      %v1845 = vsel %vm1817, %v1808, %v1291
      %v1846 = vsel %vm1817, %v1809, %v1293
      %v1847 = vsel %vm1817, %v1810, %v1295
      %v1848 = vsel %vm1817, %v1811, %v1297
      %v1849 = vsel %vm1817, %v1812, %v1299
      %v1850 = vsel %vm1817, %v1813, %v1301
      %v1851 = vsel %vm1817, %v1814, %v1303
      %v1852 = vsel %vm1817, %v1815, %v1305
      %v1853 = vsel %vm1817, %v1816, %v1307
      %vm1854 = vcmask 228352
      %v1855 = vsel %vm1854, %v1818, %v1381
      %v1856 = vsel %vm1854, %v1819, %v1383
      %v1857 = vsel %vm1854, %v1820, %v1385
      %v1858 = vsel %vm1854, %v1821, %v1387
      %v1859 = vsel %vm1854, %v1822, %v1389
      %v1860 = vsel %vm1854, %v1823, %v1391
      %v1861 = vsel %vm1854, %v1824, %v1393
      %v1862 = vsel %vm1854, %v1825, %v1395
      %v1863 = vsel %vm1854, %v1826, %v1397
      %v1864 = vsel %vm1854, %v1827, %v1399
      %v1865 = vsel %vm1854, %v1828, %v1401
      %v1866 = vsel %vm1854, %v1829, %v1403
      %v1867 = vsel %vm1854, %v1830, %v1405
      %v1868 = vsel %vm1854, %v1831, %v1407
      %v1869 = vsel %vm1854, %v1832, %v1409
      %v1870 = vsel %vm1854, %v1833, %v1411
      %v1871 = vsel %vm1854, %v1834, %v1413
      %v1872 = vsel %vm1854, %v1835, %v1415
      %v1873 = vsel %vm1854, %v1836, %v1417
      %v1874 = vsel %vm1854, %v1837, %v1419
      %v1875 = vsel %vm1854, %v1838, %v1421
      %v1876 = vsel %vm1854, %v1839, %v1423
      %v1877 = vsel %vm1854, %v1840, %v1425
      %v1878 = vsel %vm1854, %v1841, %v1427
      %v1879 = vsel %vm1854, %v1842, %v1429
      %v1880 = vsel %vm1854, %v1843, %v1431
      %v1881 = vsel %vm1854, %v1844, %v1433
      %v1882 = vsel %vm1854, %v1845, %v1435
      %v1883 = vsel %vm1854, %v1846, %v1437
      %v1884 = vsel %vm1854, %v1847, %v1439
      %v1885 = vsel %vm1854, %v1848, %v1441
      %v1886 = vsel %vm1854, %v1849, %v1443
      %v1887 = vsel %vm1854, %v1850, %v1445
      %v1888 = vsel %vm1854, %v1851, %v1447
      %v1889 = vsel %vm1854, %v1852, %v1449
      %v1890 = vsel %vm1854, %v1853, %v1451
      %vm1891 = vcmask 261120
      %v1892 = vsel %vm1891, %v1855, %v1525
      %v1893 = vsel %vm1891, %v1856, %v1527
      %v1894 = vsel %vm1891, %v1857, %v1529
      %v1895 = vsel %vm1891, %v1858, %v1531
      %v1896 = vsel %vm1891, %v1859, %v1533
      %v1897 = vsel %vm1891, %v1860, %v1535
      %v1898 = vsel %vm1891, %v1861, %v1537
      %v1899 = vsel %vm1891, %v1862, %v1539
      %v1900 = vsel %vm1891, %v1863, %v1541
      %v1901 = vsel %vm1891, %v1864, %v1543
      %v1902 = vsel %vm1891, %v1865, %v1545
      %v1903 = vsel %vm1891, %v1866, %v1547
      %v1904 = vsel %vm1891, %v1867, %v1549
      %v1905 = vsel %vm1891, %v1868, %v1551
      %v1906 = vsel %vm1891, %v1869, %v1553
      %v1907 = vsel %vm1891, %v1870, %v1555
      %v1908 = vsel %vm1891, %v1871, %v1557
      %v1909 = vsel %vm1891, %v1872, %v1559
      %v1910 = vsel %vm1891, %v1873, %v1561
      %v1911 = vsel %vm1891, %v1874, %v1563
      %v1912 = vsel %vm1891, %v1875, %v1565
      %v1913 = vsel %vm1891, %v1876, %v1567
      %v1914 = vsel %vm1891, %v1877, %v1569
      %v1915 = vsel %vm1891, %v1878, %v1571
      %v1916 = vsel %vm1891, %v1879, %v1573
      %v1917 = vsel %vm1891, %v1880, %v1575
      %v1918 = vsel %vm1891, %v1881, %v1577
      %v1919 = vsel %vm1891, %v1882, %v1579
      %v1920 = vsel %vm1891, %v1883, %v1581
      %v1921 = vsel %vm1891, %v1884, %v1583
      %v1922 = vsel %vm1891, %v1885, %v1585
      %v1923 = vsel %vm1891, %v1886, %v1587
      %v1924 = vsel %vm1891, %v1887, %v1589
      %v1925 = vsel %vm1891, %v1888, %v1591
      %v1926 = vsel %vm1891, %v1889, %v1593
      %v1927 = vsel %vm1891, %v1890, %v1595
      %v1928 = vld [vmem:[%s2] sm:$0xff]
      %v1929 = vld [vmem:[%s2 + $0x8] sm:$0xff]
      %v1930 = vld [vmem:[%s2 + $0x10] sm:$0xff]
      %v1931 = vld [vmem:[%s2 + $0x18] sm:$0xff]
      %v1932 = vld [vmem:[%s2 + $0x20] sm:$0xf]
      %v1933 = vld [vmem:[%s3] sm:$0x1]
      %v1935 = vlaneseq
      %v1936 = vshrl.u32 %v1935, 7
      %v1937 = vsub.s32 0, %v1936
      %v1938 = vrot.slane %v1933, %v1937
      %vm1940 = vcmask 293888
      %v1942 = vsel %vm1940, %v1892, 0
      %v1945 = vsel %vm1940, %v1893, 0
      %v1948 = vsel %vm1940, %v1894, 0
      %v1951 = vsel %vm1940, %v1895, 0
      %v1954 = vsel %vm1940, %v1896, 0
      %v1957 = vsel %vm1940, %v1897, 0
      %v1960 = vsel %vm1940, %v1898, 0
      %v1963 = vsel %vm1940, %v1899, 0
      %v1966 = vsel %vm1940, %v1900, 0
      %v1969 = vsel %vm1940, %v1901, 0
      %v1972 = vsel %vm1940, %v1902, 0
      %v1975 = vsel %vm1940, %v1903, 0
      %v1978 = vsel %vm1940, %v1904, 0
      %v1981 = vsel %vm1940, %v1905, 0
      %v1984 = vsel %vm1940, %v1906, 0
      %v1987 = vsel %vm1940, %v1907, 0
      %v1990 = vsel %vm1940, %v1908, 0
      %v1993 = vsel %vm1940, %v1909, 0
      %v1996 = vsel %vm1940, %v1910, 0
      %v1999 = vsel %vm1940, %v1911, 0
      %v2002 = vsel %vm1940, %v1912, 0
      %v2005 = vsel %vm1940, %v1913, 0
      %v2008 = vsel %vm1940, %v1914, 0
      %v2011 = vsel %vm1940, %v1915, 0
      %v2014 = vsel %vm1940, %v1916, 0
      %v2017 = vsel %vm1940, %v1917, 0
      %v2020 = vsel %vm1940, %v1918, 0
      %v2023 = vsel %vm1940, %v1919, 0
      %v2026 = vsel %vm1940, %v1920, 0
      %v2029 = vsel %vm1940, %v1921, 0
      %v2032 = vsel %vm1940, %v1922, 0
      %v2035 = vsel %vm1940, %v1923, 0
      %v2038 = vsel %vm1940, %v1924, 0
      %v2041 = vsel %vm1940, %v1925, 0
      %v2044 = vsel %vm1940, %v1926, 0
      %v2047 = vsel %vm1940, %v1927, 0
      %vm2049 = vcmask 1043456
      %v2051 = vsel %vm2049, %v1932, 0
      %2053 = vmatprep.subr.mxu0 0.0
      %2054 = vmatpush1.msra.mxu0 %v1928
      %2055 = vmatprep.subr.mxu0 0.0
      %2056 = vmatpush1.msra.mxu0 %v1929
      %2057 = vmatprep.subr.mxu0 0.0
      %2058 = vmatpush1.msra.mxu0 %v1930
      %2059 = vmatprep.subr.mxu0 0.0
      %2060 = vmatpush1.msra.mxu0 %v1931
      %2061 = vmatprep.subr.mxu0 0.0
      %2062 = vmatpush1.msra.mxu0 %v2051
      %2063 = vmatprep.subr.mxu0 0.0
      %2064 = vmatpush1.msra.mxu0 0.0
      %2065 = vmatprep.subr.mxu0 0.0
      %2066 = vmatpush1.msra.mxu0 0.0
      %2067 = vmatprep.subr.mxu0 0.0
      %2068 = vmatpush1.msra.mxu0 0.0
      %2069 = vmatprep.subr.mxu0 0.0
      %2070 = vmatpush1.msra.mxu0 0.0
      %2071 = vmatprep.subr.mxu0 0.0
      %2072 = vmatpush1.msra.mxu0 0.0
      %2073 = vmatprep.subr.mxu0 0.0
      %2074 = vmatpush1.msra.mxu0 0.0
      %2075 = vmatprep.subr.mxu0 0.0
      %2076 = vmatpush1.msra.mxu0 0.0
      %2077 = vmatprep.subr.mxu0 0.0
      %2078 = vmatpush1.msra.mxu0 0.0
      %2079 = vmatprep.subr.mxu0 0.0
      %2080 = vmatpush1.msra.mxu0 0.0
      %2081 = vmatprep.subr.mxu0 0.0
      %2082 = vmatpush1.msra.mxu0 0.0
      %2083 = vmatprep.subr.mxu0 0.0
      %2084 = vmatpush1.msra.mxu0 0.0
      %2085 = vmatprep.subr.mxu0 0.0
      %2086 = vmatpush1.msra.mxu0 0.0
      %2087 = vmatprep.subr.mxu0 0.0
      %2088 = vmatpush1.msra.mxu0 0.0
      %2089 = vmatprep.subr.mxu0 0.0
      %2090 = vmatpush1.msra.mxu0 0.0
      %2091 = vmatprep.subr.mxu0 0.0
      %2092 = vmatpush1.msra.mxu0 0.0
      %2093 = vmatprep.subr.mxu0 0.0
      %2094 = vmatpush1.msra.mxu0 0.0
      %2095 = vmatprep.subr.mxu0 0.0
      %2096 = vmatpush1.msra.mxu0 0.0
      %2097 = vmatprep.subr.mxu0 0.0
      %2098 = vmatpush1.msra.mxu0 0.0
      %2099 = vmatprep.subr.mxu0 0.0
      %2100 = vmatpush1.msra.mxu0 0.0
      %2101 = vmatprep.subr.mxu0 0.0
      %2102 = vmatpush1.msra.mxu0 0.0
      %2103 = vmatprep.subr.mxu0 0.0
      %2104 = vmatpush1.msra.mxu0 0.0
      %2105 = vmatprep.subr.mxu0 0.0
      %2106 = vmatpush1.msra.mxu0 0.0
      %2107 = vmatprep.subr.mxu0 0.0
      %2108 = vmatpush1.msra.mxu0 0.0
      %2109 = vmatprep.subr.mxu0 0.0
      %2110 = vmatpush1.msra.mxu0 0.0
      %2111 = vmatprep.subr.mxu0 0.0
      %2112 = vmatpush1.msra.mxu0 0.0
      %2113 = vmatprep.subr.mxu0 0.0
      %2114 = vmatpush1.msra.mxu0 0.0
      %2115 = vmatprep.subr.mxu0 0.0
      %2116 = vmatpush1.msra.mxu0 0.0
      %2117 = vmatprep.mubr.f32.mxu0 0.0
      %2118 = vmatmul.mubr.f32.gmra.mrb[0].mxu0 %v1942
      %v2119 = vpop.f32.mrb[0].mxu0
      %v2120 = vadd.f32 %v1938, %v2119
      %v2121 = vpop.f32.mrb[0].mxu0
      %2122 = vmatprep.mubr.f32.mxu0 0.0
      %2123 = vmatmul.mubr.f32.gmra.mrb[0].mxu0 %v1945
      %v2124 = vpop.f32.mrb[0].mxu0
      %v2125 = vadd.f32 %v1938, %v2124
      %v2126 = vpop.f32.mrb[0].mxu0
      %2127 = vmatprep.mubr.f32.mxu0 0.0
      %2128 = vmatmul.mubr.f32.gmra.mrb[0].mxu0 %v1948
      %v2129 = vpop.f32.mrb[0].mxu0
      %v2130 = vadd.f32 %v1938, %v2129
      %v2131 = vpop.f32.mrb[0].mxu0
      %2132 = vmatprep.mubr.f32.mxu0 0.0
      %2133 = vmatmul.mubr.f32.gmra.mrb[0].mxu0 %v1951
      %v2134 = vpop.f32.mrb[0].mxu0
      %v2135 = vadd.f32 %v1938, %v2134
      %v2136 = vpop.f32.mrb[0].mxu0
      %2137 = vmatprep.mubr.f32.mxu0 0.0
      %2138 = vmatmul.mubr.f32.gmra.mrb[0].mxu0 %v1954
      %v2139 = vpop.f32.mrb[0].mxu0
      %v2140 = vadd.f32 %v1938, %v2139
      %v2141 = vpop.f32.mrb[0].mxu0
      %2142 = vmatprep.mubr.f32.mxu0 0.0
      %2143 = vmatmul.mubr.f32.gmra.mrb[0].mxu0 %v1957
      %v2144 = vpop.f32.mrb[0].mxu0
      %v2145 = vadd.f32 %v1938, %v2144
      %v2146 = vpop.f32.mrb[0].mxu0
      %2147 = vmatprep.mubr.f32.mxu0 0.0
      %2148 = vmatmul.mubr.f32.gmra.mrb[0].mxu0 %v1960
      %v2149 = vpop.f32.mrb[0].mxu0
      %v2150 = vadd.f32 %v1938, %v2149
      %v2151 = vpop.f32.mrb[0].mxu0
      %2152 = vmatprep.mubr.f32.mxu0 0.0
      %2153 = vmatmul.mubr.f32.gmra.mrb[0].mxu0 %v1963
      %v2154 = vpop.f32.mrb[0].mxu0
      %v2155 = vadd.f32 %v1938, %v2154
      %v2156 = vpop.f32.mrb[0].mxu0
      %2157 = vmatprep.mubr.f32.mxu0 0.0
      %2158 = vmatmul.mubr.f32.gmra.mrb[0].mxu0 %v1966
      %v2159 = vpop.f32.mrb[0].mxu0
      %v2160 = vadd.f32 %v1938, %v2159
      %v2161 = vpop.f32.mrb[0].mxu0
      %2162 = vmatprep.mubr.f32.mxu0 0.0
      %2163 = vmatmul.mubr.f32.gmra.mrb[0].mxu0 %v1969
      %v2164 = vpop.f32.mrb[0].mxu0
      %v2165 = vadd.f32 %v1938, %v2164
      %v2166 = vpop.f32.mrb[0].mxu0
      %2167 = vmatprep.mubr.f32.mxu0 0.0
      %2168 = vmatmul.mubr.f32.gmra.mrb[0].mxu0 %v1972
      %v2169 = vpop.f32.mrb[0].mxu0
      %v2170 = vadd.f32 %v1938, %v2169
      %v2171 = vpop.f32.mrb[0].mxu0
      %2172 = vmatprep.mubr.f32.mxu0 0.0
      %2173 = vmatmul.mubr.f32.gmra.mrb[0].mxu0 %v1975
      %v2174 = vpop.f32.mrb[0].mxu0
      %v2175 = vadd.f32 %v1938, %v2174
      %v2176 = vpop.f32.mrb[0].mxu0
      %2177 = vmatprep.mubr.f32.mxu0 0.0
      %2178 = vmatmul.mubr.f32.gmra.mrb[0].mxu0 %v1978
      %v2179 = vpop.f32.mrb[0].mxu0
      %v2180 = vadd.f32 %v1938, %v2179
      %v2181 = vpop.f32.mrb[0].mxu0
      %2182 = vmatprep.mubr.f32.mxu0 0.0
      %2183 = vmatmul.mubr.f32.gmra.mrb[0].mxu0 %v1981
      %v2184 = vpop.f32.mrb[0].mxu0
      %v2185 = vadd.f32 %v1938, %v2184
      %v2186 = vpop.f32.mrb[0].mxu0
      %2187 = vmatprep.mubr.f32.mxu0 0.0
      %2188 = vmatmul.mubr.f32.gmra.mrb[0].mxu0 %v1984
      %v2189 = vpop.f32.mrb[0].mxu0
      %v2190 = vadd.f32 %v1938, %v2189
      %v2191 = vpop.f32.mrb[0].mxu0
      %2192 = vmatprep.mubr.f32.mxu0 0.0
      %2193 = vmatmul.mubr.f32.gmra.mrb[0].mxu0 %v1987
      %v2194 = vpop.f32.mrb[0].mxu0
      %v2195 = vadd.f32 %v1938, %v2194
      %v2196 = vpop.f32.mrb[0].mxu0
      %2197 = vmatprep.mubr.f32.mxu0 0.0
      %2198 = vmatmul.mubr.f32.gmra.mrb[0].mxu0 %v1990
      %v2199 = vpop.f32.mrb[0].mxu0
      %v2200 = vadd.f32 %v1938, %v2199
      %v2201 = vpop.f32.mrb[0].mxu0
      %2202 = vmatprep.mubr.f32.mxu0 0.0
      %2203 = vmatmul.mubr.f32.gmra.mrb[0].mxu0 %v1993
      %v2204 = vpop.f32.mrb[0].mxu0
      %v2205 = vadd.f32 %v1938, %v2204
      %v2206 = vpop.f32.mrb[0].mxu0
      %2207 = vmatprep.mubr.f32.mxu0 0.0
      %2208 = vmatmul.mubr.f32.gmra.mrb[0].mxu0 %v1996
      %v2209 = vpop.f32.mrb[0].mxu0
      %v2210 = vadd.f32 %v1938, %v2209
      %v2211 = vpop.f32.mrb[0].mxu0
      %2212 = vmatprep.mubr.f32.mxu0 0.0
      %2213 = vmatmul.mubr.f32.gmra.mrb[0].mxu0 %v1999
      %v2214 = vpop.f32.mrb[0].mxu0
      %v2215 = vadd.f32 %v1938, %v2214
      %v2216 = vpop.f32.mrb[0].mxu0
      %2217 = vmatprep.mubr.f32.mxu0 0.0
      %2218 = vmatmul.mubr.f32.gmra.mrb[0].mxu0 %v2002
      %v2219 = vpop.f32.mrb[0].mxu0
      %v2220 = vadd.f32 %v1938, %v2219
      %v2221 = vpop.f32.mrb[0].mxu0
      %2222 = vmatprep.mubr.f32.mxu0 0.0
      %2223 = vmatmul.mubr.f32.gmra.mrb[0].mxu0 %v2005
      %v2224 = vpop.f32.mrb[0].mxu0
      %v2225 = vadd.f32 %v1938, %v2224
      %v2226 = vpop.f32.mrb[0].mxu0
      %2227 = vmatprep.mubr.f32.mxu0 0.0
      %2228 = vmatmul.mubr.f32.gmra.mrb[0].mxu0 %v2008
      %v2229 = vpop.f32.mrb[0].mxu0
      %v2230 = vadd.f32 %v1938, %v2229
      %v2231 = vpop.f32.mrb[0].mxu0
      %2232 = vmatprep.mubr.f32.mxu0 0.0
      %2233 = vmatmul.mubr.f32.gmra.mrb[0].mxu0 %v2011
      %v2234 = vpop.f32.mrb[0].mxu0
      %v2235 = vadd.f32 %v1938, %v2234
      %v2236 = vpop.f32.mrb[0].mxu0
      %2237 = vmatprep.mubr.f32.mxu0 0.0
      %2238 = vmatmul.mubr.f32.gmra.mrb[0].mxu0 %v2014
      %v2239 = vpop.f32.mrb[0].mxu0
      %v2240 = vadd.f32 %v1938, %v2239
      %v2241 = vpop.f32.mrb[0].mxu0
      %2242 = vmatprep.mubr.f32.mxu0 0.0
      %2243 = vmatmul.mubr.f32.gmra.mrb[0].mxu0 %v2017
      %v2244 = vpop.f32.mrb[0].mxu0
      %v2245 = vadd.f32 %v1938, %v2244
      %v2246 = vpop.f32.mrb[0].mxu0
      %2247 = vmatprep.mubr.f32.mxu0 0.0
      %2248 = vmatmul.mubr.f32.gmra.mrb[0].mxu0 %v2020
      %v2249 = vpop.f32.mrb[0].mxu0
      %v2250 = vadd.f32 %v1938, %v2249
      %v2251 = vpop.f32.mrb[0].mxu0
      %2252 = vmatprep.mubr.f32.mxu0 0.0
      %2253 = vmatmul.mubr.f32.gmra.mrb[0].mxu0 %v2023
      %v2254 = vpop.f32.mrb[0].mxu0
      %v2255 = vadd.f32 %v1938, %v2254
      %v2256 = vpop.f32.mrb[0].mxu0
      %2257 = vmatprep.mubr.f32.mxu0 0.0
      %2258 = vmatmul.mubr.f32.gmra.mrb[0].mxu0 %v2026
      %v2259 = vpop.f32.mrb[0].mxu0
      %v2260 = vadd.f32 %v1938, %v2259
      %v2261 = vpop.f32.mrb[0].mxu0
      %2262 = vmatprep.mubr.f32.mxu0 0.0
      %2263 = vmatmul.mubr.f32.gmra.mrb[0].mxu0 %v2029
      %v2264 = vpop.f32.mrb[0].mxu0
      %v2265 = vadd.f32 %v1938, %v2264
      %v2266 = vpop.f32.mrb[0].mxu0
      %2267 = vmatprep.mubr.f32.mxu0 0.0
      %2268 = vmatmul.mubr.f32.gmra.mrb[0].mxu0 %v2032
      %v2269 = vpop.f32.mrb[0].mxu0
      %v2270 = vadd.f32 %v1938, %v2269
      %v2271 = vpop.f32.mrb[0].mxu0
      %2272 = vmatprep.mubr.f32.mxu0 0.0
      %2273 = vmatmul.mubr.f32.gmra.mrb[0].mxu0 %v2035
      %v2274 = vpop.f32.mrb[0].mxu0
      %v2275 = vadd.f32 %v1938, %v2274
      %v2276 = vpop.f32.mrb[0].mxu0
      %2277 = vmatprep.mubr.f32.mxu0 0.0
      %2278 = vmatmul.mubr.f32.gmra.mrb[0].mxu0 %v2038
      %v2279 = vpop.f32.mrb[0].mxu0
      %v2280 = vadd.f32 %v1938, %v2279
      %v2281 = vpop.f32.mrb[0].mxu0
      %2282 = vmatprep.mubr.f32.mxu0 0.0
      %2283 = vmatmul.mubr.f32.gmra.mrb[0].mxu0 %v2041
      %v2284 = vpop.f32.mrb[0].mxu0
      %v2285 = vadd.f32 %v1938, %v2284
      %v2286 = vpop.f32.mrb[0].mxu0
      %2287 = vmatprep.mubr.f32.mxu0 0.0
      %2288 = vmatmul.mubr.f32.gmra.mrb[0].mxu0 %v2044
      %v2289 = vpop.f32.mrb[0].mxu0
      %v2290 = vadd.f32 %v1938, %v2289
      %v2291 = vpop.f32.mrb[0].mxu0
      %2292 = vmatprep.mubr.f32.mxu0 0.0
      %2293 = vmatmul.mubr.f32.gmra.mrb[0].mxu0 %v2047
      %v2294 = vpop.f32.mrb[0].mxu0
      %v2295 = vadd.f32 %v1938, %v2294
      %v2296 = vpop.f32.mrb[0].mxu0
      %2297 = vdwg.mxu0
      %v2298 = vmax.f32 %v2120, 0.0
      %v2299 = vmax.f32 %v2125, 0.0
      %v2300 = vmax.f32 %v2130, 0.0
      %v2301 = vmax.f32 %v2135, 0.0
      %v2302 = vmax.f32 %v2140, 0.0
      %v2303 = vmax.f32 %v2145, 0.0
      %v2304 = vmax.f32 %v2150, 0.0
      %v2305 = vmax.f32 %v2155, 0.0
      %v2306 = vmax.f32 %v2160, 0.0
      %v2307 = vmax.f32 %v2165, 0.0
      %v2308 = vmax.f32 %v2170, 0.0
      %v2309 = vmax.f32 %v2175, 0.0
      %v2310 = vmax.f32 %v2180, 0.0
      %v2311 = vmax.f32 %v2185, 0.0
      %v2312 = vmax.f32 %v2190, 0.0
      %v2313 = vmax.f32 %v2195, 0.0
      %v2314 = vmax.f32 %v2200, 0.0
      %v2315 = vmax.f32 %v2205, 0.0
      %v2316 = vmax.f32 %v2210, 0.0
      %v2317 = vmax.f32 %v2215, 0.0
      %v2318 = vmax.f32 %v2220, 0.0
      %v2319 = vmax.f32 %v2225, 0.0
      %v2320 = vmax.f32 %v2230, 0.0
      %v2321 = vmax.f32 %v2235, 0.0
      %v2322 = vmax.f32 %v2240, 0.0
      %v2323 = vmax.f32 %v2245, 0.0
      %v2324 = vmax.f32 %v2250, 0.0
      %v2325 = vmax.f32 %v2255, 0.0
      %v2326 = vmax.f32 %v2260, 0.0
      %v2327 = vmax.f32 %v2265, 0.0
      %v2328 = vmax.f32 %v2270, 0.0
      %v2329 = vmax.f32 %v2275, 0.0
      %v2330 = vmax.f32 %v2280, 0.0
      %v2331 = vmax.f32 %v2285, 0.0
      %v2332 = vmax.f32 %v2290, 0.0
      %v2333 = vmax.f32 %v2295, 0.0
      %v2334 = vld [vmem:[%s1] sm:$0xff]
      %v2335 = vld [vmem:[%s1 + $0x8] sm:$0xff]
      %v2336 = vld [vmem:[%s1 + $0x10] sm:$0xff]
      %v2337 = vld [vmem:[%s1 + $0x18] sm:$0xff]
      %v2338 = vld [vmem:[%s1 + $0x20] sm:$0xff]
      %v2339 = vld [vmem:[%s1 + $0x28] sm:$0xff]
      %v2340 = vld [vmem:[%s1 + $0x30] sm:$0xff]
      %v2341 = vld [vmem:[%s1 + $0x38] sm:$0xff]
      %v2342 = vld [vmem:[%s1 + $0x40] sm:$0xff]
      %v2343 = vld [vmem:[%s1 + $0x48] sm:$0xff]
      %v2344 = vld [vmem:[%s1 + $0x50] sm:$0xff]
      %v2345 = vld [vmem:[%s1 + $0x58] sm:$0xff]
      %v2346 = vld [vmem:[%s1 + $0x60] sm:$0xff]
      %v2347 = vld [vmem:[%s1 + $0x68] sm:$0xff]
      %v2348 = vld [vmem:[%s1 + $0x70] sm:$0xff]
      %v2349 = vld [vmem:[%s1 + $0x78] sm:$0xff]
      %v2350 = vld [vmem:[%s1 + $0x80] sm:$0xff]
      %v2351 = vld [vmem:[%s1 + $0x88] sm:$0xff]
      %v2352 = vld [vmem:[%s1 + $0x90] sm:$0xff]
      %v2353 = vld [vmem:[%s1 + $0x98] sm:$0xff]
      %v2354 = vld [vmem:[%s1 + $0xa0] sm:$0xff]
      %v2355 = vld [vmem:[%s1 + $0xa8] sm:$0xff]
      %v2356 = vld [vmem:[%s1 + $0xb0] sm:$0xff]
      %v2357 = vld [vmem:[%s1 + $0xb8] sm:$0xff]
      %v2358 = vld [vmem:[%s1 + $0xc0] sm:$0xff]
      %v2359 = vld [vmem:[%s1 + $0xc8] sm:$0xff]
      %v2360 = vld [vmem:[%s1 + $0xd0] sm:$0xff]
      %v2361 = vld [vmem:[%s1 + $0xd8] sm:$0xff]
      %v2362 = vld [vmem:[%s1 + $0xe0] sm:$0xff]
      %v2363 = vld [vmem:[%s1 + $0xe8] sm:$0xff]
      %v2364 = vld [vmem:[%s1 + $0xf0] sm:$0xff]
      %v2365 = vld [vmem:[%s1 + $0xf8] sm:$0xff]
      %v2366 = vld [vmem:[%s1 + $0x100] sm:$0xff]
      %v2367 = vld [vmem:[%s1 + $0x108] sm:$0xff]
      %v2368 = vld [vmem:[%s1 + $0x110] sm:$0xff]
      %v2369 = vld [vmem:[%s1 + $0x118] sm:$0xff]
      %2371 = vset.pattern.permute.xlu0 0
      %2372 = vperm.xlu0 %2371, %v2334
      %v2373 = vpop.permute.xlu0 %2372
      %2376 = vset.pattern.permute.xlu0 0
      %2377 = vperm.xlu0 %2376, %v2335
      %v2378 = vpop.permute.xlu0 %2377
      %2381 = vset.pattern.permute.xlu0 0
      %2382 = vperm.xlu0 %2381, %v2336
      %v2383 = vpop.permute.xlu0 %2382
      %2386 = vset.pattern.permute.xlu0 0
      %2387 = vperm.xlu0 %2386, %v2337
      %v2388 = vpop.permute.xlu0 %2387
      %2391 = vset.pattern.permute.xlu0 0
      %2392 = vperm.xlu0 %2391, %v2338
      %v2393 = vpop.permute.xlu0 %2392
      %2396 = vset.pattern.permute.xlu0 0
      %2397 = vperm.xlu0 %2396, %v2339
      %v2398 = vpop.permute.xlu0 %2397
      %2401 = vset.pattern.permute.xlu0 0
      %2402 = vperm.xlu0 %2401, %v2340
      %v2403 = vpop.permute.xlu0 %2402
      %2406 = vset.pattern.permute.xlu0 0
      %2407 = vperm.xlu0 %2406, %v2341
      %v2408 = vpop.permute.xlu0 %2407
      %2411 = vset.pattern.permute.xlu0 0
      %2412 = vperm.xlu0 %2411, %v2342
      %v2413 = vpop.permute.xlu0 %2412
      %2416 = vset.pattern.permute.xlu0 0
      %2417 = vperm.xlu0 %2416, %v2343
      %v2418 = vpop.permute.xlu0 %2417
      %2421 = vset.pattern.permute.xlu0 0
      %2422 = vperm.xlu0 %2421, %v2344
      %v2423 = vpop.permute.xlu0 %2422
      %2426 = vset.pattern.permute.xlu0 0
      %2427 = vperm.xlu0 %2426, %v2345
      %v2428 = vpop.permute.xlu0 %2427
      %2431 = vset.pattern.permute.xlu0 0
      %2432 = vperm.xlu0 %2431, %v2346
      %v2433 = vpop.permute.xlu0 %2432
      %2436 = vset.pattern.permute.xlu0 0
      %2437 = vperm.xlu0 %2436, %v2347
      %v2438 = vpop.permute.xlu0 %2437
      %2441 = vset.pattern.permute.xlu0 0
      %2442 = vperm.xlu0 %2441, %v2348
      %v2443 = vpop.permute.xlu0 %2442
      %2446 = vset.pattern.permute.xlu0 0
      %2447 = vperm.xlu0 %2446, %v2349
      %v2448 = vpop.permute.xlu0 %2447
      %2451 = vset.pattern.permute.xlu0 0
      %2452 = vperm.xlu0 %2451, %v2350
      %v2453 = vpop.permute.xlu0 %2452
      %2456 = vset.pattern.permute.xlu0 0
      %2457 = vperm.xlu0 %2456, %v2351
      %v2458 = vpop.permute.xlu0 %2457
      %2461 = vset.pattern.permute.xlu0 0
      %2462 = vperm.xlu0 %2461, %v2352
      %v2463 = vpop.permute.xlu0 %2462
      %2466 = vset.pattern.permute.xlu0 0
      %2467 = vperm.xlu0 %2466, %v2353
      %v2468 = vpop.permute.xlu0 %2467
      %2471 = vset.pattern.permute.xlu0 0
      %2472 = vperm.xlu0 %2471, %v2354
      %v2473 = vpop.permute.xlu0 %2472
      %2476 = vset.pattern.permute.xlu0 0
      %2477 = vperm.xlu0 %2476, %v2355
      %v2478 = vpop.permute.xlu0 %2477
      %2481 = vset.pattern.permute.xlu0 0
      %2482 = vperm.xlu0 %2481, %v2356
      %v2483 = vpop.permute.xlu0 %2482
      %2486 = vset.pattern.permute.xlu0 0
      %2487 = vperm.xlu0 %2486, %v2357
      %v2488 = vpop.permute.xlu0 %2487
      %2491 = vset.pattern.permute.xlu0 0
      %2492 = vperm.xlu0 %2491, %v2358
      %v2493 = vpop.permute.xlu0 %2492
      %2496 = vset.pattern.permute.xlu0 0
      %2497 = vperm.xlu0 %2496, %v2359
      %v2498 = vpop.permute.xlu0 %2497
      %2501 = vset.pattern.permute.xlu0 0
      %2502 = vperm.xlu0 %2501, %v2360
      %v2503 = vpop.permute.xlu0 %2502
      %2506 = vset.pattern.permute.xlu0 0
      %2507 = vperm.xlu0 %2506, %v2361
      %v2508 = vpop.permute.xlu0 %2507
      %2511 = vset.pattern.permute.xlu0 0
      %2512 = vperm.xlu0 %2511, %v2362
      %v2513 = vpop.permute.xlu0 %2512
      %2516 = vset.pattern.permute.xlu0 0
      %2517 = vperm.xlu0 %2516, %v2363
      %v2518 = vpop.permute.xlu0 %2517
      %2521 = vset.pattern.permute.xlu0 0
      %2522 = vperm.xlu0 %2521, %v2364
      %v2523 = vpop.permute.xlu0 %2522
      %2526 = vset.pattern.permute.xlu0 0
      %2527 = vperm.xlu0 %2526, %v2365
      %v2528 = vpop.permute.xlu0 %2527
      %2531 = vset.pattern.permute.xlu0 0
      %2532 = vperm.xlu0 %2531, %v2366
      %v2533 = vpop.permute.xlu0 %2532
      %2536 = vset.pattern.permute.xlu0 0
      %2537 = vperm.xlu0 %2536, %v2367
      %v2538 = vpop.permute.xlu0 %2537
      %2541 = vset.pattern.permute.xlu0 0
      %2542 = vperm.xlu0 %2541, %v2368
      %v2543 = vpop.permute.xlu0 %2542
      %2546 = vset.pattern.permute.xlu0 0
      %2547 = vperm.xlu0 %2546, %v2369
      %v2548 = vpop.permute.xlu0 %2547
      %v2550 = vmul.f32 %v2298, %v2373
      %v2551 = vmul.f32 %v2299, %v2378
      %v2552 = vmul.f32 %v2300, %v2383
      %v2553 = vmul.f32 %v2301, %v2388
      %v2554 = vmul.f32 %v2302, %v2393
      %v2555 = vmul.f32 %v2303, %v2398
      %v2556 = vmul.f32 %v2304, %v2403
      %v2557 = vmul.f32 %v2305, %v2408
      %v2558 = vmul.f32 %v2306, %v2413
      %v2559 = vmul.f32 %v2307, %v2418
      %v2560 = vmul.f32 %v2308, %v2423
      %v2561 = vmul.f32 %v2309, %v2428
      %v2562 = vmul.f32 %v2310, %v2433
      %v2563 = vmul.f32 %v2311, %v2438
      %v2564 = vmul.f32 %v2312, %v2443
      %v2565 = vmul.f32 %v2313, %v2448
      %v2566 = vmul.f32 %v2314, %v2453
      %v2567 = vmul.f32 %v2315, %v2458
      %v2568 = vmul.f32 %v2316, %v2463
      %v2569 = vmul.f32 %v2317, %v2468
      %v2570 = vmul.f32 %v2318, %v2473
      %v2571 = vmul.f32 %v2319, %v2478
      %v2572 = vmul.f32 %v2320, %v2483
      %v2573 = vmul.f32 %v2321, %v2488
      %v2574 = vmul.f32 %v2322, %v2493
      %v2575 = vmul.f32 %v2323, %v2498
      %v2576 = vmul.f32 %v2324, %v2503
      %v2577 = vmul.f32 %v2325, %v2508
      %v2578 = vmul.f32 %v2326, %v2513
      %v2579 = vmul.f32 %v2327, %v2518
      %v2580 = vmul.f32 %v2328, %v2523
      %v2581 = vmul.f32 %v2329, %v2528
      %v2582 = vmul.f32 %v2330, %v2533
      %v2583 = vmul.f32 %v2331, %v2538
      %v2584 = vmul.f32 %v2332, %v2543
      %v2585 = vmul.f32 %v2333, %v2548
      %2586 = vst.msk [vmem:[#allocation2] sm:$0xff] %vm1669, 0.0
      %2587 = vst.msk [vmem:[#allocation2 + $0x8] sm:$0xff] %vm1669, 0.0
      %vm2588 = vcmask 59392
      %2589 = vst.msk [vmem:[#allocation2 + $0x10] sm:$0x7] %vm2588, 0.0
      %2590 = vst.msk [vmem:[#allocation2 + $0x133] sm:$0xff] %vm1669, 0.0
      %2591 = vst.msk [vmem:[#allocation2 + $0x13b] sm:$0xff] %vm1669, 0.0
      %2592 = vst.msk [vmem:[#allocation2 + $0x143] sm:$0x7] %vm2588, 0.0
      %2593 = vst.msk [vmem:[#allocation2 + $0x13] sm:$0xff] %vm1669, %v2550
      %2594 = vst.msk [vmem:[#allocation2 + $0x1b] sm:$0xff] %vm1669, %v2551
      %2595 = vst.msk [vmem:[#allocation2 + $0x23] sm:$0xff] %vm1669, %v2552
      %2596 = vst.msk [vmem:[#allocation2 + $0x2b] sm:$0xff] %vm1669, %v2553
      %2597 = vst.msk [vmem:[#allocation2 + $0x33] sm:$0xff] %vm1669, %v2554
      %2598 = vst.msk [vmem:[#allocation2 + $0x3b] sm:$0xff] %vm1669, %v2555
      %2599 = vst.msk [vmem:[#allocation2 + $0x43] sm:$0xff] %vm1669, %v2556
      %2600 = vst.msk [vmem:[#allocation2 + $0x4b] sm:$0xff] %vm1669, %v2557
      %2601 = vst.msk [vmem:[#allocation2 + $0x53] sm:$0xff] %vm1669, %v2558
      %2602 = vst.msk [vmem:[#allocation2 + $0x5b] sm:$0xff] %vm1669, %v2559
      %2603 = vst.msk [vmem:[#allocation2 + $0x63] sm:$0xff] %vm1669, %v2560
      %2604 = vst.msk [vmem:[#allocation2 + $0x6b] sm:$0xff] %vm1669, %v2561
      %2605 = vst.msk [vmem:[#allocation2 + $0x73] sm:$0xff] %vm1669, %v2562
      %2606 = vst.msk [vmem:[#allocation2 + $0x7b] sm:$0xff] %vm1669, %v2563
      %2607 = vst.msk [vmem:[#allocation2 + $0x83] sm:$0xff] %vm1669, %v2564
      %2608 = vst.msk [vmem:[#allocation2 + $0x8b] sm:$0xff] %vm1669, %v2565
      %2609 = vst.msk [vmem:[#allocation2 + $0x93] sm:$0xff] %vm1669, %v2566
      %2610 = vst.msk [vmem:[#allocation2 + $0x9b] sm:$0xff] %vm1669, %v2567
      %2611 = vst.msk [vmem:[#allocation2 + $0xa3] sm:$0xff] %vm1669, %v2568
      %2612 = vst.msk [vmem:[#allocation2 + $0xab] sm:$0xff] %vm1669, %v2569
      %2613 = vst.msk [vmem:[#allocation2 + $0xb3] sm:$0xff] %vm1669, %v2570
      %2614 = vst.msk [vmem:[#allocation2 + $0xbb] sm:$0xff] %vm1669, %v2571
      %2615 = vst.msk [vmem:[#allocation2 + $0xc3] sm:$0xff] %vm1669, %v2572
      %2616 = vst.msk [vmem:[#allocation2 + $0xcb] sm:$0xff] %vm1669, %v2573
      %2617 = vst.msk [vmem:[#allocation2 + $0xd3] sm:$0xff] %vm1669, %v2574
      %2618 = vst.msk [vmem:[#allocation2 + $0xdb] sm:$0xff] %vm1669, %v2575
      %2619 = vst.msk [vmem:[#allocation2 + $0xe3] sm:$0xff] %vm1669, %v2576
      %2620 = vst.msk [vmem:[#allocation2 + $0xeb] sm:$0xff] %vm1669, %v2577
      %2621 = vst.msk [vmem:[#allocation2 + $0xf3] sm:$0xff] %vm1669, %v2578
      %2622 = vst.msk [vmem:[#allocation2 + $0xfb] sm:$0xff] %vm1669, %v2579
      %2623 = vst.msk [vmem:[#allocation2 + $0x103] sm:$0xff] %vm1669, %v2580
      %2624 = vst.msk [vmem:[#allocation2 + $0x10b] sm:$0xff] %vm1669, %v2581
      %2625 = vst.msk [vmem:[#allocation2 + $0x113] sm:$0xff] %vm1669, %v2582
      %2626 = vst.msk [vmem:[#allocation2 + $0x11b] sm:$0xff] %vm1669, %v2583
      %2627 = vst.msk [vmem:[#allocation2 + $0x123] sm:$0xff] %vm1669, %v2584
      %2628 = vst.msk [vmem:[#allocation2 + $0x12b] sm:$0xff] %vm1669, %v2585
      %v2629 = vld [vmem:[#allocation2] sm:$0xff]
      %v2630 = vld [vmem:[#allocation2 + $0x8] sm:$0xff]
      %v2631 = vld [vmem:[#allocation2 + $0x10] sm:$0xff]
      %v2632 = vld [vmem:[#allocation2 + $0x18] sm:$0xff]
      %v2633 = vld [vmem:[#allocation2 + $0x20] sm:$0xff]
      %v2634 = vld [vmem:[#allocation2 + $0x28] sm:$0xff]
      %v2635 = vld [vmem:[#allocation2 + $0x30] sm:$0xff]
      %v2636 = vld [vmem:[#allocation2 + $0x38] sm:$0xff]
      %v2637 = vld [vmem:[#allocation2 + $0x40] sm:$0xff]
      %v2638 = vld [vmem:[#allocation2 + $0x48] sm:$0xff]
      %v2639 = vld [vmem:[#allocation2 + $0x50] sm:$0xff]
      %v2640 = vld [vmem:[#allocation2 + $0x58] sm:$0xff]
      %v2641 = vld [vmem:[#allocation2 + $0x60] sm:$0xff]
      %v2642 = vld [vmem:[#allocation2 + $0x68] sm:$0xff]
      %v2643 = vld [vmem:[#allocation2 + $0x70] sm:$0xff]
      %v2644 = vld [vmem:[#allocation2 + $0x78] sm:$0xff]
      %v2645 = vld [vmem:[#allocation2 + $0x80] sm:$0xff]
      %v2646 = vld [vmem:[#allocation2 + $0x88] sm:$0xff]
      %v2647 = vld [vmem:[#allocation2 + $0x90] sm:$0xff]
      %v2648 = vld [vmem:[#allocation2 + $0x98] sm:$0xff]
      %v2649 = vld [vmem:[#allocation2 + $0xa0] sm:$0xff]
      %v2650 = vld [vmem:[#allocation2 + $0xa8] sm:$0xff]
      %v2651 = vld [vmem:[#allocation2 + $0xb0] sm:$0xff]
      %v2652 = vld [vmem:[#allocation2 + $0xb8] sm:$0xff]
      %v2653 = vld [vmem:[#allocation2 + $0xc0] sm:$0xff]
      %v2654 = vld [vmem:[#allocation2 + $0xc8] sm:$0xff]
      %v2655 = vld [vmem:[#allocation2 + $0xd0] sm:$0xff]
      %v2656 = vld [vmem:[#allocation2 + $0xd8] sm:$0xff]
      %v2657 = vld [vmem:[#allocation2 + $0xe0] sm:$0xff]
      %v2658 = vld [vmem:[#allocation2 + $0xe8] sm:$0xff]
      %v2659 = vld [vmem:[#allocation2 + $0xf0] sm:$0xff]
      %v2660 = vld [vmem:[#allocation2 + $0xf8] sm:$0xff]
      %v2661 = vld [vmem:[#allocation2 + $0x100] sm:$0xff]
      %v2662 = vld [vmem:[#allocation2 + $0x108] sm:$0xff]
      %v2663 = vld [vmem:[#allocation2 + $0x110] sm:$0xff]
      %v2664 = vld [vmem:[#allocation2 + $0x118] sm:$0xff]
      %v2665 = vld [vmem:[#allocation2 + $0x1] sm:$0xff]
      %v2666 = vld [vmem:[#allocation2 + $0x9] sm:$0xff]
      %v2667 = vld [vmem:[#allocation2 + $0x11] sm:$0xff]
      %v2668 = vld [vmem:[#allocation2 + $0x19] sm:$0xff]
      %v2669 = vld [vmem:[#allocation2 + $0x21] sm:$0xff]
      %v2670 = vld [vmem:[#allocation2 + $0x29] sm:$0xff]
      %v2671 = vld [vmem:[#allocation2 + $0x31] sm:$0xff]
      %v2672 = vld [vmem:[#allocation2 + $0x39] sm:$0xff]
      %v2673 = vld [vmem:[#allocation2 + $0x41] sm:$0xff]
      %v2674 = vld [vmem:[#allocation2 + $0x49] sm:$0xff]
      %v2675 = vld [vmem:[#allocation2 + $0x51] sm:$0xff]
      %v2676 = vld [vmem:[#allocation2 + $0x59] sm:$0xff]
      %v2677 = vld [vmem:[#allocation2 + $0x61] sm:$0xff]
      %v2678 = vld [vmem:[#allocation2 + $0x69] sm:$0xff]
      %v2679 = vld [vmem:[#allocation2 + $0x71] sm:$0xff]
      %v2680 = vld [vmem:[#allocation2 + $0x79] sm:$0xff]
      %v2681 = vld [vmem:[#allocation2 + $0x81] sm:$0xff]
      %v2682 = vld [vmem:[#allocation2 + $0x89] sm:$0xff]
      %v2683 = vld [vmem:[#allocation2 + $0x91] sm:$0xff]
      %v2684 = vld [vmem:[#allocation2 + $0x99] sm:$0xff]
      %v2685 = vld [vmem:[#allocation2 + $0xa1] sm:$0xff]
      %v2686 = vld [vmem:[#allocation2 + $0xa9] sm:$0xff]
      %v2687 = vld [vmem:[#allocation2 + $0xb1] sm:$0xff]
      %v2688 = vld [vmem:[#allocation2 + $0xb9] sm:$0xff]
      %v2689 = vld [vmem:[#allocation2 + $0xc1] sm:$0xff]
      %v2690 = vld [vmem:[#allocation2 + $0xc9] sm:$0xff]
      %v2691 = vld [vmem:[#allocation2 + $0xd1] sm:$0xff]
      %v2692 = vld [vmem:[#allocation2 + $0xd9] sm:$0xff]
      %v2693 = vld [vmem:[#allocation2 + $0xe1] sm:$0xff]
      %v2694 = vld [vmem:[#allocation2 + $0xe9] sm:$0xff]
      %v2695 = vld [vmem:[#allocation2 + $0xf1] sm:$0xff]
      %v2696 = vld [vmem:[#allocation2 + $0xf9] sm:$0xff]
      %v2697 = vld [vmem:[#allocation2 + $0x101] sm:$0xff]
      %v2698 = vld [vmem:[#allocation2 + $0x109] sm:$0xff]
      %v2699 = vld [vmem:[#allocation2 + $0x111] sm:$0xff]
      %v2700 = vld [vmem:[#allocation2 + $0x119] sm:$0xff]
      %v2701 = vld [vmem:[#allocation2 + $0x2] sm:$0xff]
      %v2702 = vld [vmem:[#allocation2 + $0xa] sm:$0xff]
      %v2703 = vld [vmem:[#allocation2 + $0x12] sm:$0xff]
      %v2704 = vld [vmem:[#allocation2 + $0x1a] sm:$0xff]
      %v2705 = vld [vmem:[#allocation2 + $0x22] sm:$0xff]
      %v2706 = vld [vmem:[#allocation2 + $0x2a] sm:$0xff]
      %v2707 = vld [vmem:[#allocation2 + $0x32] sm:$0xff]
      %v2708 = vld [vmem:[#allocation2 + $0x3a] sm:$0xff]
      %v2709 = vld [vmem:[#allocation2 + $0x42] sm:$0xff]
      %v2710 = vld [vmem:[#allocation2 + $0x4a] sm:$0xff]
      %v2711 = vld [vmem:[#allocation2 + $0x52] sm:$0xff]
      %v2712 = vld [vmem:[#allocation2 + $0x5a] sm:$0xff]
      %v2713 = vld [vmem:[#allocation2 + $0x62] sm:$0xff]
      %v2714 = vld [vmem:[#allocation2 + $0x6a] sm:$0xff]
      %v2715 = vld [vmem:[#allocation2 + $0x72] sm:$0xff]
      %v2716 = vld [vmem:[#allocation2 + $0x7a] sm:$0xff]
      %v2717 = vld [vmem:[#allocation2 + $0x82] sm:$0xff]
      %v2718 = vld [vmem:[#allocation2 + $0x8a] sm:$0xff]
      %v2719 = vld [vmem:[#allocation2 + $0x92] sm:$0xff]
      %v2720 = vld [vmem:[#allocation2 + $0x9a] sm:$0xff]
      %v2721 = vld [vmem:[#allocation2 + $0xa2] sm:$0xff]
      %v2722 = vld [vmem:[#allocation2 + $0xaa] sm:$0xff]
      %v2723 = vld [vmem:[#allocation2 + $0xb2] sm:$0xff]
      %v2724 = vld [vmem:[#allocation2 + $0xba] sm:$0xff]
      %v2725 = vld [vmem:[#allocation2 + $0xc2] sm:$0xff]
      %v2726 = vld [vmem:[#allocation2 + $0xca] sm:$0xff]
      %v2727 = vld [vmem:[#allocation2 + $0xd2] sm:$0xff]
      %v2728 = vld [vmem:[#allocation2 + $0xda] sm:$0xff]
      %v2729 = vld [vmem:[#allocation2 + $0xe2] sm:$0xff]
      %v2730 = vld [vmem:[#allocation2 + $0xea] sm:$0xff]
      %v2731 = vld [vmem:[#allocation2 + $0xf2] sm:$0xff]
      %v2732 = vld [vmem:[#allocation2 + $0xfa] sm:$0xff]
      %v2733 = vld [vmem:[#allocation2 + $0x102] sm:$0xff]
      %v2734 = vld [vmem:[#allocation2 + $0x10a] sm:$0xff]
      %v2735 = vld [vmem:[#allocation2 + $0x112] sm:$0xff]
      %v2736 = vld [vmem:[#allocation2 + $0x11a] sm:$0xff]
      %v2737 = vld [vmem:[#allocation2 + $0x122] sm:$0xff]
      %v2738 = vld [vmem:[#allocation2 + $0x12a] sm:$0xff]
      %v2739 = vld [vmem:[#allocation2 + $0x13] sm:$0xff]
      %v2740 = vld [vmem:[#allocation2 + $0x1b] sm:$0xff]
      %v2741 = vld [vmem:[#allocation2 + $0x23] sm:$0xff]
      %v2742 = vld [vmem:[#allocation2 + $0x2b] sm:$0xff]
      %v2743 = vld [vmem:[#allocation2 + $0x33] sm:$0xff]
      %v2744 = vld [vmem:[#allocation2 + $0x3b] sm:$0xff]
      %v2745 = vld [vmem:[#allocation2 + $0x43] sm:$0xff]
      %v2746 = vld [vmem:[#allocation2 + $0x4b] sm:$0xff]
      %v2747 = vld [vmem:[#allocation2 + $0x53] sm:$0xff]
      %v2748 = vld [vmem:[#allocation2 + $0x5b] sm:$0xff]
      %v2749 = vld [vmem:[#allocation2 + $0x63] sm:$0xff]
      %v2750 = vld [vmem:[#allocation2 + $0x6b] sm:$0xff]
      %v2751 = vld [vmem:[#allocation2 + $0x73] sm:$0xff]
      %v2752 = vld [vmem:[#allocation2 + $0x7b] sm:$0xff]
      %v2753 = vld [vmem:[#allocation2 + $0x83] sm:$0xff]
      %v2754 = vld [vmem:[#allocation2 + $0x8b] sm:$0xff]
      %v2755 = vld [vmem:[#allocation2 + $0x93] sm:$0xff]
      %v2756 = vld [vmem:[#allocation2 + $0x9b] sm:$0xff]
      %v2757 = vld [vmem:[#allocation2 + $0xa3] sm:$0xff]
      %v2758 = vld [vmem:[#allocation2 + $0xab] sm:$0xff]
      %v2759 = vld [vmem:[#allocation2 + $0xb3] sm:$0xff]
      %v2760 = vld [vmem:[#allocation2 + $0xbb] sm:$0xff]
      %v2761 = vld [vmem:[#allocation2 + $0xc3] sm:$0xff]
      %v2762 = vld [vmem:[#allocation2 + $0xcb] sm:$0xff]
      %v2763 = vld [vmem:[#allocation2 + $0xd3] sm:$0xff]
      %v2764 = vld [vmem:[#allocation2 + $0xdb] sm:$0xff]
      %v2765 = vld [vmem:[#allocation2 + $0xe3] sm:$0xff]
      %v2766 = vld [vmem:[#allocation2 + $0xeb] sm:$0xff]
      %v2767 = vld [vmem:[#allocation2 + $0xf3] sm:$0xff]
      %v2768 = vld [vmem:[#allocation2 + $0xfb] sm:$0xff]
      %v2769 = vld [vmem:[#allocation2 + $0x103] sm:$0xff]
      %v2770 = vld [vmem:[#allocation2 + $0x10b] sm:$0xff]
      %v2771 = vld [vmem:[#allocation2 + $0x113] sm:$0xff]
      %v2772 = vld [vmem:[#allocation2 + $0x11b] sm:$0xff]
      %v2773 = vld [vmem:[#allocation2 + $0x123] sm:$0xff]
      %v2774 = vld [vmem:[#allocation2 + $0x12b] sm:$0xff]
      %v2775 = vld [vmem:[#allocation2 + $0x14] sm:$0xff]
      %v2776 = vld [vmem:[#allocation2 + $0x1c] sm:$0xff]
      %v2777 = vld [vmem:[#allocation2 + $0x24] sm:$0xff]
      %v2778 = vld [vmem:[#allocation2 + $0x2c] sm:$0xff]
      %v2779 = vld [vmem:[#allocation2 + $0x34] sm:$0xff]
      %v2780 = vld [vmem:[#allocation2 + $0x3c] sm:$0xff]
      %v2781 = vld [vmem:[#allocation2 + $0x44] sm:$0xff]
      %v2782 = vld [vmem:[#allocation2 + $0x4c] sm:$0xff]
      %v2783 = vld [vmem:[#allocation2 + $0x54] sm:$0xff]
      %v2784 = vld [vmem:[#allocation2 + $0x5c] sm:$0xff]
      %v2785 = vld [vmem:[#allocation2 + $0x64] sm:$0xff]
      %v2786 = vld [vmem:[#allocation2 + $0x6c] sm:$0xff]
      %v2787 = vld [vmem:[#allocation2 + $0x74] sm:$0xff]
      %v2788 = vld [vmem:[#allocation2 + $0x7c] sm:$0xff]
      %v2789 = vld [vmem:[#allocation2 + $0x84] sm:$0xff]
      %v2790 = vld [vmem:[#allocation2 + $0x8c] sm:$0xff]
      %v2791 = vld [vmem:[#allocation2 + $0x94] sm:$0xff]
      %v2792 = vld [vmem:[#allocation2 + $0x9c] sm:$0xff]
      %v2793 = vld [vmem:[#allocation2 + $0xa4] sm:$0xff]
      %v2794 = vld [vmem:[#allocation2 + $0xac] sm:$0xff]
      %v2795 = vld [vmem:[#allocation2 + $0xb4] sm:$0xff]
      %v2796 = vld [vmem:[#allocation2 + $0xbc] sm:$0xff]
      %v2797 = vld [vmem:[#allocation2 + $0xc4] sm:$0xff]
      %v2798 = vld [vmem:[#allocation2 + $0xcc] sm:$0xff]
      %v2799 = vld [vmem:[#allocation2 + $0xd4] sm:$0xff]
      %v2800 = vld [vmem:[#allocation2 + $0xdc] sm:$0xff]
      %v2801 = vld [vmem:[#allocation2 + $0xe4] sm:$0xff]
      %v2802 = vld [vmem:[#allocation2 + $0xec] sm:$0xff]
      %v2803 = vld [vmem:[#allocation2 + $0xf4] sm:$0xff]
      %v2804 = vld [vmem:[#allocation2 + $0xfc] sm:$0xff]
      %v2805 = vld [vmem:[#allocation2 + $0x104] sm:$0xff]
      %v2806 = vld [vmem:[#allocation2 + $0x10c] sm:$0xff]
      %v2807 = vld [vmem:[#allocation2 + $0x114] sm:$0xff]
      %v2808 = vld [vmem:[#allocation2 + $0x11c] sm:$0xff]
      %v2809 = vld [vmem:[#allocation2 + $0x124] sm:$0xff]
      %v2810 = vld [vmem:[#allocation2 + $0x12c] sm:$0xff]
      %v2811 = vld [vmem:[#allocation2 + $0x134] sm:$0xff]
      %v2812 = vld [vmem:[#allocation2 + $0x13c] sm:$0xff]
      %v2813 = vld [vmem:[#allocation2 + $0x25] sm:$0xff]
      %v2814 = vld [vmem:[#allocation2 + $0x2d] sm:$0xff]
      %v2815 = vld [vmem:[#allocation2 + $0x35] sm:$0xff]
      %v2816 = vld [vmem:[#allocation2 + $0x3d] sm:$0xff]
      %v2817 = vld [vmem:[#allocation2 + $0x45] sm:$0xff]
      %v2818 = vld [vmem:[#allocation2 + $0x4d] sm:$0xff]
      %v2819 = vld [vmem:[#allocation2 + $0x55] sm:$0xff]
      %v2820 = vld [vmem:[#allocation2 + $0x5d] sm:$0xff]
      %v2821 = vld [vmem:[#allocation2 + $0x65] sm:$0xff]
      %v2822 = vld [vmem:[#allocation2 + $0x6d] sm:$0xff]
      %v2823 = vld [vmem:[#allocation2 + $0x75] sm:$0xff]
      %v2824 = vld [vmem:[#allocation2 + $0x7d] sm:$0xff]
      %v2825 = vld [vmem:[#allocation2 + $0x85] sm:$0xff]
      %v2826 = vld [vmem:[#allocation2 + $0x8d] sm:$0xff]
      %v2827 = vld [vmem:[#allocation2 + $0x95] sm:$0xff]
      %v2828 = vld [vmem:[#allocation2 + $0x9d] sm:$0xff]
      %v2829 = vld [vmem:[#allocation2 + $0xa5] sm:$0xff]
      %v2830 = vld [vmem:[#allocation2 + $0xad] sm:$0xff]
      %v2831 = vld [vmem:[#allocation2 + $0xb5] sm:$0xff]
      %v2832 = vld [vmem:[#allocation2 + $0xbd] sm:$0xff]
      %v2833 = vld [vmem:[#allocation2 + $0xc5] sm:$0xff]
      %v2834 = vld [vmem:[#allocation2 + $0xcd] sm:$0xff]
      %v2835 = vld [vmem:[#allocation2 + $0xd5] sm:$0xff]
      %v2836 = vld [vmem:[#allocation2 + $0xdd] sm:$0xff]
      %v2837 = vld [vmem:[#allocation2 + $0xe5] sm:$0xff]
      %v2838 = vld [vmem:[#allocation2 + $0xed] sm:$0xff]
      %v2839 = vld [vmem:[#allocation2 + $0xf5] sm:$0xff]
      %v2840 = vld [vmem:[#allocation2 + $0xfd] sm:$0xff]
      %v2841 = vld [vmem:[#allocation2 + $0x105] sm:$0xff]
      %v2842 = vld [vmem:[#allocation2 + $0x10d] sm:$0xff]
      %v2843 = vld [vmem:[#allocation2 + $0x115] sm:$0xff]
      %v2844 = vld [vmem:[#allocation2 + $0x11d] sm:$0xff]
      %v2845 = vld [vmem:[#allocation2 + $0x125] sm:$0xff]
      %v2846 = vld [vmem:[#allocation2 + $0x12d] sm:$0xff]
      %v2847 = vld [vmem:[#allocation2 + $0x135] sm:$0xff]
      %v2848 = vld [vmem:[#allocation2 + $0x13d] sm:$0xff]
      %v2849 = vld [vmem:[#allocation2 + $0x26] sm:$0xff]
      %v2850 = vld [vmem:[#allocation2 + $0x2e] sm:$0xff]
      %v2851 = vld [vmem:[#allocation2 + $0x36] sm:$0xff]
      %v2852 = vld [vmem:[#allocation2 + $0x3e] sm:$0xff]
      %v2853 = vld [vmem:[#allocation2 + $0x46] sm:$0xff]
      %v2854 = vld [vmem:[#allocation2 + $0x4e] sm:$0xff]
      %v2855 = vld [vmem:[#allocation2 + $0x56] sm:$0xff]
      %v2856 = vld [vmem:[#allocation2 + $0x5e] sm:$0xff]
      %v2857 = vld [vmem:[#allocation2 + $0x66] sm:$0xff]
      %v2858 = vld [vmem:[#allocation2 + $0x6e] sm:$0xff]
      %v2859 = vld [vmem:[#allocation2 + $0x76] sm:$0xff]
      %v2860 = vld [vmem:[#allocation2 + $0x7e] sm:$0xff]
      %v2861 = vld [vmem:[#allocation2 + $0x86] sm:$0xff]
      %v2862 = vld [vmem:[#allocation2 + $0x8e] sm:$0xff]
      %v2863 = vld [vmem:[#allocation2 + $0x96] sm:$0xff]
      %v2864 = vld [vmem:[#allocation2 + $0x9e] sm:$0xff]
      %v2865 = vld [vmem:[#allocation2 + $0xa6] sm:$0xff]
      %v2866 = vld [vmem:[#allocation2 + $0xae] sm:$0xff]
      %v2867 = vld [vmem:[#allocation2 + $0xb6] sm:$0xff]
      %v2868 = vld [vmem:[#allocation2 + $0xbe] sm:$0xff]
      %v2869 = vld [vmem:[#allocation2 + $0xc6] sm:$0xff]
      %v2870 = vld [vmem:[#allocation2 + $0xce] sm:$0xff]
      %v2871 = vld [vmem:[#allocation2 + $0xd6] sm:$0xff]
      %v2872 = vld [vmem:[#allocation2 + $0xde] sm:$0xff]
      %v2873 = vld [vmem:[#allocation2 + $0xe6] sm:$0xff]
      %v2874 = vld [vmem:[#allocation2 + $0xee] sm:$0xff]
      %v2875 = vld [vmem:[#allocation2 + $0xf6] sm:$0xff]
      %v2876 = vld [vmem:[#allocation2 + $0xfe] sm:$0xff]
      %v2877 = vld [vmem:[#allocation2 + $0x106] sm:$0xff]
      %v2878 = vld [vmem:[#allocation2 + $0x10e] sm:$0xff]
      %v2879 = vld [vmem:[#allocation2 + $0x116] sm:$0xff]
      %v2880 = vld [vmem:[#allocation2 + $0x11e] sm:$0xff]
      %v2881 = vld [vmem:[#allocation2 + $0x126] sm:$0xff]
      %v2882 = vld [vmem:[#allocation2 + $0x12e] sm:$0xff]
      %v2883 = vld [vmem:[#allocation2 + $0x136] sm:$0xff]
      %v2884 = vld [vmem:[#allocation2 + $0x13e] sm:$0xff]
      %2921 = vrot.lane.b32.xlu0 %v2665, 8
      %v2922 = vpop.permute.xlu0 %2921
      %2923 = vrot.lane.b32.xlu0 %v2666, 8
      %v2924 = vpop.permute.xlu0 %2923
      %2925 = vrot.lane.b32.xlu0 %v2667, 8
      %v2926 = vpop.permute.xlu0 %2925
      %2927 = vrot.lane.b32.xlu0 %v2668, 8
      %v2928 = vpop.permute.xlu0 %2927
      %2929 = vrot.lane.b32.xlu0 %v2669, 8
      %v2930 = vpop.permute.xlu0 %2929
      %2931 = vrot.lane.b32.xlu0 %v2670, 8
      %v2932 = vpop.permute.xlu0 %2931
      %2933 = vrot.lane.b32.xlu0 %v2671, 8
      %v2934 = vpop.permute.xlu0 %2933
      %2935 = vrot.lane.b32.xlu0 %v2672, 8
      %v2936 = vpop.permute.xlu0 %2935
      %2937 = vrot.lane.b32.xlu0 %v2673, 8
      %v2938 = vpop.permute.xlu0 %2937
      %2939 = vrot.lane.b32.xlu0 %v2674, 8
      %v2940 = vpop.permute.xlu0 %2939
      %2941 = vrot.lane.b32.xlu0 %v2675, 8
      %v2942 = vpop.permute.xlu0 %2941
      %2943 = vrot.lane.b32.xlu0 %v2676, 8
      %v2944 = vpop.permute.xlu0 %2943
      %2945 = vrot.lane.b32.xlu0 %v2677, 8
      %v2946 = vpop.permute.xlu0 %2945
      %2947 = vrot.lane.b32.xlu0 %v2678, 8
      %v2948 = vpop.permute.xlu0 %2947
      %2949 = vrot.lane.b32.xlu0 %v2679, 8
      %v2950 = vpop.permute.xlu0 %2949
      %2951 = vrot.lane.b32.xlu0 %v2680, 8
      %v2952 = vpop.permute.xlu0 %2951
      %2953 = vrot.lane.b32.xlu0 %v2681, 8
      %v2954 = vpop.permute.xlu0 %2953
      %2955 = vrot.lane.b32.xlu0 %v2682, 8
      %v2956 = vpop.permute.xlu0 %2955
      %2957 = vrot.lane.b32.xlu0 %v2683, 8
      %v2958 = vpop.permute.xlu0 %2957
      %2959 = vrot.lane.b32.xlu0 %v2684, 8
      %v2960 = vpop.permute.xlu0 %2959
      %2961 = vrot.lane.b32.xlu0 %v2685, 8
      %v2962 = vpop.permute.xlu0 %2961
      %2963 = vrot.lane.b32.xlu0 %v2686, 8
      %v2964 = vpop.permute.xlu0 %2963
      %2965 = vrot.lane.b32.xlu0 %v2687, 8
      %v2966 = vpop.permute.xlu0 %2965
      %2967 = vrot.lane.b32.xlu0 %v2688, 8
      %v2968 = vpop.permute.xlu0 %2967
      %2969 = vrot.lane.b32.xlu0 %v2689, 8
      %v2970 = vpop.permute.xlu0 %2969
      %2971 = vrot.lane.b32.xlu0 %v2690, 8
      %v2972 = vpop.permute.xlu0 %2971
      %2973 = vrot.lane.b32.xlu0 %v2691, 8
      %v2974 = vpop.permute.xlu0 %2973
      %2975 = vrot.lane.b32.xlu0 %v2692, 8
      %v2976 = vpop.permute.xlu0 %2975
      %2977 = vrot.lane.b32.xlu0 %v2693, 8
      %v2978 = vpop.permute.xlu0 %2977
      %2979 = vrot.lane.b32.xlu0 %v2694, 8
      %v2980 = vpop.permute.xlu0 %2979
      %2981 = vrot.lane.b32.xlu0 %v2695, 8
      %v2982 = vpop.permute.xlu0 %2981
      %2983 = vrot.lane.b32.xlu0 %v2696, 8
      %v2984 = vpop.permute.xlu0 %2983
      %2985 = vrot.lane.b32.xlu0 %v2697, 8
      %v2986 = vpop.permute.xlu0 %2985
      %2987 = vrot.lane.b32.xlu0 %v2698, 8
      %v2988 = vpop.permute.xlu0 %2987
      %2989 = vrot.lane.b32.xlu0 %v2699, 8
      %v2990 = vpop.permute.xlu0 %2989
      %2991 = vrot.lane.b32.xlu0 %v2700, 8
      %v2992 = vpop.permute.xlu0 %2991
      %3065 = vrot.lane.b32.xlu0 %v2701, 16
      %v3066 = vpop.permute.xlu0 %3065
      %3067 = vrot.lane.b32.xlu0 %v2702, 16
      %v3068 = vpop.permute.xlu0 %3067
      %3069 = vrot.lane.b32.xlu0 %v2703, 16
      %v3070 = vpop.permute.xlu0 %3069
      %3071 = vrot.lane.b32.xlu0 %v2704, 16
      %v3072 = vpop.permute.xlu0 %3071
      %3073 = vrot.lane.b32.xlu0 %v2705, 16
      %v3074 = vpop.permute.xlu0 %3073
      %3075 = vrot.lane.b32.xlu0 %v2706, 16
      %v3076 = vpop.permute.xlu0 %3075
      %3077 = vrot.lane.b32.xlu0 %v2707, 16
      %v3078 = vpop.permute.xlu0 %3077
      %3079 = vrot.lane.b32.xlu0 %v2708, 16
      %v3080 = vpop.permute.xlu0 %3079
      %3081 = vrot.lane.b32.xlu0 %v2709, 16
      %v3082 = vpop.permute.xlu0 %3081
      %3083 = vrot.lane.b32.xlu0 %v2710, 16
      %v3084 = vpop.permute.xlu0 %3083
      %3085 = vrot.lane.b32.xlu0 %v2711, 16
      %v3086 = vpop.permute.xlu0 %3085
      %3087 = vrot.lane.b32.xlu0 %v2712, 16
      %v3088 = vpop.permute.xlu0 %3087
      %3089 = vrot.lane.b32.xlu0 %v2713, 16
      %v3090 = vpop.permute.xlu0 %3089
      %3091 = vrot.lane.b32.xlu0 %v2714, 16
      %v3092 = vpop.permute.xlu0 %3091
      %3093 = vrot.lane.b32.xlu0 %v2715, 16
      %v3094 = vpop.permute.xlu0 %3093
      %3095 = vrot.lane.b32.xlu0 %v2716, 16
      %v3096 = vpop.permute.xlu0 %3095
      %3097 = vrot.lane.b32.xlu0 %v2717, 16
      %v3098 = vpop.permute.xlu0 %3097
      %3099 = vrot.lane.b32.xlu0 %v2718, 16
      %v3100 = vpop.permute.xlu0 %3099
      %3101 = vrot.lane.b32.xlu0 %v2719, 16
      %v3102 = vpop.permute.xlu0 %3101
      %3103 = vrot.lane.b32.xlu0 %v2720, 16
      %v3104 = vpop.permute.xlu0 %3103
      %3105 = vrot.lane.b32.xlu0 %v2721, 16
      %v3106 = vpop.permute.xlu0 %3105
      %3107 = vrot.lane.b32.xlu0 %v2722, 16
      %v3108 = vpop.permute.xlu0 %3107
      %3109 = vrot.lane.b32.xlu0 %v2723, 16
      %v3110 = vpop.permute.xlu0 %3109
      %3111 = vrot.lane.b32.xlu0 %v2724, 16
      %v3112 = vpop.permute.xlu0 %3111
      %3113 = vrot.lane.b32.xlu0 %v2725, 16
      %v3114 = vpop.permute.xlu0 %3113
      %3115 = vrot.lane.b32.xlu0 %v2726, 16
      %v3116 = vpop.permute.xlu0 %3115
      %3117 = vrot.lane.b32.xlu0 %v2727, 16
      %v3118 = vpop.permute.xlu0 %3117
      %3119 = vrot.lane.b32.xlu0 %v2728, 16
      %v3120 = vpop.permute.xlu0 %3119
      %3121 = vrot.lane.b32.xlu0 %v2729, 16
      %v3122 = vpop.permute.xlu0 %3121
      %3123 = vrot.lane.b32.xlu0 %v2730, 16
      %v3124 = vpop.permute.xlu0 %3123
      %3125 = vrot.lane.b32.xlu0 %v2731, 16
      %v3126 = vpop.permute.xlu0 %3125
      %3127 = vrot.lane.b32.xlu0 %v2732, 16
      %v3128 = vpop.permute.xlu0 %3127
      %3129 = vrot.lane.b32.xlu0 %v2733, 16
      %v3130 = vpop.permute.xlu0 %3129
      %3131 = vrot.lane.b32.xlu0 %v2734, 16
      %v3132 = vpop.permute.xlu0 %3131
      %3133 = vrot.lane.b32.xlu0 %v2735, 16
      %v3134 = vpop.permute.xlu0 %3133
      %3135 = vrot.lane.b32.xlu0 %v2736, 16
      %v3136 = vpop.permute.xlu0 %3135
      %3175 = vrot.lane.b32.xlu0 %v2703, 24
      %v3176 = vpop.permute.xlu0 %3175
      %3177 = vrot.lane.b32.xlu0 %v2704, 24
      %v3178 = vpop.permute.xlu0 %3177
      %3179 = vrot.lane.b32.xlu0 %v2705, 24
      %v3180 = vpop.permute.xlu0 %3179
      %3181 = vrot.lane.b32.xlu0 %v2706, 24
      %v3182 = vpop.permute.xlu0 %3181
      %3183 = vrot.lane.b32.xlu0 %v2707, 24
      %v3184 = vpop.permute.xlu0 %3183
      %3185 = vrot.lane.b32.xlu0 %v2708, 24
      %v3186 = vpop.permute.xlu0 %3185
      %3187 = vrot.lane.b32.xlu0 %v2709, 24
      %v3188 = vpop.permute.xlu0 %3187
      %3189 = vrot.lane.b32.xlu0 %v2710, 24
      %v3190 = vpop.permute.xlu0 %3189
      %3191 = vrot.lane.b32.xlu0 %v2711, 24
      %v3192 = vpop.permute.xlu0 %3191
      %3193 = vrot.lane.b32.xlu0 %v2712, 24
      %v3194 = vpop.permute.xlu0 %3193
      %3195 = vrot.lane.b32.xlu0 %v2713, 24
      %v3196 = vpop.permute.xlu0 %3195
      %3197 = vrot.lane.b32.xlu0 %v2714, 24
      %v3198 = vpop.permute.xlu0 %3197
      %3199 = vrot.lane.b32.xlu0 %v2715, 24
      %v3200 = vpop.permute.xlu0 %3199
      %3201 = vrot.lane.b32.xlu0 %v2716, 24
      %v3202 = vpop.permute.xlu0 %3201
      %3203 = vrot.lane.b32.xlu0 %v2717, 24
      %v3204 = vpop.permute.xlu0 %3203
      %3205 = vrot.lane.b32.xlu0 %v2718, 24
      %v3206 = vpop.permute.xlu0 %3205
      %3207 = vrot.lane.b32.xlu0 %v2719, 24
      %v3208 = vpop.permute.xlu0 %3207
      %3209 = vrot.lane.b32.xlu0 %v2720, 24
      %v3210 = vpop.permute.xlu0 %3209
      %3211 = vrot.lane.b32.xlu0 %v2721, 24
      %v3212 = vpop.permute.xlu0 %3211
      %3213 = vrot.lane.b32.xlu0 %v2722, 24
      %v3214 = vpop.permute.xlu0 %3213
      %3215 = vrot.lane.b32.xlu0 %v2723, 24
      %v3216 = vpop.permute.xlu0 %3215
      %3217 = vrot.lane.b32.xlu0 %v2724, 24
      %v3218 = vpop.permute.xlu0 %3217
      %3219 = vrot.lane.b32.xlu0 %v2725, 24
      %v3220 = vpop.permute.xlu0 %3219
      %3221 = vrot.lane.b32.xlu0 %v2726, 24
      %v3222 = vpop.permute.xlu0 %3221
      %3223 = vrot.lane.b32.xlu0 %v2727, 24
      %v3224 = vpop.permute.xlu0 %3223
      %3225 = vrot.lane.b32.xlu0 %v2728, 24
      %v3226 = vpop.permute.xlu0 %3225
      %3227 = vrot.lane.b32.xlu0 %v2729, 24
      %v3228 = vpop.permute.xlu0 %3227
      %3229 = vrot.lane.b32.xlu0 %v2730, 24
      %v3230 = vpop.permute.xlu0 %3229
      %3231 = vrot.lane.b32.xlu0 %v2731, 24
      %v3232 = vpop.permute.xlu0 %3231
      %3233 = vrot.lane.b32.xlu0 %v2732, 24
      %v3234 = vpop.permute.xlu0 %3233
      %3235 = vrot.lane.b32.xlu0 %v2733, 24
      %v3236 = vpop.permute.xlu0 %3235
      %3237 = vrot.lane.b32.xlu0 %v2734, 24
      %v3238 = vpop.permute.xlu0 %3237
      %3239 = vrot.lane.b32.xlu0 %v2735, 24
      %v3240 = vpop.permute.xlu0 %3239
      %3241 = vrot.lane.b32.xlu0 %v2736, 24
      %v3242 = vpop.permute.xlu0 %3241
      %3243 = vrot.lane.b32.xlu0 %v2737, 24
      %v3244 = vpop.permute.xlu0 %3243
      %3245 = vrot.lane.b32.xlu0 %v2738, 24
      %v3246 = vpop.permute.xlu0 %3245
      %3319 = vrot.lane.b32.xlu0 %v2739, 32
      %v3320 = vpop.permute.xlu0 %3319
      %3321 = vrot.lane.b32.xlu0 %v2740, 32
      %v3322 = vpop.permute.xlu0 %3321
      %3323 = vrot.lane.b32.xlu0 %v2741, 32
      %v3324 = vpop.permute.xlu0 %3323
      %3325 = vrot.lane.b32.xlu0 %v2742, 32
      %v3326 = vpop.permute.xlu0 %3325
      %3327 = vrot.lane.b32.xlu0 %v2743, 32
      %v3328 = vpop.permute.xlu0 %3327
      %3329 = vrot.lane.b32.xlu0 %v2744, 32
      %v3330 = vpop.permute.xlu0 %3329
      %3331 = vrot.lane.b32.xlu0 %v2745, 32
      %v3332 = vpop.permute.xlu0 %3331
      %3333 = vrot.lane.b32.xlu0 %v2746, 32
      %v3334 = vpop.permute.xlu0 %3333
      %3335 = vrot.lane.b32.xlu0 %v2747, 32
      %v3336 = vpop.permute.xlu0 %3335
      %3337 = vrot.lane.b32.xlu0 %v2748, 32
      %v3338 = vpop.permute.xlu0 %3337
      %3339 = vrot.lane.b32.xlu0 %v2749, 32
      %v3340 = vpop.permute.xlu0 %3339
      %3341 = vrot.lane.b32.xlu0 %v2750, 32
      %v3342 = vpop.permute.xlu0 %3341
      %3343 = vrot.lane.b32.xlu0 %v2751, 32
      %v3344 = vpop.permute.xlu0 %3343
      %3345 = vrot.lane.b32.xlu0 %v2752, 32
      %v3346 = vpop.permute.xlu0 %3345
      %3347 = vrot.lane.b32.xlu0 %v2753, 32
      %v3348 = vpop.permute.xlu0 %3347
      %3349 = vrot.lane.b32.xlu0 %v2754, 32
      %v3350 = vpop.permute.xlu0 %3349
      %3351 = vrot.lane.b32.xlu0 %v2755, 32
      %v3352 = vpop.permute.xlu0 %3351
      %3353 = vrot.lane.b32.xlu0 %v2756, 32
      %v3354 = vpop.permute.xlu0 %3353
      %3355 = vrot.lane.b32.xlu0 %v2757, 32
      %v3356 = vpop.permute.xlu0 %3355
      %3357 = vrot.lane.b32.xlu0 %v2758, 32
      %v3358 = vpop.permute.xlu0 %3357
      %3359 = vrot.lane.b32.xlu0 %v2759, 32
      %v3360 = vpop.permute.xlu0 %3359
      %3361 = vrot.lane.b32.xlu0 %v2760, 32
      %v3362 = vpop.permute.xlu0 %3361
      %3363 = vrot.lane.b32.xlu0 %v2761, 32
      %v3364 = vpop.permute.xlu0 %3363
      %3365 = vrot.lane.b32.xlu0 %v2762, 32
      %v3366 = vpop.permute.xlu0 %3365
      %3367 = vrot.lane.b32.xlu0 %v2763, 32
      %v3368 = vpop.permute.xlu0 %3367
      %3369 = vrot.lane.b32.xlu0 %v2764, 32
      %v3370 = vpop.permute.xlu0 %3369
      %3371 = vrot.lane.b32.xlu0 %v2765, 32
      %v3372 = vpop.permute.xlu0 %3371
      %3373 = vrot.lane.b32.xlu0 %v2766, 32
      %v3374 = vpop.permute.xlu0 %3373
      %3375 = vrot.lane.b32.xlu0 %v2767, 32
      %v3376 = vpop.permute.xlu0 %3375
      %3377 = vrot.lane.b32.xlu0 %v2768, 32
      %v3378 = vpop.permute.xlu0 %3377
      %3379 = vrot.lane.b32.xlu0 %v2769, 32
      %v3380 = vpop.permute.xlu0 %3379
      %3381 = vrot.lane.b32.xlu0 %v2770, 32
      %v3382 = vpop.permute.xlu0 %3381
      %3383 = vrot.lane.b32.xlu0 %v2771, 32
      %v3384 = vpop.permute.xlu0 %3383
      %3385 = vrot.lane.b32.xlu0 %v2772, 32
      %v3386 = vpop.permute.xlu0 %3385
      %3387 = vrot.lane.b32.xlu0 %v2773, 32
      %v3388 = vpop.permute.xlu0 %3387
      %3389 = vrot.lane.b32.xlu0 %v2774, 32
      %v3390 = vpop.permute.xlu0 %3389
      %3463 = vrot.lane.b32.xlu0 %v2775, 40
      %v3464 = vpop.permute.xlu0 %3463
      %3465 = vrot.lane.b32.xlu0 %v2776, 40
      %v3466 = vpop.permute.xlu0 %3465
      %3467 = vrot.lane.b32.xlu0 %v2777, 40
      %v3468 = vpop.permute.xlu0 %3467
      %3469 = vrot.lane.b32.xlu0 %v2778, 40
      %v3470 = vpop.permute.xlu0 %3469
      %3471 = vrot.lane.b32.xlu0 %v2779, 40
      %v3472 = vpop.permute.xlu0 %3471
      %3473 = vrot.lane.b32.xlu0 %v2780, 40
      %v3474 = vpop.permute.xlu0 %3473
      %3475 = vrot.lane.b32.xlu0 %v2781, 40
      %v3476 = vpop.permute.xlu0 %3475
      %3477 = vrot.lane.b32.xlu0 %v2782, 40
      %v3478 = vpop.permute.xlu0 %3477
      %3479 = vrot.lane.b32.xlu0 %v2783, 40
      %v3480 = vpop.permute.xlu0 %3479
      %3481 = vrot.lane.b32.xlu0 %v2784, 40
      %v3482 = vpop.permute.xlu0 %3481
      %3483 = vrot.lane.b32.xlu0 %v2785, 40
      %v3484 = vpop.permute.xlu0 %3483
      %3485 = vrot.lane.b32.xlu0 %v2786, 40
      %v3486 = vpop.permute.xlu0 %3485
      %3487 = vrot.lane.b32.xlu0 %v2787, 40
      %v3488 = vpop.permute.xlu0 %3487
      %3489 = vrot.lane.b32.xlu0 %v2788, 40
      %v3490 = vpop.permute.xlu0 %3489
      %3491 = vrot.lane.b32.xlu0 %v2789, 40
      %v3492 = vpop.permute.xlu0 %3491
      %3493 = vrot.lane.b32.xlu0 %v2790, 40
      %v3494 = vpop.permute.xlu0 %3493
      %3495 = vrot.lane.b32.xlu0 %v2791, 40
      %v3496 = vpop.permute.xlu0 %3495
      %3497 = vrot.lane.b32.xlu0 %v2792, 40
      %v3498 = vpop.permute.xlu0 %3497
      %3499 = vrot.lane.b32.xlu0 %v2793, 40
      %v3500 = vpop.permute.xlu0 %3499
      %3501 = vrot.lane.b32.xlu0 %v2794, 40
      %v3502 = vpop.permute.xlu0 %3501
      %3503 = vrot.lane.b32.xlu0 %v2795, 40
      %v3504 = vpop.permute.xlu0 %3503
      %3505 = vrot.lane.b32.xlu0 %v2796, 40
      %v3506 = vpop.permute.xlu0 %3505
      %3507 = vrot.lane.b32.xlu0 %v2797, 40
      %v3508 = vpop.permute.xlu0 %3507
      %3509 = vrot.lane.b32.xlu0 %v2798, 40
      %v3510 = vpop.permute.xlu0 %3509
      %3511 = vrot.lane.b32.xlu0 %v2799, 40
      %v3512 = vpop.permute.xlu0 %3511
      %3513 = vrot.lane.b32.xlu0 %v2800, 40
      %v3514 = vpop.permute.xlu0 %3513
      %3515 = vrot.lane.b32.xlu0 %v2801, 40
      %v3516 = vpop.permute.xlu0 %3515
      %3517 = vrot.lane.b32.xlu0 %v2802, 40
      %v3518 = vpop.permute.xlu0 %3517
      %3519 = vrot.lane.b32.xlu0 %v2803, 40
      %v3520 = vpop.permute.xlu0 %3519
      %3521 = vrot.lane.b32.xlu0 %v2804, 40
      %v3522 = vpop.permute.xlu0 %3521
      %3523 = vrot.lane.b32.xlu0 %v2805, 40
      %v3524 = vpop.permute.xlu0 %3523
      %3525 = vrot.lane.b32.xlu0 %v2806, 40
      %v3526 = vpop.permute.xlu0 %3525
      %3527 = vrot.lane.b32.xlu0 %v2807, 40
      %v3528 = vpop.permute.xlu0 %3527
      %3529 = vrot.lane.b32.xlu0 %v2808, 40
      %v3530 = vpop.permute.xlu0 %3529
      %3531 = vrot.lane.b32.xlu0 %v2809, 40
      %v3532 = vpop.permute.xlu0 %3531
      %3533 = vrot.lane.b32.xlu0 %v2810, 40
      %v3534 = vpop.permute.xlu0 %3533
      %3573 = vrot.lane.b32.xlu0 %v2777, 48
      %v3574 = vpop.permute.xlu0 %3573
      %3575 = vrot.lane.b32.xlu0 %v2778, 48
      %v3576 = vpop.permute.xlu0 %3575
      %3577 = vrot.lane.b32.xlu0 %v2779, 48
      %v3578 = vpop.permute.xlu0 %3577
      %3579 = vrot.lane.b32.xlu0 %v2780, 48
      %v3580 = vpop.permute.xlu0 %3579
      %3581 = vrot.lane.b32.xlu0 %v2781, 48
      %v3582 = vpop.permute.xlu0 %3581
      %3583 = vrot.lane.b32.xlu0 %v2782, 48
      %v3584 = vpop.permute.xlu0 %3583
      %3585 = vrot.lane.b32.xlu0 %v2783, 48
      %v3586 = vpop.permute.xlu0 %3585
      %3587 = vrot.lane.b32.xlu0 %v2784, 48
      %v3588 = vpop.permute.xlu0 %3587
      %3589 = vrot.lane.b32.xlu0 %v2785, 48
      %v3590 = vpop.permute.xlu0 %3589
      %3591 = vrot.lane.b32.xlu0 %v2786, 48
      %v3592 = vpop.permute.xlu0 %3591
      %3593 = vrot.lane.b32.xlu0 %v2787, 48
      %v3594 = vpop.permute.xlu0 %3593
      %3595 = vrot.lane.b32.xlu0 %v2788, 48
      %v3596 = vpop.permute.xlu0 %3595
      %3597 = vrot.lane.b32.xlu0 %v2789, 48
      %v3598 = vpop.permute.xlu0 %3597
      %3599 = vrot.lane.b32.xlu0 %v2790, 48
      %v3600 = vpop.permute.xlu0 %3599
      %3601 = vrot.lane.b32.xlu0 %v2791, 48
      %v3602 = vpop.permute.xlu0 %3601
      %3603 = vrot.lane.b32.xlu0 %v2792, 48
      %v3604 = vpop.permute.xlu0 %3603
      %3605 = vrot.lane.b32.xlu0 %v2793, 48
      %v3606 = vpop.permute.xlu0 %3605
      %3607 = vrot.lane.b32.xlu0 %v2794, 48
      %v3608 = vpop.permute.xlu0 %3607
      %3609 = vrot.lane.b32.xlu0 %v2795, 48
      %v3610 = vpop.permute.xlu0 %3609
      %3611 = vrot.lane.b32.xlu0 %v2796, 48
      %v3612 = vpop.permute.xlu0 %3611
      %3613 = vrot.lane.b32.xlu0 %v2797, 48
      %v3614 = vpop.permute.xlu0 %3613
      %3615 = vrot.lane.b32.xlu0 %v2798, 48
      %v3616 = vpop.permute.xlu0 %3615
      %3617 = vrot.lane.b32.xlu0 %v2799, 48
      %v3618 = vpop.permute.xlu0 %3617
      %3619 = vrot.lane.b32.xlu0 %v2800, 48
      %v3620 = vpop.permute.xlu0 %3619
      %3621 = vrot.lane.b32.xlu0 %v2801, 48
      %v3622 = vpop.permute.xlu0 %3621
      %3623 = vrot.lane.b32.xlu0 %v2802, 48
      %v3624 = vpop.permute.xlu0 %3623
      %3625 = vrot.lane.b32.xlu0 %v2803, 48
      %v3626 = vpop.permute.xlu0 %3625
      %3627 = vrot.lane.b32.xlu0 %v2804, 48
      %v3628 = vpop.permute.xlu0 %3627
      %3629 = vrot.lane.b32.xlu0 %v2805, 48
      %v3630 = vpop.permute.xlu0 %3629
      %3631 = vrot.lane.b32.xlu0 %v2806, 48
      %v3632 = vpop.permute.xlu0 %3631
      %3633 = vrot.lane.b32.xlu0 %v2807, 48
      %v3634 = vpop.permute.xlu0 %3633
      %3635 = vrot.lane.b32.xlu0 %v2808, 48
      %v3636 = vpop.permute.xlu0 %3635
      %3637 = vrot.lane.b32.xlu0 %v2809, 48
      %v3638 = vpop.permute.xlu0 %3637
      %3639 = vrot.lane.b32.xlu0 %v2810, 48
      %v3640 = vpop.permute.xlu0 %3639
      %3641 = vrot.lane.b32.xlu0 %v2811, 48
      %v3642 = vpop.permute.xlu0 %3641
      %3643 = vrot.lane.b32.xlu0 %v2812, 48
      %v3644 = vpop.permute.xlu0 %3643
      %3717 = vrot.lane.b32.xlu0 %v2813, 56
      %v3718 = vpop.permute.xlu0 %3717
      %3719 = vrot.lane.b32.xlu0 %v2814, 56
      %v3720 = vpop.permute.xlu0 %3719
      %3721 = vrot.lane.b32.xlu0 %v2815, 56
      %v3722 = vpop.permute.xlu0 %3721
      %3723 = vrot.lane.b32.xlu0 %v2816, 56
      %v3724 = vpop.permute.xlu0 %3723
      %3725 = vrot.lane.b32.xlu0 %v2817, 56
      %v3726 = vpop.permute.xlu0 %3725
      %3727 = vrot.lane.b32.xlu0 %v2818, 56
      %v3728 = vpop.permute.xlu0 %3727
      %3729 = vrot.lane.b32.xlu0 %v2819, 56
      %v3730 = vpop.permute.xlu0 %3729
      %3731 = vrot.lane.b32.xlu0 %v2820, 56
      %v3732 = vpop.permute.xlu0 %3731
      %3733 = vrot.lane.b32.xlu0 %v2821, 56
      %v3734 = vpop.permute.xlu0 %3733
      %3735 = vrot.lane.b32.xlu0 %v2822, 56
      %v3736 = vpop.permute.xlu0 %3735
      %3737 = vrot.lane.b32.xlu0 %v2823, 56
      %v3738 = vpop.permute.xlu0 %3737
      %3739 = vrot.lane.b32.xlu0 %v2824, 56
      %v3740 = vpop.permute.xlu0 %3739
      %3741 = vrot.lane.b32.xlu0 %v2825, 56
      %v3742 = vpop.permute.xlu0 %3741
      %3743 = vrot.lane.b32.xlu0 %v2826, 56
      %v3744 = vpop.permute.xlu0 %3743
      %3745 = vrot.lane.b32.xlu0 %v2827, 56
      %v3746 = vpop.permute.xlu0 %3745
      %3747 = vrot.lane.b32.xlu0 %v2828, 56
      %v3748 = vpop.permute.xlu0 %3747
      %3749 = vrot.lane.b32.xlu0 %v2829, 56
      %v3750 = vpop.permute.xlu0 %3749
      %3751 = vrot.lane.b32.xlu0 %v2830, 56
      %v3752 = vpop.permute.xlu0 %3751
      %3753 = vrot.lane.b32.xlu0 %v2831, 56
      %v3754 = vpop.permute.xlu0 %3753
      %3755 = vrot.lane.b32.xlu0 %v2832, 56
      %v3756 = vpop.permute.xlu0 %3755
      %3757 = vrot.lane.b32.xlu0 %v2833, 56
      %v3758 = vpop.permute.xlu0 %3757
      %3759 = vrot.lane.b32.xlu0 %v2834, 56
      %v3760 = vpop.permute.xlu0 %3759
      %3761 = vrot.lane.b32.xlu0 %v2835, 56
      %v3762 = vpop.permute.xlu0 %3761
      %3763 = vrot.lane.b32.xlu0 %v2836, 56
      %v3764 = vpop.permute.xlu0 %3763
      %3765 = vrot.lane.b32.xlu0 %v2837, 56
      %v3766 = vpop.permute.xlu0 %3765
      %3767 = vrot.lane.b32.xlu0 %v2838, 56
      %v3768 = vpop.permute.xlu0 %3767
      %3769 = vrot.lane.b32.xlu0 %v2839, 56
      %v3770 = vpop.permute.xlu0 %3769
      %3771 = vrot.lane.b32.xlu0 %v2840, 56
      %v3772 = vpop.permute.xlu0 %3771
      %3773 = vrot.lane.b32.xlu0 %v2841, 56
      %v3774 = vpop.permute.xlu0 %3773
      %3775 = vrot.lane.b32.xlu0 %v2842, 56
      %v3776 = vpop.permute.xlu0 %3775
      %3777 = vrot.lane.b32.xlu0 %v2843, 56
      %v3778 = vpop.permute.xlu0 %3777
      %3779 = vrot.lane.b32.xlu0 %v2844, 56
      %v3780 = vpop.permute.xlu0 %3779
      %3781 = vrot.lane.b32.xlu0 %v2845, 56
      %v3782 = vpop.permute.xlu0 %3781
      %3783 = vrot.lane.b32.xlu0 %v2846, 56
      %v3784 = vpop.permute.xlu0 %3783
      %3785 = vrot.lane.b32.xlu0 %v2847, 56
      %v3786 = vpop.permute.xlu0 %3785
      %3787 = vrot.lane.b32.xlu0 %v2848, 56
      %v3788 = vpop.permute.xlu0 %3787
      %3861 = vrot.lane.b32.xlu0 %v2849, 64
      %v3862 = vpop.permute.xlu0 %3861
      %3863 = vrot.lane.b32.xlu0 %v2850, 64
      %v3864 = vpop.permute.xlu0 %3863
      %3865 = vrot.lane.b32.xlu0 %v2851, 64
      %v3866 = vpop.permute.xlu0 %3865
      %3867 = vrot.lane.b32.xlu0 %v2852, 64
      %v3868 = vpop.permute.xlu0 %3867
      %3869 = vrot.lane.b32.xlu0 %v2853, 64
      %v3870 = vpop.permute.xlu0 %3869
      %3871 = vrot.lane.b32.xlu0 %v2854, 64
      %v3872 = vpop.permute.xlu0 %3871
      %3873 = vrot.lane.b32.xlu0 %v2855, 64
      %v3874 = vpop.permute.xlu0 %3873
      %3875 = vrot.lane.b32.xlu0 %v2856, 64
      %v3876 = vpop.permute.xlu0 %3875
      %3877 = vrot.lane.b32.xlu0 %v2857, 64
      %v3878 = vpop.permute.xlu0 %3877
      %3879 = vrot.lane.b32.xlu0 %v2858, 64
      %v3880 = vpop.permute.xlu0 %3879
      %3881 = vrot.lane.b32.xlu0 %v2859, 64
      %v3882 = vpop.permute.xlu0 %3881
      %3883 = vrot.lane.b32.xlu0 %v2860, 64
      %v3884 = vpop.permute.xlu0 %3883
      %3885 = vrot.lane.b32.xlu0 %v2861, 64
      %v3886 = vpop.permute.xlu0 %3885
      %3887 = vrot.lane.b32.xlu0 %v2862, 64
      %v3888 = vpop.permute.xlu0 %3887
      %3889 = vrot.lane.b32.xlu0 %v2863, 64
      %v3890 = vpop.permute.xlu0 %3889
      %3891 = vrot.lane.b32.xlu0 %v2864, 64
      %v3892 = vpop.permute.xlu0 %3891
      %3893 = vrot.lane.b32.xlu0 %v2865, 64
      %v3894 = vpop.permute.xlu0 %3893
      %3895 = vrot.lane.b32.xlu0 %v2866, 64
      %v3896 = vpop.permute.xlu0 %3895
      %3897 = vrot.lane.b32.xlu0 %v2867, 64
      %v3898 = vpop.permute.xlu0 %3897
      %3899 = vrot.lane.b32.xlu0 %v2868, 64
      %v3900 = vpop.permute.xlu0 %3899
      %3901 = vrot.lane.b32.xlu0 %v2869, 64
      %v3902 = vpop.permute.xlu0 %3901
      %3903 = vrot.lane.b32.xlu0 %v2870, 64
      %v3904 = vpop.permute.xlu0 %3903
      %3905 = vrot.lane.b32.xlu0 %v2871, 64
      %v3906 = vpop.permute.xlu0 %3905
      %3907 = vrot.lane.b32.xlu0 %v2872, 64
      %v3908 = vpop.permute.xlu0 %3907
      %3909 = vrot.lane.b32.xlu0 %v2873, 64
      %v3910 = vpop.permute.xlu0 %3909
      %3911 = vrot.lane.b32.xlu0 %v2874, 64
      %v3912 = vpop.permute.xlu0 %3911
      %3913 = vrot.lane.b32.xlu0 %v2875, 64
      %v3914 = vpop.permute.xlu0 %3913
      %3915 = vrot.lane.b32.xlu0 %v2876, 64
      %v3916 = vpop.permute.xlu0 %3915
      %3917 = vrot.lane.b32.xlu0 %v2877, 64
      %v3918 = vpop.permute.xlu0 %3917
      %3919 = vrot.lane.b32.xlu0 %v2878, 64
      %v3920 = vpop.permute.xlu0 %3919
      %3921 = vrot.lane.b32.xlu0 %v2879, 64
      %v3922 = vpop.permute.xlu0 %3921
      %3923 = vrot.lane.b32.xlu0 %v2880, 64
      %v3924 = vpop.permute.xlu0 %3923
      %3925 = vrot.lane.b32.xlu0 %v2881, 64
      %v3926 = vpop.permute.xlu0 %3925
      %3927 = vrot.lane.b32.xlu0 %v2882, 64
      %v3928 = vpop.permute.xlu0 %3927
      %3929 = vrot.lane.b32.xlu0 %v2883, 64
      %v3930 = vpop.permute.xlu0 %3929
      %3931 = vrot.lane.b32.xlu0 %v2884, 64
      %v3932 = vpop.permute.xlu0 %3931
      %v3969 = vsel %vm1669, %v2629, %v2922
      %v3970 = vsel %vm1669, %v2630, %v2924
      %v3971 = vsel %vm1669, %v2631, %v2926
      %v3972 = vsel %vm1669, %v2632, %v2928
      %v3973 = vsel %vm1669, %v2633, %v2930
      %v3974 = vsel %vm1669, %v2634, %v2932
      %v3975 = vsel %vm1669, %v2635, %v2934
      %v3976 = vsel %vm1669, %v2636, %v2936
      %v3977 = vsel %vm1669, %v2637, %v2938
      %v3978 = vsel %vm1669, %v2638, %v2940
      %v3979 = vsel %vm1669, %v2639, %v2942
      %v3980 = vsel %vm1669, %v2640, %v2944
      %v3981 = vsel %vm1669, %v2641, %v2946
      %v3982 = vsel %vm1669, %v2642, %v2948
      %v3983 = vsel %vm1669, %v2643, %v2950
      %v3984 = vsel %vm1669, %v2644, %v2952
      %v3985 = vsel %vm1669, %v2645, %v2954
      %v3986 = vsel %vm1669, %v2646, %v2956
      %v3987 = vsel %vm1669, %v2647, %v2958
      %v3988 = vsel %vm1669, %v2648, %v2960
      %v3989 = vsel %vm1669, %v2649, %v2962
      %v3990 = vsel %vm1669, %v2650, %v2964
      %v3991 = vsel %vm1669, %v2651, %v2966
      %v3992 = vsel %vm1669, %v2652, %v2968
      %v3993 = vsel %vm1669, %v2653, %v2970
      %v3994 = vsel %vm1669, %v2654, %v2972
      %v3995 = vsel %vm1669, %v2655, %v2974
      %v3996 = vsel %vm1669, %v2656, %v2976
      %v3997 = vsel %vm1669, %v2657, %v2978
      %v3998 = vsel %vm1669, %v2658, %v2980
      %v3999 = vsel %vm1669, %v2659, %v2982
      %v4000 = vsel %vm1669, %v2660, %v2984
      %v4001 = vsel %vm1669, %v2661, %v2986
      %v4002 = vsel %vm1669, %v2662, %v2988
      %v4003 = vsel %vm1669, %v2663, %v2990
      %v4004 = vsel %vm1669, %v2664, %v2992
      %v4005 = vsel %vm1743, %v3969, %v3066
      %v4006 = vsel %vm1743, %v3970, %v3068
      %v4007 = vsel %vm1743, %v3971, %v3070
      %v4008 = vsel %vm1743, %v3972, %v3072
      %v4009 = vsel %vm1743, %v3973, %v3074
      %v4010 = vsel %vm1743, %v3974, %v3076
      %v4011 = vsel %vm1743, %v3975, %v3078
      %v4012 = vsel %vm1743, %v3976, %v3080
      %v4013 = vsel %vm1743, %v3977, %v3082
      %v4014 = vsel %vm1743, %v3978, %v3084
      %v4015 = vsel %vm1743, %v3979, %v3086
      %v4016 = vsel %vm1743, %v3980, %v3088
      %v4017 = vsel %vm1743, %v3981, %v3090
      %v4018 = vsel %vm1743, %v3982, %v3092
      %v4019 = vsel %vm1743, %v3983, %v3094
      %v4020 = vsel %vm1743, %v3984, %v3096
      %v4021 = vsel %vm1743, %v3985, %v3098
      %v4022 = vsel %vm1743, %v3986, %v3100
      %v4023 = vsel %vm1743, %v3987, %v3102
      %v4024 = vsel %vm1743, %v3988, %v3104
      %v4025 = vsel %vm1743, %v3989, %v3106
      %v4026 = vsel %vm1743, %v3990, %v3108
      %v4027 = vsel %vm1743, %v3991, %v3110
      %v4028 = vsel %vm1743, %v3992, %v3112
      %v4029 = vsel %vm1743, %v3993, %v3114
      %v4030 = vsel %vm1743, %v3994, %v3116
      %v4031 = vsel %vm1743, %v3995, %v3118
      %v4032 = vsel %vm1743, %v3996, %v3120
      %v4033 = vsel %vm1743, %v3997, %v3122
      %v4034 = vsel %vm1743, %v3998, %v3124
      %v4035 = vsel %vm1743, %v3999, %v3126
      %v4036 = vsel %vm1743, %v4000, %v3128
      %v4037 = vsel %vm1743, %v4001, %v3130
      %v4038 = vsel %vm1743, %v4002, %v3132
      %v4039 = vsel %vm1743, %v4003, %v3134
      %v4040 = vsel %vm1743, %v4004, %v3136
      %v4041 = vsel %vm1817, %v4005, %v3176
      %v4042 = vsel %vm1817, %v4006, %v3178
      %v4043 = vsel %vm1817, %v4007, %v3180
      %v4044 = vsel %vm1817, %v4008, %v3182
      %v4045 = vsel %vm1817, %v4009, %v3184
      %v4046 = vsel %vm1817, %v4010, %v3186
      %v4047 = vsel %vm1817, %v4011, %v3188
      %v4048 = vsel %vm1817, %v4012, %v3190
      %v4049 = vsel %vm1817, %v4013, %v3192
      %v4050 = vsel %vm1817, %v4014, %v3194
      %v4051 = vsel %vm1817, %v4015, %v3196
      %v4052 = vsel %vm1817, %v4016, %v3198
      %v4053 = vsel %vm1817, %v4017, %v3200
      %v4054 = vsel %vm1817, %v4018, %v3202
      %v4055 = vsel %vm1817, %v4019, %v3204
      %v4056 = vsel %vm1817, %v4020, %v3206
      %v4057 = vsel %vm1817, %v4021, %v3208
      %v4058 = vsel %vm1817, %v4022, %v3210
      %v4059 = vsel %vm1817, %v4023, %v3212
      %v4060 = vsel %vm1817, %v4024, %v3214
      %v4061 = vsel %vm1817, %v4025, %v3216
      %v4062 = vsel %vm1817, %v4026, %v3218
      %v4063 = vsel %vm1817, %v4027, %v3220
      %v4064 = vsel %vm1817, %v4028, %v3222
      %v4065 = vsel %vm1817, %v4029, %v3224
      %v4066 = vsel %vm1817, %v4030, %v3226
      %v4067 = vsel %vm1817, %v4031, %v3228
      %v4068 = vsel %vm1817, %v4032, %v3230
      %v4069 = vsel %vm1817, %v4033, %v3232
      %v4070 = vsel %vm1817, %v4034, %v3234
      %v4071 = vsel %vm1817, %v4035, %v3236
      %v4072 = vsel %vm1817, %v4036, %v3238
      %v4073 = vsel %vm1817, %v4037, %v3240
      %v4074 = vsel %vm1817, %v4038, %v3242
      %v4075 = vsel %vm1817, %v4039, %v3244
      %v4076 = vsel %vm1817, %v4040, %v3246
      %v4077 = vsel %vm1891, %v4041, %v3320
      %v4078 = vsel %vm1891, %v4042, %v3322
      %v4079 = vsel %vm1891, %v4043, %v3324
      %v4080 = vsel %vm1891, %v4044, %v3326
      %v4081 = vsel %vm1891, %v4045, %v3328
      %v4082 = vsel %vm1891, %v4046, %v3330
      %v4083 = vsel %vm1891, %v4047, %v3332
      %v4084 = vsel %vm1891, %v4048, %v3334
      %v4085 = vsel %vm1891, %v4049, %v3336
      %v4086 = vsel %vm1891, %v4050, %v3338
      %v4087 = vsel %vm1891, %v4051, %v3340
      %v4088 = vsel %vm1891, %v4052, %v3342
      %v4089 = vsel %vm1891, %v4053, %v3344
      %v4090 = vsel %vm1891, %v4054, %v3346
      %v4091 = vsel %vm1891, %v4055, %v3348
      %v4092 = vsel %vm1891, %v4056, %v3350
      %v4093 = vsel %vm1891, %v4057, %v3352
      %v4094 = vsel %vm1891, %v4058, %v3354
      %v4095 = vsel %vm1891, %v4059, %v3356
      %v4096 = vsel %vm1891, %v4060, %v3358
      %v4097 = vsel %vm1891, %v4061, %v3360
      %v4098 = vsel %vm1891, %v4062, %v3362
      %v4099 = vsel %vm1891, %v4063, %v3364
      %v4100 = vsel %vm1891, %v4064, %v3366
      %v4101 = vsel %vm1891, %v4065, %v3368
      %v4102 = vsel %vm1891, %v4066, %v3370
      %v4103 = vsel %vm1891, %v4067, %v3372
      %v4104 = vsel %vm1891, %v4068, %v3374
      %v4105 = vsel %vm1891, %v4069, %v3376
      %v4106 = vsel %vm1891, %v4070, %v3378
      %v4107 = vsel %vm1891, %v4071, %v3380
      %v4108 = vsel %vm1891, %v4072, %v3382
      %v4109 = vsel %vm1891, %v4073, %v3384
      %v4110 = vsel %vm1891, %v4074, %v3386
      %v4111 = vsel %vm1891, %v4075, %v3388
      %v4112 = vsel %vm1891, %v4076, %v3390
      %vm4113 = vcmask 326656
      %v4114 = vsel %vm4113, %v4077, %v3464
      %v4115 = vsel %vm4113, %v4078, %v3466
      %v4116 = vsel %vm4113, %v4079, %v3468
      %v4117 = vsel %vm4113, %v4080, %v3470
      %v4118 = vsel %vm4113, %v4081, %v3472
      %v4119 = vsel %vm4113, %v4082, %v3474
      %v4120 = vsel %vm4113, %v4083, %v3476
      %v4121 = vsel %vm4113, %v4084, %v3478
      %v4122 = vsel %vm4113, %v4085, %v3480
      %v4123 = vsel %vm4113, %v4086, %v3482
      %v4124 = vsel %vm4113, %v4087, %v3484
      %v4125 = vsel %vm4113, %v4088, %v3486
      %v4126 = vsel %vm4113, %v4089, %v3488
      %v4127 = vsel %vm4113, %v4090, %v3490
      %v4128 = vsel %vm4113, %v4091, %v3492
      %v4129 = vsel %vm4113, %v4092, %v3494
      %v4130 = vsel %vm4113, %v4093, %v3496
      %v4131 = vsel %vm4113, %v4094, %v3498
      %v4132 = vsel %vm4113, %v4095, %v3500
      %v4133 = vsel %vm4113, %v4096, %v3502
      %v4134 = vsel %vm4113, %v4097, %v3504
      %v4135 = vsel %vm4113, %v4098, %v3506
      %v4136 = vsel %vm4113, %v4099, %v3508
      %v4137 = vsel %vm4113, %v4100, %v3510
      %v4138 = vsel %vm4113, %v4101, %v3512
      %v4139 = vsel %vm4113, %v4102, %v3514
      %v4140 = vsel %vm4113, %v4103, %v3516
      %v4141 = vsel %vm4113, %v4104, %v3518
      %v4142 = vsel %vm4113, %v4105, %v3520
      %v4143 = vsel %vm4113, %v4106, %v3522
      %v4144 = vsel %vm4113, %v4107, %v3524
      %v4145 = vsel %vm4113, %v4108, %v3526
      %v4146 = vsel %vm4113, %v4109, %v3528
      %v4147 = vsel %vm4113, %v4110, %v3530
      %v4148 = vsel %vm4113, %v4111, %v3532
      %v4149 = vsel %vm4113, %v4112, %v3534
      %vm4150 = vcmask 392192
      %v4151 = vsel %vm4150, %v4114, %v3574
      %v4152 = vsel %vm4150, %v4115, %v3576
      %v4153 = vsel %vm4150, %v4116, %v3578
      %v4154 = vsel %vm4150, %v4117, %v3580
      %v4155 = vsel %vm4150, %v4118, %v3582
      %v4156 = vsel %vm4150, %v4119, %v3584
      %v4157 = vsel %vm4150, %v4120, %v3586
      %v4158 = vsel %vm4150, %v4121, %v3588
      %v4159 = vsel %vm4150, %v4122, %v3590
      %v4160 = vsel %vm4150, %v4123, %v3592
      %v4161 = vsel %vm4150, %v4124, %v3594
      %v4162 = vsel %vm4150, %v4125, %v3596
      %v4163 = vsel %vm4150, %v4126, %v3598
      %v4164 = vsel %vm4150, %v4127, %v3600
      %v4165 = vsel %vm4150, %v4128, %v3602
      %v4166 = vsel %vm4150, %v4129, %v3604
      %v4167 = vsel %vm4150, %v4130, %v3606
      %v4168 = vsel %vm4150, %v4131, %v3608
      %v4169 = vsel %vm4150, %v4132, %v3610
      %v4170 = vsel %vm4150, %v4133, %v3612
      %v4171 = vsel %vm4150, %v4134, %v3614
      %v4172 = vsel %vm4150, %v4135, %v3616
      %v4173 = vsel %vm4150, %v4136, %v3618
      %v4174 = vsel %vm4150, %v4137, %v3620
      %v4175 = vsel %vm4150, %v4138, %v3622
      %v4176 = vsel %vm4150, %v4139, %v3624
      %v4177 = vsel %vm4150, %v4140, %v3626
      %v4178 = vsel %vm4150, %v4141, %v3628
      %v4179 = vsel %vm4150, %v4142, %v3630
      %v4180 = vsel %vm4150, %v4143, %v3632
      %v4181 = vsel %vm4150, %v4144, %v3634
      %v4182 = vsel %vm4150, %v4145, %v3636
      %v4183 = vsel %vm4150, %v4146, %v3638
      %v4184 = vsel %vm4150, %v4147, %v3640
      %v4185 = vsel %vm4150, %v4148, %v3642
      %v4186 = vsel %vm4150, %v4149, %v3644
      %vm4187 = vcmask 457728
      %v4188 = vsel %vm4187, %v4151, %v3718
      %v4189 = vsel %vm4187, %v4152, %v3720
      %v4190 = vsel %vm4187, %v4153, %v3722
      %v4191 = vsel %vm4187, %v4154, %v3724
      %v4192 = vsel %vm4187, %v4155, %v3726
      %v4193 = vsel %vm4187, %v4156, %v3728
      %v4194 = vsel %vm4187, %v4157, %v3730
      %v4195 = vsel %vm4187, %v4158, %v3732
      %v4196 = vsel %vm4187, %v4159, %v3734
      %v4197 = vsel %vm4187, %v4160, %v3736
      %v4198 = vsel %vm4187, %v4161, %v3738
      %v4199 = vsel %vm4187, %v4162, %v3740
      %v4200 = vsel %vm4187, %v4163, %v3742
      %v4201 = vsel %vm4187, %v4164, %v3744
      %v4202 = vsel %vm4187, %v4165, %v3746
      %v4203 = vsel %vm4187, %v4166, %v3748
      %v4204 = vsel %vm4187, %v4167, %v3750
      %v4205 = vsel %vm4187, %v4168, %v3752
      %v4206 = vsel %vm4187, %v4169, %v3754
      %v4207 = vsel %vm4187, %v4170, %v3756
      %v4208 = vsel %vm4187, %v4171, %v3758
      %v4209 = vsel %vm4187, %v4172, %v3760
      %v4210 = vsel %vm4187, %v4173, %v3762
      %v4211 = vsel %vm4187, %v4174, %v3764
      %v4212 = vsel %vm4187, %v4175, %v3766
      %v4213 = vsel %vm4187, %v4176, %v3768
      %v4214 = vsel %vm4187, %v4177, %v3770
      %v4215 = vsel %vm4187, %v4178, %v3772
      %v4216 = vsel %vm4187, %v4179, %v3774
      %v4217 = vsel %vm4187, %v4180, %v3776
      %v4218 = vsel %vm4187, %v4181, %v3778
      %v4219 = vsel %vm4187, %v4182, %v3780
      %v4220 = vsel %vm4187, %v4183, %v3782
      %v4221 = vsel %vm4187, %v4184, %v3784
      %v4222 = vsel %vm4187, %v4185, %v3786
      %v4223 = vsel %vm4187, %v4186, %v3788
      %vm4224 = vcmask 523264
      %v4225 = vsel %vm4224, %v4188, %v3862
      %v4226 = vsel %vm4224, %v4189, %v3864
      %v4227 = vsel %vm4224, %v4190, %v3866
      %v4228 = vsel %vm4224, %v4191, %v3868
      %v4229 = vsel %vm4224, %v4192, %v3870
      %v4230 = vsel %vm4224, %v4193, %v3872
      %v4231 = vsel %vm4224, %v4194, %v3874
      %v4232 = vsel %vm4224, %v4195, %v3876
      %v4233 = vsel %vm4224, %v4196, %v3878
      %v4234 = vsel %vm4224, %v4197, %v3880
      %v4235 = vsel %vm4224, %v4198, %v3882
      %v4236 = vsel %vm4224, %v4199, %v3884
      %v4237 = vsel %vm4224, %v4200, %v3886
      %v4238 = vsel %vm4224, %v4201, %v3888
      %v4239 = vsel %vm4224, %v4202, %v3890
      %v4240 = vsel %vm4224, %v4203, %v3892
      %v4241 = vsel %vm4224, %v4204, %v3894
      %v4242 = vsel %vm4224, %v4205, %v3896
      %v4243 = vsel %vm4224, %v4206, %v3898
      %v4244 = vsel %vm4224, %v4207, %v3900
      %v4245 = vsel %vm4224, %v4208, %v3902
      %v4246 = vsel %vm4224, %v4209, %v3904
      %v4247 = vsel %vm4224, %v4210, %v3906
      %v4248 = vsel %vm4224, %v4211, %v3908
      %v4249 = vsel %vm4224, %v4212, %v3910
      %v4250 = vsel %vm4224, %v4213, %v3912
      %v4251 = vsel %vm4224, %v4214, %v3914
      %v4252 = vsel %vm4224, %v4215, %v3916
      %v4253 = vsel %vm4224, %v4216, %v3918
      %v4254 = vsel %vm4224, %v4217, %v3920
      %v4255 = vsel %vm4224, %v4218, %v3922
      %v4256 = vsel %vm4224, %v4219, %v3924
      %v4257 = vsel %vm4224, %v4220, %v3926
      %v4258 = vsel %vm4224, %v4221, %v3928
      %v4259 = vsel %vm4224, %v4222, %v3930
      %v4260 = vsel %vm4224, %v4223, %v3932
      %v4261 = vld [vmem:[%s4] sm:$0xff]
      %v4262 = vld [vmem:[%s4 + $0x8] sm:$0xff]
      %v4263 = vld [vmem:[%s4 + $0x10] sm:$0xff]
      %v4264 = vld [vmem:[%s4 + $0x18] sm:$0xff]
      %v4265 = vld [vmem:[%s4 + $0x20] sm:$0xff]
      %v4266 = vld [vmem:[%s4 + $0x28] sm:$0xff]
      %v4267 = vld [vmem:[%s4 + $0x30] sm:$0xff]
      %v4268 = vld [vmem:[%s4 + $0x38] sm:$0xff]
      %v4269 = vld [vmem:[%s4 + $0x40] sm:$0xff]
      %v4270 = vld [vmem:[%s5] sm:$0x1]
      %v4272 = vlaneseq
      %v4273 = vshrl.u32 %v4272, 7
      %v4274 = vsub.s32 0, %v4273
      %v4275 = vrot.slane %v4270, %v4274
      %vm4277 = vcmask 588800
      %v4279 = vsel %vm4277, %v4225, 0
      %v4282 = vsel %vm4277, %v4226, 0
      %v4285 = vsel %vm4277, %v4227, 0
      %v4288 = vsel %vm4277, %v4228, 0
      %v4291 = vsel %vm4277, %v4229, 0
      %v4294 = vsel %vm4277, %v4230, 0
      %v4297 = vsel %vm4277, %v4231, 0
      %v4300 = vsel %vm4277, %v4232, 0
      %v4303 = vsel %vm4277, %v4233, 0
      %v4306 = vsel %vm4277, %v4234, 0
      %v4309 = vsel %vm4277, %v4235, 0
      %v4312 = vsel %vm4277, %v4236, 0
      %v4315 = vsel %vm4277, %v4237, 0
      %v4318 = vsel %vm4277, %v4238, 0
      %v4321 = vsel %vm4277, %v4239, 0
      %v4324 = vsel %vm4277, %v4240, 0
      %v4327 = vsel %vm4277, %v4241, 0
      %v4330 = vsel %vm4277, %v4242, 0
      %v4333 = vsel %vm4277, %v4243, 0
      %v4336 = vsel %vm4277, %v4244, 0
      %v4339 = vsel %vm4277, %v4245, 0
      %v4342 = vsel %vm4277, %v4246, 0
      %v4345 = vsel %vm4277, %v4247, 0
      %v4348 = vsel %vm4277, %v4248, 0
      %v4351 = vsel %vm4277, %v4249, 0
      %v4354 = vsel %vm4277, %v4250, 0
      %v4357 = vsel %vm4277, %v4251, 0
      %v4360 = vsel %vm4277, %v4252, 0
      %v4363 = vsel %vm4277, %v4253, 0
      %v4366 = vsel %vm4277, %v4254, 0
      %v4369 = vsel %vm4277, %v4255, 0
      %v4372 = vsel %vm4277, %v4256, 0
      %v4375 = vsel %vm4277, %v4257, 0
      %v4378 = vsel %vm4277, %v4258, 0
      %v4381 = vsel %vm4277, %v4259, 0
      %v4384 = vsel %vm4277, %v4260, 0
      %4386 = vmatprep.subr.mxu0 0.0
      %4387 = vmatpush1.msra.mxu0 %v4261
      %4388 = vmatprep.subr.mxu0 0.0
      %4389 = vmatpush1.msra.mxu0 %v4262
      %4390 = vmatprep.subr.mxu0 0.0
      %4391 = vmatpush1.msra.mxu0 %v4263
      %4392 = vmatprep.subr.mxu0 0.0
      %4393 = vmatpush1.msra.mxu0 %v4264
      %4394 = vmatprep.subr.mxu0 0.0
      %4395 = vmatpush1.msra.mxu0 %v4265
      %4396 = vmatprep.subr.mxu0 0.0
      %4397 = vmatpush1.msra.mxu0 %v4266
      %4398 = vmatprep.subr.mxu0 0.0
      %4399 = vmatpush1.msra.mxu0 %v4267
      %4400 = vmatprep.subr.mxu0 0.0
      %4401 = vmatpush1.msra.mxu0 %v4268
      %4402 = vmatprep.subr.mxu0 0.0
      %4403 = vmatpush1.msra.mxu0 %v4269
      %4404 = vmatprep.subr.mxu0 0.0
      %4405 = vmatpush1.msra.mxu0 0.0
      %4406 = vmatprep.subr.mxu0 0.0
      %4407 = vmatpush1.msra.mxu0 0.0
      %4408 = vmatprep.subr.mxu0 0.0
      %4409 = vmatpush1.msra.mxu0 0.0
      %4410 = vmatprep.subr.mxu0 0.0
      %4411 = vmatpush1.msra.mxu0 0.0
      %4412 = vmatprep.subr.mxu0 0.0
      %4413 = vmatpush1.msra.mxu0 0.0
      %4414 = vmatprep.subr.mxu0 0.0
      %4415 = vmatpush1.msra.mxu0 0.0
      %4416 = vmatprep.subr.mxu0 0.0
      %4417 = vmatpush1.msra.mxu0 0.0
      %4418 = vmatprep.subr.mxu0 0.0
      %4419 = vmatpush1.msra.mxu0 0.0
      %4420 = vmatprep.subr.mxu0 0.0
      %4421 = vmatpush1.msra.mxu0 0.0
      %4422 = vmatprep.subr.mxu0 0.0
      %4423 = vmatpush1.msra.mxu0 0.0
      %4424 = vmatprep.subr.mxu0 0.0
      %4425 = vmatpush1.msra.mxu0 0.0
      %4426 = vmatprep.subr.mxu0 0.0
      %4427 = vmatpush1.msra.mxu0 0.0
      %4428 = vmatprep.subr.mxu0 0.0
      %4429 = vmatpush1.msra.mxu0 0.0
      %4430 = vmatprep.subr.mxu0 0.0
      %4431 = vmatpush1.msra.mxu0 0.0
      %4432 = vmatprep.subr.mxu0 0.0
      %4433 = vmatpush1.msra.mxu0 0.0
      %4434 = vmatprep.subr.mxu0 0.0
      %4435 = vmatpush1.msra.mxu0 0.0
      %4436 = vmatprep.subr.mxu0 0.0
      %4437 = vmatpush1.msra.mxu0 0.0
      %4438 = vmatprep.subr.mxu0 0.0
      %4439 = vmatpush1.msra.mxu0 0.0
      %4440 = vmatprep.subr.mxu0 0.0
      %4441 = vmatpush1.msra.mxu0 0.0
      %4442 = vmatprep.subr.mxu0 0.0
      %4443 = vmatpush1.msra.mxu0 0.0
      %4444 = vmatprep.subr.mxu0 0.0
      %4445 = vmatpush1.msra.mxu0 0.0
      %4446 = vmatprep.subr.mxu0 0.0
      %4447 = vmatpush1.msra.mxu0 0.0
      %4448 = vmatprep.subr.mxu0 0.0
      %4449 = vmatpush1.msra.mxu0 0.0
      %4450 = vmatprep.mubr.f32.mxu0 0.0
      %4451 = vmatmul.mubr.f32.gmra.mrb[0].mxu0 %v4279
      %v4452 = vpop.f32.mrb[0].mxu0
      %v4453 = vadd.f32 %v4275, %v4452
      %v4454 = vpop.f32.mrb[0].mxu0
      %4455 = vmatprep.mubr.f32.mxu0 0.0
      %4456 = vmatmul.mubr.f32.gmra.mrb[0].mxu0 %v4282
      %v4457 = vpop.f32.mrb[0].mxu0
      %v4458 = vadd.f32 %v4275, %v4457
      %v4459 = vpop.f32.mrb[0].mxu0
      %4460 = vmatprep.mubr.f32.mxu0 0.0
      %4461 = vmatmul.mubr.f32.gmra.mrb[0].mxu0 %v4285
      %v4462 = vpop.f32.mrb[0].mxu0
      %v4463 = vadd.f32 %v4275, %v4462
      %v4464 = vpop.f32.mrb[0].mxu0
      %4465 = vmatprep.mubr.f32.mxu0 0.0
      %4466 = vmatmul.mubr.f32.gmra.mrb[0].mxu0 %v4288
      %v4467 = vpop.f32.mrb[0].mxu0
      %v4468 = vadd.f32 %v4275, %v4467
      %v4469 = vpop.f32.mrb[0].mxu0
      %4470 = vmatprep.mubr.f32.mxu0 0.0
      %4471 = vmatmul.mubr.f32.gmra.mrb[0].mxu0 %v4291
      %v4472 = vpop.f32.mrb[0].mxu0
      %v4473 = vadd.f32 %v4275, %v4472
      %v4474 = vpop.f32.mrb[0].mxu0
      %4475 = vmatprep.mubr.f32.mxu0 0.0
      %4476 = vmatmul.mubr.f32.gmra.mrb[0].mxu0 %v4294
      %v4477 = vpop.f32.mrb[0].mxu0
      %v4478 = vadd.f32 %v4275, %v4477
      %v4479 = vpop.f32.mrb[0].mxu0
      %4480 = vmatprep.mubr.f32.mxu0 0.0
      %4481 = vmatmul.mubr.f32.gmra.mrb[0].mxu0 %v4297
      %v4482 = vpop.f32.mrb[0].mxu0
      %v4483 = vadd.f32 %v4275, %v4482
      %v4484 = vpop.f32.mrb[0].mxu0
      %4485 = vmatprep.mubr.f32.mxu0 0.0
      %4486 = vmatmul.mubr.f32.gmra.mrb[0].mxu0 %v4300
      %v4487 = vpop.f32.mrb[0].mxu0
      %v4488 = vadd.f32 %v4275, %v4487
      %v4489 = vpop.f32.mrb[0].mxu0
      %4490 = vmatprep.mubr.f32.mxu0 0.0
      %4491 = vmatmul.mubr.f32.gmra.mrb[0].mxu0 %v4303
      %v4492 = vpop.f32.mrb[0].mxu0
      %v4493 = vadd.f32 %v4275, %v4492
      %v4494 = vpop.f32.mrb[0].mxu0
      %4495 = vmatprep.mubr.f32.mxu0 0.0
      %4496 = vmatmul.mubr.f32.gmra.mrb[0].mxu0 %v4306
      %v4497 = vpop.f32.mrb[0].mxu0
      %v4498 = vadd.f32 %v4275, %v4497
      %v4499 = vpop.f32.mrb[0].mxu0
      %4500 = vmatprep.mubr.f32.mxu0 0.0
      %4501 = vmatmul.mubr.f32.gmra.mrb[0].mxu0 %v4309
      %v4502 = vpop.f32.mrb[0].mxu0
      %v4503 = vadd.f32 %v4275, %v4502
      %v4504 = vpop.f32.mrb[0].mxu0
      %4505 = vmatprep.mubr.f32.mxu0 0.0
      %4506 = vmatmul.mubr.f32.gmra.mrb[0].mxu0 %v4312
      %v4507 = vpop.f32.mrb[0].mxu0
      %v4508 = vadd.f32 %v4275, %v4507
      %v4509 = vpop.f32.mrb[0].mxu0
      %4510 = vmatprep.mubr.f32.mxu0 0.0
      %4511 = vmatmul.mubr.f32.gmra.mrb[0].mxu0 %v4315
      %v4512 = vpop.f32.mrb[0].mxu0
      %v4513 = vadd.f32 %v4275, %v4512
      %v4514 = vpop.f32.mrb[0].mxu0
      %4515 = vmatprep.mubr.f32.mxu0 0.0
      %4516 = vmatmul.mubr.f32.gmra.mrb[0].mxu0 %v4318
      %v4517 = vpop.f32.mrb[0].mxu0
      %v4518 = vadd.f32 %v4275, %v4517
      %v4519 = vpop.f32.mrb[0].mxu0
      %4520 = vmatprep.mubr.f32.mxu0 0.0
      %4521 = vmatmul.mubr.f32.gmra.mrb[0].mxu0 %v4321
      %v4522 = vpop.f32.mrb[0].mxu0
      %v4523 = vadd.f32 %v4275, %v4522
      %v4524 = vpop.f32.mrb[0].mxu0
      %4525 = vmatprep.mubr.f32.mxu0 0.0
      %4526 = vmatmul.mubr.f32.gmra.mrb[0].mxu0 %v4324
      %v4527 = vpop.f32.mrb[0].mxu0
      %v4528 = vadd.f32 %v4275, %v4527
      %v4529 = vpop.f32.mrb[0].mxu0
      %4530 = vmatprep.mubr.f32.mxu0 0.0
      %4531 = vmatmul.mubr.f32.gmra.mrb[0].mxu0 %v4327
      %v4532 = vpop.f32.mrb[0].mxu0
      %v4533 = vadd.f32 %v4275, %v4532
      %v4534 = vpop.f32.mrb[0].mxu0
      %4535 = vmatprep.mubr.f32.mxu0 0.0
      %4536 = vmatmul.mubr.f32.gmra.mrb[0].mxu0 %v4330
      %v4537 = vpop.f32.mrb[0].mxu0
      %v4538 = vadd.f32 %v4275, %v4537
      %v4539 = vpop.f32.mrb[0].mxu0
      %4540 = vmatprep.mubr.f32.mxu0 0.0
      %4541 = vmatmul.mubr.f32.gmra.mrb[0].mxu0 %v4333
      %v4542 = vpop.f32.mrb[0].mxu0
      %v4543 = vadd.f32 %v4275, %v4542
      %v4544 = vpop.f32.mrb[0].mxu0
      %4545 = vmatprep.mubr.f32.mxu0 0.0
      %4546 = vmatmul.mubr.f32.gmra.mrb[0].mxu0 %v4336
      %v4547 = vpop.f32.mrb[0].mxu0
      %v4548 = vadd.f32 %v4275, %v4547
      %v4549 = vpop.f32.mrb[0].mxu0
      %4550 = vmatprep.mubr.f32.mxu0 0.0
      %4551 = vmatmul.mubr.f32.gmra.mrb[0].mxu0 %v4339
      %v4552 = vpop.f32.mrb[0].mxu0
      %v4553 = vadd.f32 %v4275, %v4552
      %v4554 = vpop.f32.mrb[0].mxu0
      %4555 = vmatprep.mubr.f32.mxu0 0.0
      %4556 = vmatmul.mubr.f32.gmra.mrb[0].mxu0 %v4342
      %v4557 = vpop.f32.mrb[0].mxu0
      %v4558 = vadd.f32 %v4275, %v4557
      %v4559 = vpop.f32.mrb[0].mxu0
      %4560 = vmatprep.mubr.f32.mxu0 0.0
      %4561 = vmatmul.mubr.f32.gmra.mrb[0].mxu0 %v4345
      %v4562 = vpop.f32.mrb[0].mxu0
      %v4563 = vadd.f32 %v4275, %v4562
      %v4564 = vpop.f32.mrb[0].mxu0
      %4565 = vmatprep.mubr.f32.mxu0 0.0
      %4566 = vmatmul.mubr.f32.gmra.mrb[0].mxu0 %v4348
      %v4567 = vpop.f32.mrb[0].mxu0
      %v4568 = vadd.f32 %v4275, %v4567
      %v4569 = vpop.f32.mrb[0].mxu0
      %4570 = vmatprep.mubr.f32.mxu0 0.0
      %4571 = vmatmul.mubr.f32.gmra.mrb[0].mxu0 %v4351
      %v4572 = vpop.f32.mrb[0].mxu0
      %v4573 = vadd.f32 %v4275, %v4572
      %v4574 = vpop.f32.mrb[0].mxu0
      %4575 = vmatprep.mubr.f32.mxu0 0.0
      %4576 = vmatmul.mubr.f32.gmra.mrb[0].mxu0 %v4354
      %v4577 = vpop.f32.mrb[0].mxu0
      %v4578 = vadd.f32 %v4275, %v4577
      %v4579 = vpop.f32.mrb[0].mxu0
      %4580 = vmatprep.mubr.f32.mxu0 0.0
      %4581 = vmatmul.mubr.f32.gmra.mrb[0].mxu0 %v4357
      %v4582 = vpop.f32.mrb[0].mxu0
      %v4583 = vadd.f32 %v4275, %v4582
      %v4584 = vpop.f32.mrb[0].mxu0
      %4585 = vmatprep.mubr.f32.mxu0 0.0
      %4586 = vmatmul.mubr.f32.gmra.mrb[0].mxu0 %v4360
      %v4587 = vpop.f32.mrb[0].mxu0
      %v4588 = vadd.f32 %v4275, %v4587
      %v4589 = vpop.f32.mrb[0].mxu0
      %4590 = vmatprep.mubr.f32.mxu0 0.0
      %4591 = vmatmul.mubr.f32.gmra.mrb[0].mxu0 %v4363
      %v4592 = vpop.f32.mrb[0].mxu0
      %v4593 = vadd.f32 %v4275, %v4592
      %v4594 = vpop.f32.mrb[0].mxu0
      %4595 = vmatprep.mubr.f32.mxu0 0.0
      %4596 = vmatmul.mubr.f32.gmra.mrb[0].mxu0 %v4366
      %v4597 = vpop.f32.mrb[0].mxu0
      %v4598 = vadd.f32 %v4275, %v4597
      %v4599 = vpop.f32.mrb[0].mxu0
      %4600 = vmatprep.mubr.f32.mxu0 0.0
      %4601 = vmatmul.mubr.f32.gmra.mrb[0].mxu0 %v4369
      %v4602 = vpop.f32.mrb[0].mxu0
      %v4603 = vadd.f32 %v4275, %v4602
      %v4604 = vpop.f32.mrb[0].mxu0
      %4605 = vmatprep.mubr.f32.mxu0 0.0
      %4606 = vmatmul.mubr.f32.gmra.mrb[0].mxu0 %v4372
      %v4607 = vpop.f32.mrb[0].mxu0
      %v4608 = vadd.f32 %v4275, %v4607
      %v4609 = vpop.f32.mrb[0].mxu0
      %4610 = vmatprep.mubr.f32.mxu0 0.0
      %4611 = vmatmul.mubr.f32.gmra.mrb[0].mxu0 %v4375
      %v4612 = vpop.f32.mrb[0].mxu0
      %v4613 = vadd.f32 %v4275, %v4612
      %v4614 = vpop.f32.mrb[0].mxu0
      %4615 = vmatprep.mubr.f32.mxu0 0.0
      %4616 = vmatmul.mubr.f32.gmra.mrb[0].mxu0 %v4378
      %v4617 = vpop.f32.mrb[0].mxu0
      %v4618 = vadd.f32 %v4275, %v4617
      %v4619 = vpop.f32.mrb[0].mxu0
      %4620 = vmatprep.mubr.f32.mxu0 0.0
      %4621 = vmatmul.mubr.f32.gmra.mrb[0].mxu0 %v4381
      %v4622 = vpop.f32.mrb[0].mxu0
      %v4623 = vadd.f32 %v4275, %v4622
      %v4624 = vpop.f32.mrb[0].mxu0
      %4625 = vmatprep.mubr.f32.mxu0 0.0
      %4626 = vmatmul.mubr.f32.gmra.mrb[0].mxu0 %v4384
      %v4627 = vpop.f32.mrb[0].mxu0
      %v4628 = vadd.f32 %v4275, %v4627
      %v4629 = vpop.f32.mrb[0].mxu0
      %4630 = vdwg.mxu0
      %v4631 = vsel %vm1743, %v4453, -inf
      %4632 = vmax.xlane.f32.xlu0 %v4631
      %v4633 = vpop.xlane.xlu0 %4632
      %v4634 = vsel %vm1743, %v4458, -inf
      %4635 = vmax.xlane.f32.xlu0 %v4634
      %v4636 = vpop.xlane.xlu0 %4635
      %v4637 = vsel %vm1743, %v4463, -inf
      %4638 = vmax.xlane.f32.xlu0 %v4637
      %v4639 = vpop.xlane.xlu0 %4638
      %v4640 = vsel %vm1743, %v4468, -inf
      %4641 = vmax.xlane.f32.xlu0 %v4640
      %v4642 = vpop.xlane.xlu0 %4641
      %v4643 = vsel %vm1743, %v4473, -inf
      %4644 = vmax.xlane.f32.xlu0 %v4643
      %v4645 = vpop.xlane.xlu0 %4644
      %v4646 = vsel %vm1743, %v4478, -inf
      %4647 = vmax.xlane.f32.xlu0 %v4646
      %v4648 = vpop.xlane.xlu0 %4647
      %v4649 = vsel %vm1743, %v4483, -inf
      %4650 = vmax.xlane.f32.xlu0 %v4649
      %v4651 = vpop.xlane.xlu0 %4650
      %v4652 = vsel %vm1743, %v4488, -inf
      %4653 = vmax.xlane.f32.xlu0 %v4652
      %v4654 = vpop.xlane.xlu0 %4653
      %v4655 = vsel %vm1743, %v4493, -inf
      %4656 = vmax.xlane.f32.xlu0 %v4655
      %v4657 = vpop.xlane.xlu0 %4656
      %v4658 = vsel %vm1743, %v4498, -inf
      %4659 = vmax.xlane.f32.xlu0 %v4658
      %v4660 = vpop.xlane.xlu0 %4659
      %v4661 = vsel %vm1743, %v4503, -inf
      %4662 = vmax.xlane.f32.xlu0 %v4661
      %v4663 = vpop.xlane.xlu0 %4662
      %v4664 = vsel %vm1743, %v4508, -inf
      %4665 = vmax.xlane.f32.xlu0 %v4664
      %v4666 = vpop.xlane.xlu0 %4665
      %v4667 = vsel %vm1743, %v4513, -inf
      %4668 = vmax.xlane.f32.xlu0 %v4667
      %v4669 = vpop.xlane.xlu0 %4668
      %v4670 = vsel %vm1743, %v4518, -inf
      %4671 = vmax.xlane.f32.xlu0 %v4670
      %v4672 = vpop.xlane.xlu0 %4671
      %v4673 = vsel %vm1743, %v4523, -inf
      %4674 = vmax.xlane.f32.xlu0 %v4673
      %v4675 = vpop.xlane.xlu0 %4674
      %v4676 = vsel %vm1743, %v4528, -inf
      %4677 = vmax.xlane.f32.xlu0 %v4676
      %v4678 = vpop.xlane.xlu0 %4677
      %v4679 = vsel %vm1743, %v4533, -inf
      %4680 = vmax.xlane.f32.xlu0 %v4679
      %v4681 = vpop.xlane.xlu0 %4680
      %v4682 = vsel %vm1743, %v4538, -inf
      %4683 = vmax.xlane.f32.xlu0 %v4682
      %v4684 = vpop.xlane.xlu0 %4683
      %v4685 = vsel %vm1743, %v4543, -inf
      %4686 = vmax.xlane.f32.xlu0 %v4685
      %v4687 = vpop.xlane.xlu0 %4686
      %v4688 = vsel %vm1743, %v4548, -inf
      %4689 = vmax.xlane.f32.xlu0 %v4688
      %v4690 = vpop.xlane.xlu0 %4689
      %v4691 = vsel %vm1743, %v4553, -inf
      %4692 = vmax.xlane.f32.xlu0 %v4691
      %v4693 = vpop.xlane.xlu0 %4692
      %v4694 = vsel %vm1743, %v4558, -inf
      %4695 = vmax.xlane.f32.xlu0 %v4694
      %v4696 = vpop.xlane.xlu0 %4695
      %v4697 = vsel %vm1743, %v4563, -inf
      %4698 = vmax.xlane.f32.xlu0 %v4697
      %v4699 = vpop.xlane.xlu0 %4698
      %v4700 = vsel %vm1743, %v4568, -inf
      %4701 = vmax.xlane.f32.xlu0 %v4700
      %v4702 = vpop.xlane.xlu0 %4701
      %v4703 = vsel %vm1743, %v4573, -inf
      %4704 = vmax.xlane.f32.xlu0 %v4703
      %v4705 = vpop.xlane.xlu0 %4704
      %v4706 = vsel %vm1743, %v4578, -inf
      %4707 = vmax.xlane.f32.xlu0 %v4706
      %v4708 = vpop.xlane.xlu0 %4707
      %v4709 = vsel %vm1743, %v4583, -inf
      %4710 = vmax.xlane.f32.xlu0 %v4709
      %v4711 = vpop.xlane.xlu0 %4710
      %v4712 = vsel %vm1743, %v4588, -inf
      %4713 = vmax.xlane.f32.xlu0 %v4712
      %v4714 = vpop.xlane.xlu0 %4713
      %v4715 = vsel %vm1743, %v4593, -inf
      %4716 = vmax.xlane.f32.xlu0 %v4715
      %v4717 = vpop.xlane.xlu0 %4716
      %v4718 = vsel %vm1743, %v4598, -inf
      %4719 = vmax.xlane.f32.xlu0 %v4718
      %v4720 = vpop.xlane.xlu0 %4719
      %v4721 = vsel %vm1743, %v4603, -inf
      %4722 = vmax.xlane.f32.xlu0 %v4721
      %v4723 = vpop.xlane.xlu0 %4722
      %v4724 = vsel %vm1743, %v4608, -inf
      %4725 = vmax.xlane.f32.xlu0 %v4724
      %v4726 = vpop.xlane.xlu0 %4725
      %v4727 = vsel %vm1743, %v4613, -inf
      %4728 = vmax.xlane.f32.xlu0 %v4727
      %v4729 = vpop.xlane.xlu0 %4728
      %v4730 = vsel %vm1743, %v4618, -inf
      %4731 = vmax.xlane.f32.xlu0 %v4730
      %v4732 = vpop.xlane.xlu0 %4731
      %v4733 = vsel %vm1743, %v4623, -inf
      %4734 = vmax.xlane.f32.xlu0 %v4733
      %v4735 = vpop.xlane.xlu0 %4734
      %v4736 = vsel %vm1743, %v4628, -inf
      %4737 = vmax.xlane.f32.xlu0 %v4736
      %v4738 = vpop.xlane.xlu0 %4737
      %v4739 = vsub.f32 %v4453, %v4633
      %v4740 = vsub.f32 %v4458, %v4636
      %v4741 = vsub.f32 %v4463, %v4639
      %v4742 = vsub.f32 %v4468, %v4642
      %v4743 = vsub.f32 %v4473, %v4645
      %v4744 = vsub.f32 %v4478, %v4648
      %v4745 = vsub.f32 %v4483, %v4651
      %v4746 = vsub.f32 %v4488, %v4654
      %v4747 = vsub.f32 %v4493, %v4657
      %v4748 = vsub.f32 %v4498, %v4660
      %v4749 = vsub.f32 %v4503, %v4663
      %v4750 = vsub.f32 %v4508, %v4666
      %v4751 = vsub.f32 %v4513, %v4669
      %v4752 = vsub.f32 %v4518, %v4672
      %v4753 = vsub.f32 %v4523, %v4675
      %v4754 = vsub.f32 %v4528, %v4678
      %v4755 = vsub.f32 %v4533, %v4681
      %v4756 = vsub.f32 %v4538, %v4684
      %v4757 = vsub.f32 %v4543, %v4687
      %v4758 = vsub.f32 %v4548, %v4690
      %v4759 = vsub.f32 %v4553, %v4693
      %v4760 = vsub.f32 %v4558, %v4696
      %v4761 = vsub.f32 %v4563, %v4699
      %v4762 = vsub.f32 %v4568, %v4702
      %v4763 = vsub.f32 %v4573, %v4705
      %v4764 = vsub.f32 %v4578, %v4708
      %v4765 = vsub.f32 %v4583, %v4711
      %v4766 = vsub.f32 %v4588, %v4714
      %v4767 = vsub.f32 %v4593, %v4717
      %v4768 = vsub.f32 %v4598, %v4720
      %v4769 = vsub.f32 %v4603, %v4723
      %v4770 = vsub.f32 %v4608, %v4726
      %v4771 = vsub.f32 %v4613, %v4729
      %v4772 = vsub.f32 %v4618, %v4732
      %v4773 = vsub.f32 %v4623, %v4735
      %v4774 = vsub.f32 %v4628, %v4738
      %v4775 = vmul.f32 %v4739, 1.442695
      %v4776 = vpow.pop %v4775
      %v4777 = vmul.f32 %v4740, 1.442695
      %v4778 = vpow.pop %v4777
      %v4779 = vmul.f32 %v4741, 1.442695
      %v4780 = vpow.pop %v4779
      %v4781 = vmul.f32 %v4742, 1.442695
      %v4782 = vpow.pop %v4781
      %v4783 = vmul.f32 %v4743, 1.442695
      %v4784 = vpow.pop %v4783
      %v4785 = vmul.f32 %v4744, 1.442695
      %v4786 = vpow.pop %v4785
      %v4787 = vmul.f32 %v4745, 1.442695
      %v4788 = vpow.pop %v4787
      %v4789 = vmul.f32 %v4746, 1.442695
      %v4790 = vpow.pop %v4789
      %v4791 = vmul.f32 %v4747, 1.442695
      %v4792 = vpow.pop %v4791
      %v4793 = vmul.f32 %v4748, 1.442695
      %v4794 = vpow.pop %v4793
      %v4795 = vmul.f32 %v4749, 1.442695
      %v4796 = vpow.pop %v4795
      %v4797 = vmul.f32 %v4750, 1.442695
      %v4798 = vpow.pop %v4797
      %v4799 = vmul.f32 %v4751, 1.442695
      %v4800 = vpow.pop %v4799
      %v4801 = vmul.f32 %v4752, 1.442695
      %v4802 = vpow.pop %v4801
      %v4803 = vmul.f32 %v4753, 1.442695
      %v4804 = vpow.pop %v4803
      %v4805 = vmul.f32 %v4754, 1.442695
      %v4806 = vpow.pop %v4805
      %v4807 = vmul.f32 %v4755, 1.442695
      %v4808 = vpow.pop %v4807
      %v4809 = vmul.f32 %v4756, 1.442695
      %v4810 = vpow.pop %v4809
      %v4811 = vmul.f32 %v4757, 1.442695
      %v4812 = vpow.pop %v4811
      %v4813 = vmul.f32 %v4758, 1.442695
      %v4814 = vpow.pop %v4813
      %v4815 = vmul.f32 %v4759, 1.442695
      %v4816 = vpow.pop %v4815
      %v4817 = vmul.f32 %v4760, 1.442695
      %v4818 = vpow.pop %v4817
      %v4819 = vmul.f32 %v4761, 1.442695
      %v4820 = vpow.pop %v4819
      %v4821 = vmul.f32 %v4762, 1.442695
      %v4822 = vpow.pop %v4821
      %v4823 = vmul.f32 %v4763, 1.442695
      %v4824 = vpow.pop %v4823
      %v4825 = vmul.f32 %v4764, 1.442695
      %v4826 = vpow.pop %v4825
      %v4827 = vmul.f32 %v4765, 1.442695
      %v4828 = vpow.pop %v4827
      %v4829 = vmul.f32 %v4766, 1.442695
      %v4830 = vpow.pop %v4829
      %v4831 = vmul.f32 %v4767, 1.442695
      %v4832 = vpow.pop %v4831
      %v4833 = vmul.f32 %v4768, 1.442695
      %v4834 = vpow.pop %v4833
      %v4835 = vmul.f32 %v4769, 1.442695
      %v4836 = vpow.pop %v4835
      %v4837 = vmul.f32 %v4770, 1.442695
      %v4838 = vpow.pop %v4837
      %v4839 = vmul.f32 %v4771, 1.442695
      %v4840 = vpow.pop %v4839
      %v4841 = vmul.f32 %v4772, 1.442695
      %v4842 = vpow.pop %v4841
      %v4843 = vmul.f32 %v4773, 1.442695
      %v4844 = vpow.pop %v4843
      %v4845 = vmul.f32 %v4774, 1.442695
      %v4846 = vpow.pop %v4845
      %v4847 = vsel %vm1743, %v4776, 0.0
      %4848 = vadd.xlane.f32.xlu0 %v4847
      %v4849 = vpop.xlane.xlu0 %4848
      %v4850 = vsel %vm1743, %v4778, 0.0
      %4851 = vadd.xlane.f32.xlu0 %v4850
      %v4852 = vpop.xlane.xlu0 %4851
      %v4853 = vsel %vm1743, %v4780, 0.0
      %4854 = vadd.xlane.f32.xlu0 %v4853
      %v4855 = vpop.xlane.xlu0 %4854
      %v4856 = vsel %vm1743, %v4782, 0.0
      %4857 = vadd.xlane.f32.xlu0 %v4856
      %v4858 = vpop.xlane.xlu0 %4857
      %v4859 = vsel %vm1743, %v4784, 0.0
      %4860 = vadd.xlane.f32.xlu0 %v4859
      %v4861 = vpop.xlane.xlu0 %4860
      %v4862 = vsel %vm1743, %v4786, 0.0
      %4863 = vadd.xlane.f32.xlu0 %v4862
      %v4864 = vpop.xlane.xlu0 %4863
      %v4865 = vsel %vm1743, %v4788, 0.0
      %4866 = vadd.xlane.f32.xlu0 %v4865
      %v4867 = vpop.xlane.xlu0 %4866
      %v4868 = vsel %vm1743, %v4790, 0.0
      %4869 = vadd.xlane.f32.xlu0 %v4868
      %v4870 = vpop.xlane.xlu0 %4869
      %v4871 = vsel %vm1743, %v4792, 0.0
      %4872 = vadd.xlane.f32.xlu0 %v4871
      %v4873 = vpop.xlane.xlu0 %4872
      %v4874 = vsel %vm1743, %v4794, 0.0
      %4875 = vadd.xlane.f32.xlu0 %v4874
      %v4876 = vpop.xlane.xlu0 %4875
      %v4877 = vsel %vm1743, %v4796, 0.0
      %4878 = vadd.xlane.f32.xlu0 %v4877
      %v4879 = vpop.xlane.xlu0 %4878
      %v4880 = vsel %vm1743, %v4798, 0.0
      %4881 = vadd.xlane.f32.xlu0 %v4880
      %v4882 = vpop.xlane.xlu0 %4881
      %v4883 = vsel %vm1743, %v4800, 0.0
      %4884 = vadd.xlane.f32.xlu0 %v4883
      %v4885 = vpop.xlane.xlu0 %4884
      %v4886 = vsel %vm1743, %v4802, 0.0
      %4887 = vadd.xlane.f32.xlu0 %v4886
      %v4888 = vpop.xlane.xlu0 %4887
      %v4889 = vsel %vm1743, %v4804, 0.0
      %4890 = vadd.xlane.f32.xlu0 %v4889
      %v4891 = vpop.xlane.xlu0 %4890
      %v4892 = vsel %vm1743, %v4806, 0.0
      %4893 = vadd.xlane.f32.xlu0 %v4892
      %v4894 = vpop.xlane.xlu0 %4893
      %v4895 = vsel %vm1743, %v4808, 0.0
      %4896 = vadd.xlane.f32.xlu0 %v4895
      %v4897 = vpop.xlane.xlu0 %4896
      %v4898 = vsel %vm1743, %v4810, 0.0
      %4899 = vadd.xlane.f32.xlu0 %v4898
      %v4900 = vpop.xlane.xlu0 %4899
      %v4901 = vsel %vm1743, %v4812, 0.0
      %4902 = vadd.xlane.f32.xlu0 %v4901
      %v4903 = vpop.xlane.xlu0 %4902
      %v4904 = vsel %vm1743, %v4814, 0.0
      %4905 = vadd.xlane.f32.xlu0 %v4904
      %v4906 = vpop.xlane.xlu0 %4905
      %v4907 = vsel %vm1743, %v4816, 0.0
      %4908 = vadd.xlane.f32.xlu0 %v4907
      %v4909 = vpop.xlane.xlu0 %4908
      %v4910 = vsel %vm1743, %v4818, 0.0
      %4911 = vadd.xlane.f32.xlu0 %v4910
      %v4912 = vpop.xlane.xlu0 %4911
      %v4913 = vsel %vm1743, %v4820, 0.0
      %4914 = vadd.xlane.f32.xlu0 %v4913
      %v4915 = vpop.xlane.xlu0 %4914
      %v4916 = vsel %vm1743, %v4822, 0.0
      %4917 = vadd.xlane.f32.xlu0 %v4916
      %v4918 = vpop.xlane.xlu0 %4917
      %v4919 = vsel %vm1743, %v4824, 0.0
      %4920 = vadd.xlane.f32.xlu0 %v4919
      %v4921 = vpop.xlane.xlu0 %4920
      %v4922 = vsel %vm1743, %v4826, 0.0
      %4923 = vadd.xlane.f32.xlu0 %v4922
      %v4924 = vpop.xlane.xlu0 %4923
      %v4925 = vsel %vm1743, %v4828, 0.0
      %4926 = vadd.xlane.f32.xlu0 %v4925
      %v4927 = vpop.xlane.xlu0 %4926
      %v4928 = vsel %vm1743, %v4830, 0.0
      %4929 = vadd.xlane.f32.xlu0 %v4928
      %v4930 = vpop.xlane.xlu0 %4929
      %v4931 = vsel %vm1743, %v4832, 0.0
      %4932 = vadd.xlane.f32.xlu0 %v4931
      %v4933 = vpop.xlane.xlu0 %4932
      %v4934 = vsel %vm1743, %v4834, 0.0
      %4935 = vadd.xlane.f32.xlu0 %v4934
      %v4936 = vpop.xlane.xlu0 %4935
      %v4937 = vsel %vm1743, %v4836, 0.0
      %4938 = vadd.xlane.f32.xlu0 %v4937
      %v4939 = vpop.xlane.xlu0 %4938
      %v4940 = vsel %vm1743, %v4838, 0.0
      %4941 = vadd.xlane.f32.xlu0 %v4940
      %v4942 = vpop.xlane.xlu0 %4941
      %v4943 = vsel %vm1743, %v4840, 0.0
      %4944 = vadd.xlane.f32.xlu0 %v4943
      %v4945 = vpop.xlane.xlu0 %4944
      %v4946 = vsel %vm1743, %v4842, 0.0
      %4947 = vadd.xlane.f32.xlu0 %v4946
      %v4948 = vpop.xlane.xlu0 %4947
      %v4949 = vsel %vm1743, %v4844, 0.0
      %4950 = vadd.xlane.f32.xlu0 %v4949
      %v4951 = vpop.xlane.xlu0 %4950
      %v4952 = vsel %vm1743, %v4846, 0.0
      %4953 = vadd.xlane.f32.xlu0 %v4952
      %v4954 = vpop.xlane.xlu0 %4953
      %v4955 = vrcp.pop %v4849
      %v4956 = vmul.f32 %v4776, %v4955
      %v4957 = vrcp.pop %v4852
      %v4958 = vmul.f32 %v4778, %v4957
      %v4959 = vrcp.pop %v4855
      %v4960 = vmul.f32 %v4780, %v4959
      %v4961 = vrcp.pop %v4858
      %v4962 = vmul.f32 %v4782, %v4961
      %v4963 = vrcp.pop %v4861
      %v4964 = vmul.f32 %v4784, %v4963
      %v4965 = vrcp.pop %v4864
      %v4966 = vmul.f32 %v4786, %v4965
      %v4967 = vrcp.pop %v4867
      %v4968 = vmul.f32 %v4788, %v4967
      %v4969 = vrcp.pop %v4870
      %v4970 = vmul.f32 %v4790, %v4969
      %v4971 = vrcp.pop %v4873
      %v4972 = vmul.f32 %v4792, %v4971
      %v4973 = vrcp.pop %v4876
      %v4974 = vmul.f32 %v4794, %v4973
      %v4975 = vrcp.pop %v4879
      %v4976 = vmul.f32 %v4796, %v4975
      %v4977 = vrcp.pop %v4882
      %v4978 = vmul.f32 %v4798, %v4977
      %v4979 = vrcp.pop %v4885
      %v4980 = vmul.f32 %v4800, %v4979
      %v4981 = vrcp.pop %v4888
      %v4982 = vmul.f32 %v4802, %v4981
      %v4983 = vrcp.pop %v4891
      %v4984 = vmul.f32 %v4804, %v4983
      %v4985 = vrcp.pop %v4894
      %v4986 = vmul.f32 %v4806, %v4985
      %v4987 = vrcp.pop %v4897
      %v4988 = vmul.f32 %v4808, %v4987
      %v4989 = vrcp.pop %v4900
      %v4990 = vmul.f32 %v4810, %v4989
      %v4991 = vrcp.pop %v4903
      %v4992 = vmul.f32 %v4812, %v4991
      %v4993 = vrcp.pop %v4906
      %v4994 = vmul.f32 %v4814, %v4993
      %v4995 = vrcp.pop %v4909
      %v4996 = vmul.f32 %v4816, %v4995
      %v4997 = vrcp.pop %v4912
      %v4998 = vmul.f32 %v4818, %v4997
      %v4999 = vrcp.pop %v4915
      %v5000 = vmul.f32 %v4820, %v4999
      %v5001 = vrcp.pop %v4918
      %v5002 = vmul.f32 %v4822, %v5001
      %v5003 = vrcp.pop %v4921
      %v5004 = vmul.f32 %v4824, %v5003
      %v5005 = vrcp.pop %v4924
      %v5006 = vmul.f32 %v4826, %v5005
      %v5007 = vrcp.pop %v4927
      %v5008 = vmul.f32 %v4828, %v5007
      %v5009 = vrcp.pop %v4930
      %v5010 = vmul.f32 %v4830, %v5009
      %v5011 = vrcp.pop %v4933
      %v5012 = vmul.f32 %v4832, %v5011
      %v5013 = vrcp.pop %v4936
      %v5014 = vmul.f32 %v4834, %v5013
      %v5015 = vrcp.pop %v4939
      %v5016 = vmul.f32 %v4836, %v5015
      %v5017 = vrcp.pop %v4942
      %v5018 = vmul.f32 %v4838, %v5017
      %v5019 = vrcp.pop %v4945
      %v5020 = vmul.f32 %v4840, %v5019
      %v5021 = vrcp.pop %v4948
      %v5022 = vmul.f32 %v4842, %v5021
      %v5023 = vrcp.pop %v4951
      %v5024 = vmul.f32 %v4844, %v5023
      %v5025 = vrcp.pop %v4954
      %v5026 = vmul.f32 %v4846, %v5025
      %5027 = vst.msk [vmem:[%s286] sm:$0xff] %vm1743, %v4956
      %5028 = vst.msk [vmem:[%s286 + $0x8] sm:$0xff] %vm1743, %v4958
      %5029 = vst.msk [vmem:[%s286 + $0x10] sm:$0xff] %vm1743, %v4960
      %5030 = vst.msk [vmem:[%s286 + $0x18] sm:$0xff] %vm1743, %v4962
      %5031 = vst.msk [vmem:[%s286 + $0x20] sm:$0xff] %vm1743, %v4964
      %5032 = vst.msk [vmem:[%s286 + $0x28] sm:$0xff] %vm1743, %v4966
      %5033 = vst.msk [vmem:[%s286 + $0x30] sm:$0xff] %vm1743, %v4968
      %5034 = vst.msk [vmem:[%s286 + $0x38] sm:$0xff] %vm1743, %v4970
      %5035 = vst.msk [vmem:[%s286 + $0x40] sm:$0xff] %vm1743, %v4972
      %5036 = vst.msk [vmem:[%s286 + $0x48] sm:$0xff] %vm1743, %v4974
      %5037 = vst.msk [vmem:[%s286 + $0x50] sm:$0xff] %vm1743, %v4976
      %5038 = vst.msk [vmem:[%s286 + $0x58] sm:$0xff] %vm1743, %v4978
      %5039 = vst.msk [vmem:[%s286 + $0x60] sm:$0xff] %vm1743, %v4980
      %5040 = vst.msk [vmem:[%s286 + $0x68] sm:$0xff] %vm1743, %v4982
      %5041 = vst.msk [vmem:[%s286 + $0x70] sm:$0xff] %vm1743, %v4984
      %5042 = vst.msk [vmem:[%s286 + $0x78] sm:$0xff] %vm1743, %v4986
      %5043 = vst.msk [vmem:[%s286 + $0x80] sm:$0xff] %vm1743, %v4988
      %5044 = vst.msk [vmem:[%s286 + $0x88] sm:$0xff] %vm1743, %v4990
      %5045 = vst.msk [vmem:[%s286 + $0x90] sm:$0xff] %vm1743, %v4992
      %5046 = vst.msk [vmem:[%s286 + $0x98] sm:$0xff] %vm1743, %v4994
      %5047 = vst.msk [vmem:[%s286 + $0xa0] sm:$0xff] %vm1743, %v4996
      %5048 = vst.msk [vmem:[%s286 + $0xa8] sm:$0xff] %vm1743, %v4998
      %5049 = vst.msk [vmem:[%s286 + $0xb0] sm:$0xff] %vm1743, %v5000
      %5050 = vst.msk [vmem:[%s286 + $0xb8] sm:$0xff] %vm1743, %v5002
      %5051 = vst.msk [vmem:[%s286 + $0xc0] sm:$0xff] %vm1743, %v5004
      %5052 = vst.msk [vmem:[%s286 + $0xc8] sm:$0xff] %vm1743, %v5006
      %5053 = vst.msk [vmem:[%s286 + $0xd0] sm:$0xff] %vm1743, %v5008
      %5054 = vst.msk [vmem:[%s286 + $0xd8] sm:$0xff] %vm1743, %v5010
      %5055 = vst.msk [vmem:[%s286 + $0xe0] sm:$0xff] %vm1743, %v5012
      %5056 = vst.msk [vmem:[%s286 + $0xe8] sm:$0xff] %vm1743, %v5014
      %5057 = vst.msk [vmem:[%s286 + $0xf0] sm:$0xff] %vm1743, %v5016
      %5058 = vst.msk [vmem:[%s286 + $0xf8] sm:$0xff] %vm1743, %v5018
      %5059 = vst.msk [vmem:[%s286 + $0x100] sm:$0xff] %vm1743, %v5020
      %5060 = vst.msk [vmem:[%s286 + $0x108] sm:$0xff] %vm1743, %v5022
      %5061 = vst.msk [vmem:[%s286 + $0x110] sm:$0xff] %vm1743, %v5024
      %5062 = vst.msk [vmem:[%s286 + $0x118] sm:$0xff] %vm1743, %v5026
      %vm5063 = vcmp.ge.f32.partialorder %v4453, 0.0
      %vm5064 = vcmp.ge.f32.partialorder %v4458, 0.0
      %vm5065 = vcmp.ge.f32.partialorder %v4463, 0.0
      %vm5066 = vcmp.ge.f32.partialorder %v4468, 0.0
      %vm5067 = vcmp.ge.f32.partialorder %v4473, 0.0
      %vm5068 = vcmp.ge.f32.partialorder %v4478, 0.0
      %vm5069 = vcmp.ge.f32.partialorder %v4483, 0.0
      %vm5070 = vcmp.ge.f32.partialorder %v4488, 0.0
      %vm5071 = vcmp.ge.f32.partialorder %v4493, 0.0
      %vm5072 = vcmp.ge.f32.partialorder %v4498, 0.0
      %vm5073 = vcmp.ge.f32.partialorder %v4503, 0.0
      %vm5074 = vcmp.ge.f32.partialorder %v4508, 0.0
      %vm5075 = vcmp.ge.f32.partialorder %v4513, 0.0
      %vm5076 = vcmp.ge.f32.partialorder %v4518, 0.0
      %vm5077 = vcmp.ge.f32.partialorder %v4523, 0.0
      %vm5078 = vcmp.ge.f32.partialorder %v4528, 0.0
      %vm5079 = vcmp.ge.f32.partialorder %v4533, 0.0
      %vm5080 = vcmp.ge.f32.partialorder %v4538, 0.0
      %vm5081 = vcmp.ge.f32.partialorder %v4543, 0.0
      %vm5082 = vcmp.ge.f32.partialorder %v4548, 0.0
      %vm5083 = vcmp.ge.f32.partialorder %v4553, 0.0
      %vm5084 = vcmp.ge.f32.partialorder %v4558, 0.0
      %vm5085 = vcmp.ge.f32.partialorder %v4563, 0.0
      %vm5086 = vcmp.ge.f32.partialorder %v4568, 0.0
      %vm5087 = vcmp.ge.f32.partialorder %v4573, 0.0
      %vm5088 = vcmp.ge.f32.partialorder %v4578, 0.0
      %vm5089 = vcmp.ge.f32.partialorder %v4583, 0.0
      %vm5090 = vcmp.ge.f32.partialorder %v4588, 0.0
      %vm5091 = vcmp.ge.f32.partialorder %v4593, 0.0
      %vm5092 = vcmp.ge.f32.partialorder %v4598, 0.0
      %vm5093 = vcmp.ge.f32.partialorder %v4603, 0.0
      %vm5094 = vcmp.ge.f32.partialorder %v4608, 0.0
      %vm5095 = vcmp.ge.f32.partialorder %v4613, 0.0
      %vm5096 = vcmp.ge.f32.partialorder %v4618, 0.0
      %vm5097 = vcmp.ge.f32.partialorder %v4623, 0.0
      %vm5098 = vcmp.ge.f32.partialorder %v4628, 0.0
      %v5099 = vsub.f32 0.0, %v4453
      %v5100 = vsub.f32 0.0, %v4458
      %v5101 = vsub.f32 0.0, %v4463
      %v5102 = vsub.f32 0.0, %v4468
      %v5103 = vsub.f32 0.0, %v4473
      %v5104 = vsub.f32 0.0, %v4478
      %v5105 = vsub.f32 0.0, %v4483
      %v5106 = vsub.f32 0.0, %v4488
      %v5107 = vsub.f32 0.0, %v4493
      %v5108 = vsub.f32 0.0, %v4498
      %v5109 = vsub.f32 0.0, %v4503
      %v5110 = vsub.f32 0.0, %v4508
      %v5111 = vsub.f32 0.0, %v4513
      %v5112 = vsub.f32 0.0, %v4518
      %v5113 = vsub.f32 0.0, %v4523
      %v5114 = vsub.f32 0.0, %v4528
      %v5115 = vsub.f32 0.0, %v4533
      %v5116 = vsub.f32 0.0, %v4538
      %v5117 = vsub.f32 0.0, %v4543
      %v5118 = vsub.f32 0.0, %v4548
      %v5119 = vsub.f32 0.0, %v4553
      %v5120 = vsub.f32 0.0, %v4558
      %v5121 = vsub.f32 0.0, %v4563
      %v5122 = vsub.f32 0.0, %v4568
      %v5123 = vsub.f32 0.0, %v4573
      %v5124 = vsub.f32 0.0, %v4578
      %v5125 = vsub.f32 0.0, %v4583
      %v5126 = vsub.f32 0.0, %v4588
      %v5127 = vsub.f32 0.0, %v4593
      %v5128 = vsub.f32 0.0, %v4598
      %v5129 = vsub.f32 0.0, %v4603
      %v5130 = vsub.f32 0.0, %v4608
      %v5131 = vsub.f32 0.0, %v4613
      %v5132 = vsub.f32 0.0, %v4618
      %v5133 = vsub.f32 0.0, %v4623
      %v5134 = vsub.f32 0.0, %v4628
      %v5135 = vsel %vm5063, %v5099, %v4453
      %v5136 = vsel %vm5064, %v5100, %v4458
      %v5137 = vsel %vm5065, %v5101, %v4463
      %v5138 = vsel %vm5066, %v5102, %v4468
      %v5139 = vsel %vm5067, %v5103, %v4473
      %v5140 = vsel %vm5068, %v5104, %v4478
      %v5141 = vsel %vm5069, %v5105, %v4483
      %v5142 = vsel %vm5070, %v5106, %v4488
      %v5143 = vsel %vm5071, %v5107, %v4493
      %v5144 = vsel %vm5072, %v5108, %v4498
      %v5145 = vsel %vm5073, %v5109, %v4503
      %v5146 = vsel %vm5074, %v5110, %v4508
      %v5147 = vsel %vm5075, %v5111, %v4513
      %v5148 = vsel %vm5076, %v5112, %v4518
      %v5149 = vsel %vm5077, %v5113, %v4523
      %v5150 = vsel %vm5078, %v5114, %v4528
      %v5151 = vsel %vm5079, %v5115, %v4533
      %v5152 = vsel %vm5080, %v5116, %v4538
      %v5153 = vsel %vm5081, %v5117, %v4543
      %v5154 = vsel %vm5082, %v5118, %v4548
      %v5155 = vsel %vm5083, %v5119, %v4553
      %v5156 = vsel %vm5084, %v5120, %v4558
      %v5157 = vsel %vm5085, %v5121, %v4563
      %v5158 = vsel %vm5086, %v5122, %v4568
      %v5159 = vsel %vm5087, %v5123, %v4573
      %v5160 = vsel %vm5088, %v5124, %v4578
      %v5161 = vsel %vm5089, %v5125, %v4583
      %v5162 = vsel %vm5090, %v5126, %v4588
      %v5163 = vsel %vm5091, %v5127, %v4593
      %v5164 = vsel %vm5092, %v5128, %v4598
      %v5165 = vsel %vm5093, %v5129, %v4603
      %v5166 = vsel %vm5094, %v5130, %v4608
      %v5167 = vsel %vm5095, %v5131, %v4613
      %v5168 = vsel %vm5096, %v5132, %v4618
      %v5169 = vsel %vm5097, %v5133, %v4623
      %v5170 = vsel %vm5098, %v5134, %v4628
      %v5171 = vmul.f32 %v5135, 1.442695
      %v5172 = vpow.pop %v5171
      %v5173 = vmul.f32 %v5136, 1.442695
      %v5174 = vpow.pop %v5173
      %v5175 = vmul.f32 %v5137, 1.442695
      %v5176 = vpow.pop %v5175
      %v5177 = vmul.f32 %v5138, 1.442695
      %v5178 = vpow.pop %v5177
      %v5179 = vmul.f32 %v5139, 1.442695
      %v5180 = vpow.pop %v5179
      %v5181 = vmul.f32 %v5140, 1.442695
      %v5182 = vpow.pop %v5181
      %v5183 = vmul.f32 %v5141, 1.442695
      %v5184 = vpow.pop %v5183
      %v5185 = vmul.f32 %v5142, 1.442695
      %v5186 = vpow.pop %v5185
      %v5187 = vmul.f32 %v5143, 1.442695
      %v5188 = vpow.pop %v5187
      %v5189 = vmul.f32 %v5144, 1.442695
      %v5190 = vpow.pop %v5189
      %v5191 = vmul.f32 %v5145, 1.442695
      %v5192 = vpow.pop %v5191
      %v5193 = vmul.f32 %v5146, 1.442695
      %v5194 = vpow.pop %v5193
      %v5195 = vmul.f32 %v5147, 1.442695
      %v5196 = vpow.pop %v5195
      %v5197 = vmul.f32 %v5148, 1.442695
      %v5198 = vpow.pop %v5197
      %v5199 = vmul.f32 %v5149, 1.442695
      %v5200 = vpow.pop %v5199
      %v5201 = vmul.f32 %v5150, 1.442695
      %v5202 = vpow.pop %v5201
      %v5203 = vmul.f32 %v5151, 1.442695
      %v5204 = vpow.pop %v5203
      %v5205 = vmul.f32 %v5152, 1.442695
      %v5206 = vpow.pop %v5205
      %v5207 = vmul.f32 %v5153, 1.442695
      %v5208 = vpow.pop %v5207
      %v5209 = vmul.f32 %v5154, 1.442695
      %v5210 = vpow.pop %v5209
      %v5211 = vmul.f32 %v5155, 1.442695
      %v5212 = vpow.pop %v5211
      %v5213 = vmul.f32 %v5156, 1.442695
      %v5214 = vpow.pop %v5213
      %v5215 = vmul.f32 %v5157, 1.442695
      %v5216 = vpow.pop %v5215
      %v5217 = vmul.f32 %v5158, 1.442695
      %v5218 = vpow.pop %v5217
      %v5219 = vmul.f32 %v5159, 1.442695
      %v5220 = vpow.pop %v5219
      %v5221 = vmul.f32 %v5160, 1.442695
      %v5222 = vpow.pop %v5221
      %v5223 = vmul.f32 %v5161, 1.442695
      %v5224 = vpow.pop %v5223
      %v5225 = vmul.f32 %v5162, 1.442695
      %v5226 = vpow.pop %v5225
      %v5227 = vmul.f32 %v5163, 1.442695
      %v5228 = vpow.pop %v5227
      %v5229 = vmul.f32 %v5164, 1.442695
      %v5230 = vpow.pop %v5229
      %v5231 = vmul.f32 %v5165, 1.442695
      %v5232 = vpow.pop %v5231
      %v5233 = vmul.f32 %v5166, 1.442695
      %v5234 = vpow.pop %v5233
      %v5235 = vmul.f32 %v5167, 1.442695
      %v5236 = vpow.pop %v5235
      %v5237 = vmul.f32 %v5168, 1.442695
      %v5238 = vpow.pop %v5237
      %v5239 = vmul.f32 %v5169, 1.442695
      %v5240 = vpow.pop %v5239
      %v5241 = vmul.f32 %v5170, 1.442695
      %v5242 = vpow.pop %v5241
      %v5243 = vadd.f32 %v5172, 1.0
      %v5244 = vadd.f32 %v5174, 1.0
      %v5245 = vadd.f32 %v5176, 1.0
      %v5246 = vadd.f32 %v5178, 1.0
      %v5247 = vadd.f32 %v5180, 1.0
      %v5248 = vadd.f32 %v5182, 1.0
      %v5249 = vadd.f32 %v5184, 1.0
      %v5250 = vadd.f32 %v5186, 1.0
      %v5251 = vadd.f32 %v5188, 1.0
      %v5252 = vadd.f32 %v5190, 1.0
      %v5253 = vadd.f32 %v5192, 1.0
      %v5254 = vadd.f32 %v5194, 1.0
      %v5255 = vadd.f32 %v5196, 1.0
      %v5256 = vadd.f32 %v5198, 1.0
      %v5257 = vadd.f32 %v5200, 1.0
      %v5258 = vadd.f32 %v5202, 1.0
      %v5259 = vadd.f32 %v5204, 1.0
      %v5260 = vadd.f32 %v5206, 1.0
      %v5261 = vadd.f32 %v5208, 1.0
      %v5262 = vadd.f32 %v5210, 1.0
      %v5263 = vadd.f32 %v5212, 1.0
      %v5264 = vadd.f32 %v5214, 1.0
      %v5265 = vadd.f32 %v5216, 1.0
      %v5266 = vadd.f32 %v5218, 1.0
      %v5267 = vadd.f32 %v5220, 1.0
      %v5268 = vadd.f32 %v5222, 1.0
      %v5269 = vadd.f32 %v5224, 1.0
      %v5270 = vadd.f32 %v5226, 1.0
      %v5271 = vadd.f32 %v5228, 1.0
      %v5272 = vadd.f32 %v5230, 1.0
      %v5273 = vadd.f32 %v5232, 1.0
      %v5274 = vadd.f32 %v5234, 1.0
      %v5275 = vadd.f32 %v5236, 1.0
      %v5276 = vadd.f32 %v5238, 1.0
      %v5277 = vadd.f32 %v5240, 1.0
      %v5278 = vadd.f32 %v5242, 1.0
      %v5279 = vrcp.pop %v5243
      %v5280 = vmul.f32 1.0, %v5279
      %v5281 = vrcp.pop %v5244
      %v5282 = vmul.f32 1.0, %v5281
      %v5283 = vrcp.pop %v5245
      %v5284 = vmul.f32 1.0, %v5283
      %v5285 = vrcp.pop %v5246
      %v5286 = vmul.f32 1.0, %v5285
      %v5287 = vrcp.pop %v5247
      %v5288 = vmul.f32 1.0, %v5287
      %v5289 = vrcp.pop %v5248
      %v5290 = vmul.f32 1.0, %v5289
      %v5291 = vrcp.pop %v5249
      %v5292 = vmul.f32 1.0, %v5291
      %v5293 = vrcp.pop %v5250
      %v5294 = vmul.f32 1.0, %v5293
      %v5295 = vrcp.pop %v5251
      %v5296 = vmul.f32 1.0, %v5295
      %v5297 = vrcp.pop %v5252
      %v5298 = vmul.f32 1.0, %v5297
      %v5299 = vrcp.pop %v5253
      %v5300 = vmul.f32 1.0, %v5299
      %v5301 = vrcp.pop %v5254
      %v5302 = vmul.f32 1.0, %v5301
      %v5303 = vrcp.pop %v5255
      %v5304 = vmul.f32 1.0, %v5303
      %v5305 = vrcp.pop %v5256
      %v5306 = vmul.f32 1.0, %v5305
      %v5307 = vrcp.pop %v5257
      %v5308 = vmul.f32 1.0, %v5307
      %v5309 = vrcp.pop %v5258
      %v5310 = vmul.f32 1.0, %v5309
      %v5311 = vrcp.pop %v5259
      %v5312 = vmul.f32 1.0, %v5311
      %v5313 = vrcp.pop %v5260
      %v5314 = vmul.f32 1.0, %v5313
      %v5315 = vrcp.pop %v5261
      %v5316 = vmul.f32 1.0, %v5315
      %v5317 = vrcp.pop %v5262
      %v5318 = vmul.f32 1.0, %v5317
      %v5319 = vrcp.pop %v5263
      %v5320 = vmul.f32 1.0, %v5319
      %v5321 = vrcp.pop %v5264
      %v5322 = vmul.f32 1.0, %v5321
      %v5323 = vrcp.pop %v5265
      %v5324 = vmul.f32 1.0, %v5323
      %v5325 = vrcp.pop %v5266
      %v5326 = vmul.f32 1.0, %v5325
      %v5327 = vrcp.pop %v5267
      %v5328 = vmul.f32 1.0, %v5327
      %v5329 = vrcp.pop %v5268
      %v5330 = vmul.f32 1.0, %v5329
      %v5331 = vrcp.pop %v5269
      %v5332 = vmul.f32 1.0, %v5331
      %v5333 = vrcp.pop %v5270
      %v5334 = vmul.f32 1.0, %v5333
      %v5335 = vrcp.pop %v5271
      %v5336 = vmul.f32 1.0, %v5335
      %v5337 = vrcp.pop %v5272
      %v5338 = vmul.f32 1.0, %v5337
      %v5339 = vrcp.pop %v5273
      %v5340 = vmul.f32 1.0, %v5339
      %v5341 = vrcp.pop %v5274
      %v5342 = vmul.f32 1.0, %v5341
      %v5343 = vrcp.pop %v5275
      %v5344 = vmul.f32 1.0, %v5343
      %v5345 = vrcp.pop %v5276
      %v5346 = vmul.f32 1.0, %v5345
      %v5347 = vrcp.pop %v5277
      %v5348 = vmul.f32 1.0, %v5347
      %v5349 = vrcp.pop %v5278
      %v5350 = vmul.f32 1.0, %v5349
      %v5351 = vmul.f32 %v5172, %v5279
      %v5352 = vmul.f32 %v5174, %v5281
      %v5353 = vmul.f32 %v5176, %v5283
      %v5354 = vmul.f32 %v5178, %v5285
      %v5355 = vmul.f32 %v5180, %v5287
      %v5356 = vmul.f32 %v5182, %v5289
      %v5357 = vmul.f32 %v5184, %v5291
      %v5358 = vmul.f32 %v5186, %v5293
      %v5359 = vmul.f32 %v5188, %v5295
      %v5360 = vmul.f32 %v5190, %v5297
      %v5361 = vmul.f32 %v5192, %v5299
      %v5362 = vmul.f32 %v5194, %v5301
      %v5363 = vmul.f32 %v5196, %v5303
      %v5364 = vmul.f32 %v5198, %v5305
      %v5365 = vmul.f32 %v5200, %v5307
      %v5366 = vmul.f32 %v5202, %v5309
      %v5367 = vmul.f32 %v5204, %v5311
      %v5368 = vmul.f32 %v5206, %v5313
      %v5369 = vmul.f32 %v5208, %v5315
      %v5370 = vmul.f32 %v5210, %v5317
      %v5371 = vmul.f32 %v5212, %v5319
      %v5372 = vmul.f32 %v5214, %v5321
      %v5373 = vmul.f32 %v5216, %v5323
      %v5374 = vmul.f32 %v5218, %v5325
      %v5375 = vmul.f32 %v5220, %v5327
      %v5376 = vmul.f32 %v5222, %v5329
      %v5377 = vmul.f32 %v5224, %v5331
      %v5378 = vmul.f32 %v5226, %v5333
      %v5379 = vmul.f32 %v5228, %v5335
      %v5380 = vmul.f32 %v5230, %v5337
      %v5381 = vmul.f32 %v5232, %v5339
      %v5382 = vmul.f32 %v5234, %v5341
      %v5383 = vmul.f32 %v5236, %v5343
      %v5384 = vmul.f32 %v5238, %v5345
      %v5385 = vmul.f32 %v5240, %v5347
      %v5386 = vmul.f32 %v5242, %v5349
      %v5387 = vsel %vm5063, %v5280, %v5351
      %v5388 = vsel %vm5064, %v5282, %v5352
      %v5389 = vsel %vm5065, %v5284, %v5353
      %v5390 = vsel %vm5066, %v5286, %v5354
      %v5391 = vsel %vm5067, %v5288, %v5355
      %v5392 = vsel %vm5068, %v5290, %v5356
      %v5393 = vsel %vm5069, %v5292, %v5357
      %v5394 = vsel %vm5070, %v5294, %v5358
      %v5395 = vsel %vm5071, %v5296, %v5359
      %v5396 = vsel %vm5072, %v5298, %v5360
      %v5397 = vsel %vm5073, %v5300, %v5361
      %v5398 = vsel %vm5074, %v5302, %v5362
      %v5399 = vsel %vm5075, %v5304, %v5363
      %v5400 = vsel %vm5076, %v5306, %v5364
      %v5401 = vsel %vm5077, %v5308, %v5365
      %v5402 = vsel %vm5078, %v5310, %v5366
      %v5403 = vsel %vm5079, %v5312, %v5367
      %v5404 = vsel %vm5080, %v5314, %v5368
      %v5405 = vsel %vm5081, %v5316, %v5369
      %v5406 = vsel %vm5082, %v5318, %v5370
      %v5407 = vsel %vm5083, %v5320, %v5371
      %v5408 = vsel %vm5084, %v5322, %v5372
      %v5409 = vsel %vm5085, %v5324, %v5373
      %v5410 = vsel %vm5086, %v5326, %v5374
      %v5411 = vsel %vm5087, %v5328, %v5375
      %v5412 = vsel %vm5088, %v5330, %v5376
      %v5413 = vsel %vm5089, %v5332, %v5377
      %v5414 = vsel %vm5090, %v5334, %v5378
      %v5415 = vsel %vm5091, %v5336, %v5379
      %v5416 = vsel %vm5092, %v5338, %v5380
      %v5417 = vsel %vm5093, %v5340, %v5381
      %v5418 = vsel %vm5094, %v5342, %v5382
      %v5419 = vsel %vm5095, %v5344, %v5383
      %v5420 = vsel %vm5096, %v5346, %v5384
      %v5421 = vsel %vm5097, %v5348, %v5385
      %v5422 = vsel %vm5098, %v5350, %v5386
      %5459 = vrot.lane.b32.xlu0 %v5387, 112
      %v5460 = vpop.permute.xlu0 %5459
      %5461 = vrot.lane.b32.xlu0 %v5388, 112
      %v5462 = vpop.permute.xlu0 %5461
      %5463 = vrot.lane.b32.xlu0 %v5389, 112
      %v5464 = vpop.permute.xlu0 %5463
      %5465 = vrot.lane.b32.xlu0 %v5390, 112
      %v5466 = vpop.permute.xlu0 %5465
      %5467 = vrot.lane.b32.xlu0 %v5391, 112
      %v5468 = vpop.permute.xlu0 %5467
      %5469 = vrot.lane.b32.xlu0 %v5392, 112
      %v5470 = vpop.permute.xlu0 %5469
      %5471 = vrot.lane.b32.xlu0 %v5393, 112
      %v5472 = vpop.permute.xlu0 %5471
      %5473 = vrot.lane.b32.xlu0 %v5394, 112
      %v5474 = vpop.permute.xlu0 %5473
      %5475 = vrot.lane.b32.xlu0 %v5395, 112
      %v5476 = vpop.permute.xlu0 %5475
      %5477 = vrot.lane.b32.xlu0 %v5396, 112
      %v5478 = vpop.permute.xlu0 %5477
      %5479 = vrot.lane.b32.xlu0 %v5397, 112
      %v5480 = vpop.permute.xlu0 %5479
      %5481 = vrot.lane.b32.xlu0 %v5398, 112
      %v5482 = vpop.permute.xlu0 %5481
      %5483 = vrot.lane.b32.xlu0 %v5399, 112
      %v5484 = vpop.permute.xlu0 %5483
      %5485 = vrot.lane.b32.xlu0 %v5400, 112
      %v5486 = vpop.permute.xlu0 %5485
      %5487 = vrot.lane.b32.xlu0 %v5401, 112
      %v5488 = vpop.permute.xlu0 %5487
      %5489 = vrot.lane.b32.xlu0 %v5402, 112
      %v5490 = vpop.permute.xlu0 %5489
      %5491 = vrot.lane.b32.xlu0 %v5403, 112
      %v5492 = vpop.permute.xlu0 %5491
      %5493 = vrot.lane.b32.xlu0 %v5404, 112
      %v5494 = vpop.permute.xlu0 %5493
      %5495 = vrot.lane.b32.xlu0 %v5405, 112
      %v5496 = vpop.permute.xlu0 %5495
      %5497 = vrot.lane.b32.xlu0 %v5406, 112
      %v5498 = vpop.permute.xlu0 %5497
      %5499 = vrot.lane.b32.xlu0 %v5407, 112
      %v5500 = vpop.permute.xlu0 %5499
      %5501 = vrot.lane.b32.xlu0 %v5408, 112
      %v5502 = vpop.permute.xlu0 %5501
      %5503 = vrot.lane.b32.xlu0 %v5409, 112
      %v5504 = vpop.permute.xlu0 %5503
      %5505 = vrot.lane.b32.xlu0 %v5410, 112
      %v5506 = vpop.permute.xlu0 %5505
      %5507 = vrot.lane.b32.xlu0 %v5411, 112
      %v5508 = vpop.permute.xlu0 %5507
      %5509 = vrot.lane.b32.xlu0 %v5412, 112
      %v5510 = vpop.permute.xlu0 %5509
      %5511 = vrot.lane.b32.xlu0 %v5413, 112
      %v5512 = vpop.permute.xlu0 %5511
      %5513 = vrot.lane.b32.xlu0 %v5414, 112
      %v5514 = vpop.permute.xlu0 %5513
      %5515 = vrot.lane.b32.xlu0 %v5415, 112
      %v5516 = vpop.permute.xlu0 %5515
      %5517 = vrot.lane.b32.xlu0 %v5416, 112
      %v5518 = vpop.permute.xlu0 %5517
      %5519 = vrot.lane.b32.xlu0 %v5417, 112
      %v5520 = vpop.permute.xlu0 %5519
      %5521 = vrot.lane.b32.xlu0 %v5418, 112
      %v5522 = vpop.permute.xlu0 %5521
      %5523 = vrot.lane.b32.xlu0 %v5419, 112
      %v5524 = vpop.permute.xlu0 %5523
      %5525 = vrot.lane.b32.xlu0 %v5420, 112
      %v5526 = vpop.permute.xlu0 %5525
      %5527 = vrot.lane.b32.xlu0 %v5421, 112
      %v5528 = vpop.permute.xlu0 %5527
      %5529 = vrot.lane.b32.xlu0 %v5422, 112
      %v5530 = vpop.permute.xlu0 %5529
      %v5567 = vsel %vm1743, %v5460, 0.0
      %5568 = vadd.xlane.f32.xlu0 %v5567
      %v5569 = vpop.xlane.xlu0 %5568
      %v5570 = vsel %vm1743, %v5462, 0.0
      %5571 = vadd.xlane.f32.xlu0 %v5570
      %v5572 = vpop.xlane.xlu0 %5571
      %v5573 = vsel %vm1743, %v5464, 0.0
      %5574 = vadd.xlane.f32.xlu0 %v5573
      %v5575 = vpop.xlane.xlu0 %5574
      %v5576 = vsel %vm1743, %v5466, 0.0
      %5577 = vadd.xlane.f32.xlu0 %v5576
      %v5578 = vpop.xlane.xlu0 %5577
      %v5579 = vsel %vm1743, %v5468, 0.0
      %5580 = vadd.xlane.f32.xlu0 %v5579
      %v5581 = vpop.xlane.xlu0 %5580
      %v5582 = vsel %vm1743, %v5470, 0.0
      %5583 = vadd.xlane.f32.xlu0 %v5582
      %v5584 = vpop.xlane.xlu0 %5583
      %v5585 = vsel %vm1743, %v5472, 0.0
      %5586 = vadd.xlane.f32.xlu0 %v5585
      %v5587 = vpop.xlane.xlu0 %5586
      %v5588 = vsel %vm1743, %v5474, 0.0
      %5589 = vadd.xlane.f32.xlu0 %v5588
      %v5590 = vpop.xlane.xlu0 %5589
      %v5591 = vsel %vm1743, %v5476, 0.0
      %5592 = vadd.xlane.f32.xlu0 %v5591
      %v5593 = vpop.xlane.xlu0 %5592
      %v5594 = vsel %vm1743, %v5478, 0.0
      %5595 = vadd.xlane.f32.xlu0 %v5594
      %v5596 = vpop.xlane.xlu0 %5595
      %v5597 = vsel %vm1743, %v5480, 0.0
      %5598 = vadd.xlane.f32.xlu0 %v5597
      %v5599 = vpop.xlane.xlu0 %5598
      %v5600 = vsel %vm1743, %v5482, 0.0
      %5601 = vadd.xlane.f32.xlu0 %v5600
      %v5602 = vpop.xlane.xlu0 %5601
      %v5603 = vsel %vm1743, %v5484, 0.0
      %5604 = vadd.xlane.f32.xlu0 %v5603
      %v5605 = vpop.xlane.xlu0 %5604
      %v5606 = vsel %vm1743, %v5486, 0.0
      %5607 = vadd.xlane.f32.xlu0 %v5606
      %v5608 = vpop.xlane.xlu0 %5607
      %v5609 = vsel %vm1743, %v5488, 0.0
      %5610 = vadd.xlane.f32.xlu0 %v5609
      %v5611 = vpop.xlane.xlu0 %5610
      %v5612 = vsel %vm1743, %v5490, 0.0
      %5613 = vadd.xlane.f32.xlu0 %v5612
      %v5614 = vpop.xlane.xlu0 %5613
      %v5615 = vsel %vm1743, %v5492, 0.0
      %5616 = vadd.xlane.f32.xlu0 %v5615
      %v5617 = vpop.xlane.xlu0 %5616
      %v5618 = vsel %vm1743, %v5494, 0.0
      %5619 = vadd.xlane.f32.xlu0 %v5618
      %v5620 = vpop.xlane.xlu0 %5619
      %v5621 = vsel %vm1743, %v5496, 0.0
      %5622 = vadd.xlane.f32.xlu0 %v5621
      %v5623 = vpop.xlane.xlu0 %5622
      %v5624 = vsel %vm1743, %v5498, 0.0
      %5625 = vadd.xlane.f32.xlu0 %v5624
      %v5626 = vpop.xlane.xlu0 %5625
      %v5627 = vsel %vm1743, %v5500, 0.0
      %5628 = vadd.xlane.f32.xlu0 %v5627
      %v5629 = vpop.xlane.xlu0 %5628
      %v5630 = vsel %vm1743, %v5502, 0.0
      %5631 = vadd.xlane.f32.xlu0 %v5630
      %v5632 = vpop.xlane.xlu0 %5631
      %v5633 = vsel %vm1743, %v5504, 0.0
      %5634 = vadd.xlane.f32.xlu0 %v5633
      %v5635 = vpop.xlane.xlu0 %5634
      %v5636 = vsel %vm1743, %v5506, 0.0
      %5637 = vadd.xlane.f32.xlu0 %v5636
      %v5638 = vpop.xlane.xlu0 %5637
      %v5639 = vsel %vm1743, %v5508, 0.0
      %5640 = vadd.xlane.f32.xlu0 %v5639
      %v5641 = vpop.xlane.xlu0 %5640
      %v5642 = vsel %vm1743, %v5510, 0.0
      %5643 = vadd.xlane.f32.xlu0 %v5642
      %v5644 = vpop.xlane.xlu0 %5643
      %v5645 = vsel %vm1743, %v5512, 0.0
      %5646 = vadd.xlane.f32.xlu0 %v5645
      %v5647 = vpop.xlane.xlu0 %5646
      %v5648 = vsel %vm1743, %v5514, 0.0
      %5649 = vadd.xlane.f32.xlu0 %v5648
      %v5650 = vpop.xlane.xlu0 %5649
      %v5651 = vsel %vm1743, %v5516, 0.0
      %5652 = vadd.xlane.f32.xlu0 %v5651
      %v5653 = vpop.xlane.xlu0 %5652
      %v5654 = vsel %vm1743, %v5518, 0.0
      %5655 = vadd.xlane.f32.xlu0 %v5654
      %v5656 = vpop.xlane.xlu0 %5655
      %v5657 = vsel %vm1743, %v5520, 0.0
      %5658 = vadd.xlane.f32.xlu0 %v5657
      %v5659 = vpop.xlane.xlu0 %5658
      %v5660 = vsel %vm1743, %v5522, 0.0
      %5661 = vadd.xlane.f32.xlu0 %v5660
      %v5662 = vpop.xlane.xlu0 %5661
      %v5663 = vsel %vm1743, %v5524, 0.0
      %5664 = vadd.xlane.f32.xlu0 %v5663
      %v5665 = vpop.xlane.xlu0 %5664
      %v5666 = vsel %vm1743, %v5526, 0.0
      %5667 = vadd.xlane.f32.xlu0 %v5666
      %v5668 = vpop.xlane.xlu0 %5667
      %v5669 = vsel %vm1743, %v5528, 0.0
      %5670 = vadd.xlane.f32.xlu0 %v5669
      %v5671 = vpop.xlane.xlu0 %5670
      %v5672 = vsel %vm1743, %v5530, 0.0
      %5673 = vadd.xlane.f32.xlu0 %v5672
      %v5674 = vpop.xlane.xlu0 %5673
      %v5675 = vrcp.pop 16.0
      %v5676 = vmul.f32 %v5569, %v5675
      %v5677 = vmul.f32 %v5572, %v5675
      %v5678 = vmul.f32 %v5575, %v5675
      %v5679 = vmul.f32 %v5578, %v5675
      %v5680 = vmul.f32 %v5581, %v5675
      %v5681 = vmul.f32 %v5584, %v5675
      %v5682 = vmul.f32 %v5587, %v5675
      %v5683 = vmul.f32 %v5590, %v5675
      %v5684 = vmul.f32 %v5593, %v5675
      %v5685 = vmul.f32 %v5596, %v5675
      %v5686 = vmul.f32 %v5599, %v5675
      %v5687 = vmul.f32 %v5602, %v5675
      %v5688 = vmul.f32 %v5605, %v5675
      %v5689 = vmul.f32 %v5608, %v5675
      %v5690 = vmul.f32 %v5611, %v5675
      %v5691 = vmul.f32 %v5614, %v5675
      %v5692 = vmul.f32 %v5617, %v5675
      %v5693 = vmul.f32 %v5620, %v5675
      %v5694 = vmul.f32 %v5623, %v5675
      %v5695 = vmul.f32 %v5626, %v5675
      %v5696 = vmul.f32 %v5629, %v5675
      %v5697 = vmul.f32 %v5632, %v5675
      %v5698 = vmul.f32 %v5635, %v5675
      %v5699 = vmul.f32 %v5638, %v5675
      %v5700 = vmul.f32 %v5641, %v5675
      %v5701 = vmul.f32 %v5644, %v5675
      %v5702 = vmul.f32 %v5647, %v5675
      %v5703 = vmul.f32 %v5650, %v5675
      %v5704 = vmul.f32 %v5653, %v5675
      %v5705 = vmul.f32 %v5656, %v5675
      %v5706 = vmul.f32 %v5659, %v5675
      %v5707 = vmul.f32 %v5662, %v5675
      %v5708 = vmul.f32 %v5665, %v5675
      %v5709 = vmul.f32 %v5668, %v5675
      %v5710 = vmul.f32 %v5671, %v5675
      %v5711 = vmul.f32 %v5674, %v5675
      %vm5712 = vcmask 7168
      %5713 = vst.msk [vmem:[%s291] sm:$0xff] %vm5712, %v5676
      %5714 = vst.msk [vmem:[%s291 + $0x8] sm:$0xff] %vm5712, %v5677
      %5715 = vst.msk [vmem:[%s291 + $0x10] sm:$0xff] %vm5712, %v5678
      %5716 = vst.msk [vmem:[%s291 + $0x18] sm:$0xff] %vm5712, %v5679
      %5717 = vst.msk [vmem:[%s291 + $0x20] sm:$0xff] %vm5712, %v5680
      %5718 = vst.msk [vmem:[%s291 + $0x28] sm:$0xff] %vm5712, %v5681
      %5719 = vst.msk [vmem:[%s291 + $0x30] sm:$0xff] %vm5712, %v5682
      %5720 = vst.msk [vmem:[%s291 + $0x38] sm:$0xff] %vm5712, %v5683
      %5721 = vst.msk [vmem:[%s291 + $0x40] sm:$0xff] %vm5712, %v5684
      %5722 = vst.msk [vmem:[%s291 + $0x48] sm:$0xff] %vm5712, %v5685
      %5723 = vst.msk [vmem:[%s291 + $0x50] sm:$0xff] %vm5712, %v5686
      %5724 = vst.msk [vmem:[%s291 + $0x58] sm:$0xff] %vm5712, %v5687
      %5725 = vst.msk [vmem:[%s291 + $0x60] sm:$0xff] %vm5712, %v5688
      %5726 = vst.msk [vmem:[%s291 + $0x68] sm:$0xff] %vm5712, %v5689
      %5727 = vst.msk [vmem:[%s291 + $0x70] sm:$0xff] %vm5712, %v5690
      %5728 = vst.msk [vmem:[%s291 + $0x78] sm:$0xff] %vm5712, %v5691
      %5729 = vst.msk [vmem:[%s291 + $0x80] sm:$0xff] %vm5712, %v5692
      %5730 = vst.msk [vmem:[%s291 + $0x88] sm:$0xff] %vm5712, %v5693
      %5731 = vst.msk [vmem:[%s291 + $0x90] sm:$0xff] %vm5712, %v5694
      %5732 = vst.msk [vmem:[%s291 + $0x98] sm:$0xff] %vm5712, %v5695
      %5733 = vst.msk [vmem:[%s291 + $0xa0] sm:$0xff] %vm5712, %v5696
      %5734 = vst.msk [vmem:[%s291 + $0xa8] sm:$0xff] %vm5712, %v5697
      %5735 = vst.msk [vmem:[%s291 + $0xb0] sm:$0xff] %vm5712, %v5698
      %5736 = vst.msk [vmem:[%s291 + $0xb8] sm:$0xff] %vm5712, %v5699
      %5737 = vst.msk [vmem:[%s291 + $0xc0] sm:$0xff] %vm5712, %v5700
      %5738 = vst.msk [vmem:[%s291 + $0xc8] sm:$0xff] %vm5712, %v5701
      %5739 = vst.msk [vmem:[%s291 + $0xd0] sm:$0xff] %vm5712, %v5702
      %5740 = vst.msk [vmem:[%s291 + $0xd8] sm:$0xff] %vm5712, %v5703
      %5741 = vst.msk [vmem:[%s291 + $0xe0] sm:$0xff] %vm5712, %v5704
      %5742 = vst.msk [vmem:[%s291 + $0xe8] sm:$0xff] %vm5712, %v5705
      %5743 = vst.msk [vmem:[%s291 + $0xf0] sm:$0xff] %vm5712, %v5706
      %5744 = vst.msk [vmem:[%s291 + $0xf8] sm:$0xff] %vm5712, %v5707
      %5745 = vst.msk [vmem:[%s291 + $0x100] sm:$0xff] %vm5712, %v5708
      %5746 = vst.msk [vmem:[%s291 + $0x108] sm:$0xff] %vm5712, %v5709
      %5747 = vst.msk [vmem:[%s291 + $0x110] sm:$0xff] %vm5712, %v5710
      %5748 = vst.msk [vmem:[%s291 + $0x118] sm:$0xff] %vm5712, %v5711
      %p5749 = scmp.lt.s32.totalorder %s19, 1
      %s5750 = scalar_select %p5749, %s19, 1
      %s5751 = smul.addr %s5750, 36
      %s5752 = smul.addr %s5751, 8
      %s5753 = scalar_lea.vmem %s6, %s5752
      %p5754 = scmp.lt.s32.totalorder %s19, 1
      %s5755 = scalar_select %p5754, %s19, 1
      %s5756 = smul.addr %s5755, 36
      %s5757 = smul.addr %s5756, 8
      %s5758 = scalar_lea.vmem %s7, %s5757
      // Predicated region
      $region45: #{tpu_custom_call.1} parent=43 // pred_check
        %p5759 = pneg %p168
      $region46: #{tpu_custom_call.1} parent=43 // pred_check_branch
        %5761 = sbr.rel (%p5759) target = $region48
      $region47: #{tpu_custom_call.1} parent=43 // pred_region
        _
      $region48: #{tpu_custom_call.1} parent=43 // pred_fallthru
        _
      // Predicated region
      $region49: #{tpu_custom_call.1} parent=43 // pred_check
        %p5762 = pneg %p194
      $region50: #{tpu_custom_call.1} parent=43 // pred_check_branch
        %5764 = sbr.rel (%p5762) target = $region52
      $region51: #{tpu_custom_call.1} parent=43 // pred_region
        _
      $region52: #{tpu_custom_call.1} parent=43 // pred_fallthru
        _
    $region44: #{tpu_custom_call.1} parent=5 // pred_fallthru
      _
    %p5765 = scmp.le.s32.totalorder 2, %s14
    // Predicated region
    $region53: #{tpu_custom_call.1} parent=5 // pred_check
      %p5766 = pneg %p5765
    $region54: #{tpu_custom_call.1} parent=5 // pred_check_branch
      %5768 = sbr.rel (%p5766) target = $region56
    $region55: #{tpu_custom_call.1} parent=5 // pred_region
      %s5769 = ssub.s32 %s14, 2
      // Predicated region
      $region57: #{tpu_custom_call.1} parent=55 // pred_check
        %p5770 = pneg %p174
      $region58: #{tpu_custom_call.1} parent=55 // pred_check_branch
        %5772 = sbr.rel (%p5770) target = $region60
      $region59: #{tpu_custom_call.1} parent=55 // pred_region
        %p5773 = scmp.lt.s32.totalorder %s20, 1
        %s5774 = scalar_select %p5773, %s20, 1
        %s5775 = smul.addr %s5774, 36
        %s5776 = smul.addr %s5775, 8
        %s5777 = scalar_lea.vmem %s6, %s5776
      $region60: #{tpu_custom_call.1} parent=55 // pred_fallthru
        _
      // Predicated region
      $region61: #{tpu_custom_call.1} parent=55 // pred_check
        %p5778 = pneg %p200
      $region62: #{tpu_custom_call.1} parent=55 // pred_check_branch
        %5780 = sbr.rel (%p5778) target = $region64
      $region63: #{tpu_custom_call.1} parent=55 // pred_region
        %p5781 = scmp.lt.s32.totalorder %s20, 1
        %s5782 = scalar_select %p5781, %s20, 1
        %s5783 = smul.addr %s5782, 36
        %s5784 = smul.addr %s5783, 8
        %s5785 = scalar_lea.vmem %s7, %s5784
      $region64: #{tpu_custom_call.1} parent=55 // pred_fallthru
        _
    $region56: #{tpu_custom_call.1} parent=5 // pred_fallthru
      _
  $region6: #{tpu_custom_call.1} parent=0 // loop_footer
    %s18 = sadd.s32 1, %s14
  $region7: #{tpu_custom_call.1} parent=0 // loop_footer_branch
    %13 = sbr.rel target = $region3
  $region8: #{tpu_custom_call.1} parent=0 // loop_exit
    _

</llo_original>
